<compile_context>
chip_gen: v5e
topology: v5e:2x2
jax: 0.10.0
libtpu: 0.0.40
codegen_flags: <defaults>
</compile_context>

<pallas_src>
import functools

import jax
import jax.numpy as jnp
from jax.experimental import pallas as pl
from jax.experimental.pallas import tpu as pltpu

LN_EPS = 1e-5  # PyTorch LayerNorm default


# ---------------------------------------------------------------- kernel helpers

def _layernorm(x, g, b):
    mu = jnp.mean(x, axis=-1, keepdims=True)
    xc = x - mu
    var = jnp.mean(xc * xc, axis=-1, keepdims=True)
    return xc * jax.lax.rsqrt(var + LN_EPS) * g + b


def _attention(q, k, v, *, batch, q_len, kv_len, nhead):
    """q: (B*Tq, D), k/v: (B*Tk, D), rows in (batch, time) order -> (B*Tq, D)."""
    _, d = q.shape
    hd = d // nhead
    scale = 1.0 / float(hd) ** 0.5
    q3 = q.reshape(batch, q_len, d)
    k3 = k.reshape(batch, kv_len, d)
    v3 = v.reshape(batch, kv_len, d)
    outs = []
    for h in range(nhead):                      # static unroll over heads
        sl = slice(h * hd, (h + 1) * hd)
        qh = q3[:, :, sl]                       # (B, Tq, hd)
        kh = k3[:, :, sl]                       # (B, Tk, hd)
        vh = v3[:, :, sl]                       # (B, Tk, hd)
        s = jnp.einsum("btd,bsd->bts", qh, kh,
                       preferred_element_type=jnp.float32) * scale
        m = jnp.max(s, axis=-1, keepdims=True)
        p = jnp.exp(s - m)
        denom = jnp.sum(p, axis=-1, keepdims=True)
        p = p * pl.reciprocal(denom, approx=True)   # EUP, off the VALU path
        outs.append(jnp.einsum("bts,bsd->btd", p, vh,
                               preferred_element_type=jnp.float32))
    o = jnp.concatenate(outs, axis=-1)          # (B, Tq, D)
    return o.reshape(batch * q_len, d)


# ---------------------------------------------------------------- fused kernel

def _decoder_kernel(x_ref, mem_ref,
                    sa_wqkv, sa_bqkv, sa_wo, sa_bo,
                    ca_wq, ca_bq, ca_wkv, ca_bkv, ca_wo, ca_bo,
                    w1, b1, w2, b2,
                    ln1_g, ln1_b, ln2_g, ln2_b, ln3_g, ln3_b,
                    fln_g, fln_b, dec_w, dec_b,
                    o_ref, *, num_layers, nhead, batch, tgt_len, src_len):
    d = x_ref.shape[-1]
    x = x_ref[...]            # (B*T, D) rows ordered (b, t)
    mem = mem_ref[...]        # (B*S, D) rows ordered (b, s)

    for layer in range(num_layers):             # static unroll over layers
        # ---- self attention (fused QKV projection) + add & norm
        qkv = jnp.dot(x, sa_wqkv[layer],
                      preferred_element_type=jnp.float32) + sa_bqkv[layer]
        sa = _attention(qkv[:, 0:d], qkv[:, d:2 * d], qkv[:, 2 * d:3 * d],
                        batch=batch, q_len=tgt_len, kv_len=tgt_len, nhead=nhead)
        sa = jnp.dot(sa, sa_wo[layer],
                     preferred_element_type=jnp.float32) + sa_bo[layer]
        x = _layernorm(x + sa, ln1_g[layer], ln1_b[layer])

        # ---- cross attention (fused KV projection on memory) + add & norm
        q = jnp.dot(x, ca_wq[layer],
                    preferred_element_type=jnp.float32) + ca_bq[layer]
        kv = jnp.dot(mem, ca_wkv[layer],
                     preferred_element_type=jnp.float32) + ca_bkv[layer]
        ca = _attention(q, kv[:, 0:d], kv[:, d:2 * d],
                        batch=batch, q_len=tgt_len, kv_len=src_len, nhead=nhead)
        ca = jnp.dot(ca, ca_wo[layer],
                     preferred_element_type=jnp.float32) + ca_bo[layer]
        x = _layernorm(x + ca, ln2_g[layer], ln2_b[layer])

        # ---- feed-forward (fused W1 -> relu -> W2) + add & norm
        hidden = jnp.maximum(
            jnp.dot(x, w1[layer], preferred_element_type=jnp.float32) + b1[layer], 0.0)
        ff = jnp.dot(hidden, w2[layer],
                     preferred_element_type=jnp.float32) + b2[layer]
        x = _layernorm(x + ff, ln3_g[layer], ln3_b[layer])

    # ---- final LayerNorm of the decoder stack (plain, no residual)
    x = _layernorm(x, fln_g[...], fln_b[...])

    # ---- Linear(d_model, 1): per-row dot (VPU mul + lane reduce), write (B, T)
    y = jnp.sum(x.reshape(batch, tgt_len, d) * dec_w[...], axis=-1)   # (B, T)
    o_ref[...] = y + dec_b[...]


# ---------------------------------------------------------------- wrapper

def pulse_decoder_forward(packed, decoded_latent, memory, *, nhead):
    """decoded_latent: (T, B, D), memory: (S, B, D) -> (B, T)."""
    t, b, d = decoded_latent.shape
    s = memory.shape[0]
    num_layers = packed["sa_wqkv"].shape[0]

    # Go batch-major ONCE here; the single fused kernel then needs no internal
    # permutes and the PyTorch trailing permute(1,0,2) disappears entirely.
    x = jnp.transpose(decoded_latent, (1, 0, 2)).reshape(b * t, d)
    mem = jnp.transpose(memory, (1, 0, 2)).reshape(b * s, d)

    order = ["sa_wqkv", "sa_bqkv", "sa_wo", "sa_bo",
             "ca_wq", "ca_bq", "ca_wkv", "ca_bkv", "ca_wo", "ca_bo",
             "w1", "b1", "w2", "b2",
             "ln1_g", "ln1_b", "ln2_g", "ln2_b", "ln3_g", "ln3_b",
             "fln_g", "fln_b", "dec_w", "dec_b"]
    weights = [packed[k] for k in order]

    kernel = functools.partial(_decoder_kernel, num_layers=num_layers, nhead=nhead,
                               batch=b, tgt_len=t, src_len=s)
    vmem = pl.BlockSpec(memory_space=pltpu.MemorySpace.VMEM)
    return pl.pallas_call(
        kernel,
        out_shape=jax.ShapeDtypeStruct((b, t), jnp.float32),
        in_specs=[vmem] * (2 + len(weights)),
        out_specs=vmem,
    )(x, mem, *weights)


# ---------------------------------------------------------------- params

def init_params(key, d_model, nhead, num_decoder_layers, dim_feedforward):
    def lin_init(k, din, dout):
        k1, k2 = jax.random.split(k)
        lim = 1.0 / float(din) ** 0.5
        w = jax.random.uniform(k1, (din, dout), jnp.float32, -lim, lim)
        b = jax.random.uniform(k2, (dout,), jnp.float32, -lim, lim)
        return w, b

    def mha_init(k):
        ks = jax.random.split(k, 4)
        wq, bq = lin_init(ks[0], d_model, d_model)
        wk, bk = lin_init(ks[1], d_model, d_model)
        wv, bv = lin_init(ks[2], d_model, d_model)
        wo, bo = lin_init(ks[3], d_model, d_model)
        return dict(wq=wq, bq=bq, wk=wk, bk=bk, wv=wv, bv=bv, wo=wo, bo=bo)

    layers = []
    for _ in range(num_decoder_layers):
        key, k_sa, k_ca, k_f1, k_f2 = jax.random.split(key, 5)
        w1, b1 = lin_init(k_f1, d_model, dim_feedforward)
        w2, b2 = lin_init(k_f2, dim_feedforward, d_model)
        layers.append(dict(
            self_attn=mha_init(k_sa), cross_attn=mha_init(k_ca),
            w1=w1, b1=b1, w2=w2, b2=b2,
            ln1_g=jnp.ones((d_model,), jnp.float32), ln1_b=jnp.zeros((d_model,), jnp.float32),
            ln2_g=jnp.ones((d_model,), jnp.float32), ln2_b=jnp.zeros((d_model,), jnp.float32),
            ln3_g=jnp.ones((d_model,), jnp.float32), ln3_b=jnp.zeros((d_model,), jnp.float32),
        ))

    key, k_dec = jax.random.split(key)
    dec_w, dec_b = lin_init(k_dec, d_model, 1)
    return dict(layers=layers,
                final_ln_g=jnp.ones((d_model,), jnp.float32),
                final_ln_b=jnp.zeros((d_model,), jnp.float32),
                dec_w=dec_w, dec_b=dec_b)


def pack_params(params):
    """Stack per-layer weights on a leading L axis and concatenate Q/K/V (and
    cross-attn K/V) projections so the fused kernel does lane-dense matmuls.
    Done once at setup time (outside the jitted forward)."""
    layers = params["layers"]

    def stack(fn):
        return jnp.stack([fn(p) for p in layers])

    return dict(
        sa_wqkv=stack(lambda p: jnp.concatenate(
            [p["self_attn"]["wq"], p["self_attn"]["wk"], p["self_attn"]["wv"]], axis=1)),
        sa_bqkv=stack(lambda p: jnp.concatenate(
            [p["self_attn"]["bq"], p["self_attn"]["bk"], p["self_attn"]["bv"]])[None, :]),
        sa_wo=stack(lambda p: p["self_attn"]["wo"]),
        sa_bo=stack(lambda p: p["self_attn"]["bo"][None, :]),
        ca_wq=stack(lambda p: p["cross_attn"]["wq"]),
        ca_bq=stack(lambda p: p["cross_attn"]["bq"][None, :]),
        ca_wkv=stack(lambda p: jnp.concatenate(
            [p["cross_attn"]["wk"], p["cross_attn"]["wv"]], axis=1)),
        ca_bkv=stack(lambda p: jnp.concatenate(
            [p["cross_attn"]["bk"], p["cross_attn"]["bv"]])[None, :]),
        ca_wo=stack(lambda p: p["cross_attn"]["wo"]),
        ca_bo=stack(lambda p: p["cross_attn"]["bo"][None, :]),
        w1=stack(lambda p: p["w1"]),
        b1=stack(lambda p: p["b1"][None, :]),
        w2=stack(lambda p: p["w2"]),
        b2=stack(lambda p: p["b2"][None, :]),
        ln1_g=stack(lambda p: p["ln1_g"][None, :]),
        ln1_b=stack(lambda p: p["ln1_b"][None, :]),
        ln2_g=stack(lambda p: p["ln2_g"][None, :]),
        ln2_b=stack(lambda p: p["ln2_b"][None, :]),
        ln3_g=stack(lambda p: p["ln3_g"][None, :]),
        ln3_b=stack(lambda p: p["ln3_b"][None, :]),
        fln_g=params["final_ln_g"][None, :],       # (1, D)
        fln_b=params["final_ln_b"][None, :],       # (1, D)
        dec_w=params["dec_w"].T[None, :, :],       # (1, 1, D)
        dec_b=params["dec_b"][None, :],            # (1, 1)
    )


# ---------------------------------------------------------------- main

if __name__ == "__main__":
    d_model = 32
    nhead = 4
    num_decoder_layers = 2
    dim_feedforward = 64
    T, S, B = 8, 8, 2   # tgt seq len, memory seq len, batch

    key = jax.random.PRNGKey(0)
    key, kp, kx, km = jax.random.split(key, 4)
    params = init_params(kp, d_model, nhead, num_decoder_layers, dim_feedforward)
    packed = pack_params(params)

    decoded_latent = jax.random.normal(kx, (T, B, d_model), jnp.float32)
    memory = jax.random.normal(km, (S, B, d_model), jnp.float32)

    # TODO(synk): the PulseEncoder / LSTM encoder-decoder / latent linears of
    # TransformerAutoencoder4 are outside this kernel's scope (same scope as the
    # reviewed previous version: the PulseDecoder forward).
    fwd = jax.jit(functools.partial(pulse_decoder_forward, nhead=nhead))
    out = fwd(packed, decoded_latent, memory)
    jax.block_until_ready(out)

    assert out.shape == (B, T), out.shape
    assert out.dtype == jnp.float32
    assert bool(jnp.all(jnp.isfinite(out)))
    print("KERNEL_OK")
</pallas_src>

<mosaic_0001>
module attributes {stable_mosaic.version = 11 : i64} {
  func.func @_decoder_kernel(%arg0: memref<16x32xf32, #tpu.memory_space<vmem>>, %arg1: memref<16x32xf32, #tpu.memory_space<vmem>>, %arg2: memref<2x32x96xf32, #tpu.memory_space<vmem>>, %arg3: memref<2x1x96xf32, #tpu.memory_space<vmem>>, %arg4: memref<2x32x32xf32, #tpu.memory_space<vmem>>, %arg5: memref<2x1x32xf32, #tpu.memory_space<vmem>>, %arg6: memref<2x32x32xf32, #tpu.memory_space<vmem>>, %arg7: memref<2x1x32xf32, #tpu.memory_space<vmem>>, %arg8: memref<2x32x64xf32, #tpu.memory_space<vmem>>, %arg9: memref<2x1x64xf32, #tpu.memory_space<vmem>>, %arg10: memref<2x32x32xf32, #tpu.memory_space<vmem>>, %arg11: memref<2x1x32xf32, #tpu.memory_space<vmem>>, %arg12: memref<2x32x64xf32, #tpu.memory_space<vmem>>, %arg13: memref<2x1x64xf32, #tpu.memory_space<vmem>>, %arg14: memref<2x64x32xf32, #tpu.memory_space<vmem>>, %arg15: memref<2x1x32xf32, #tpu.memory_space<vmem>>, %arg16: memref<2x1x32xf32, #tpu.memory_space<vmem>>, %arg17: memref<2x1x32xf32, #tpu.memory_space<vmem>>, %arg18: memref<2x1x32xf32, #tpu.memory_space<vmem>>, %arg19: memref<2x1x32xf32, #tpu.memory_space<vmem>>, %arg20: memref<2x1x32xf32, #tpu.memory_space<vmem>>, %arg21: memref<2x1x32xf32, #tpu.memory_space<vmem>>, %arg22: memref<1x32xf32, #tpu.memory_space<vmem>>, %arg23: memref<1x32xf32, #tpu.memory_space<vmem>>, %arg24: memref<1x1x32xf32, #tpu.memory_space<vmem>>, %arg25: memref<1x1xf32, #tpu.memory_space<vmem>>, %arg26: memref<2x8xf32, #tpu.memory_space<vmem>>) attributes {dimension_semantics = [], scalar_prefetch = 0 : i64, scratch_operands = 0 : i64, tpu.core_type = #tpu.core_type<tc>} {
    %c0 = arith.constant 0 : index
    %c0_0 = arith.constant 0 : index
    %0 = vector.load %arg0[%c0, %c0_0] : memref<16x32xf32, #tpu.memory_space<vmem>>, vector<16x32xf32>
    %c0_1 = arith.constant 0 : index
    %c0_2 = arith.constant 0 : index
    %1 = vector.load %arg1[%c0_1, %c0_2] : memref<16x32xf32, #tpu.memory_space<vmem>>, vector<16x32xf32>
    %c0_3 = arith.constant 0 : index
    %c0_4 = arith.constant 0 : index
    %c0_5 = arith.constant 0 : index
    %2 = vector.load %arg2[%c0_3, %c0_4, %c0_5] : memref<2x32x96xf32, #tpu.memory_space<vmem>>, vector<1x32x96xf32>
    %3 = vector.shape_cast %2 : vector<1x32x96xf32> to vector<32x96xf32>
    %cst = arith.constant dense<0.000000e+00> : vector<16x96xf32>
    %4 = tpu.matmul %0, %3, %cst {dimension_numbers = #tpu.dot_dimension_numbers<[1], [0], [0], [1], [0, 0, 1, 1], [], []>} : vector<16x32xf32>, vector<32x96xf32>, vector<16x96xf32> -> vector<16x96xf32>
    %c0_6 = arith.constant 0 : index
    %c0_7 = arith.constant 0 : index
    %c0_8 = arith.constant 0 : index
    %5 = vector.load %arg3[%c0_6, %c0_7, %c0_8] : memref<2x1x96xf32, #tpu.memory_space<vmem>>, vector<1x1x96xf32>
    %6 = vector.shape_cast %5 : vector<1x1x96xf32> to vector<1x96xf32>
    %7 = vector.broadcast %6 : vector<1x96xf32> to vector<16x96xf32>
    %8 = arith.addf %4, %7 : vector<16x96xf32>
    %9 = vector.extract_strided_slice %8 {offsets = [0, 0], sizes = [16, 32], strides = [1, 1]} : vector<16x96xf32> to vector<16x32xf32>
    %10 = vector.extract_strided_slice %8 {offsets = [0, 32], sizes = [16, 32], strides = [1, 1]} : vector<16x96xf32> to vector<16x32xf32>
    %11 = vector.extract_strided_slice %8 {offsets = [0, 64], sizes = [16, 32], strides = [1, 1]} : vector<16x96xf32> to vector<16x32xf32>
    %12 = vector.shape_cast %9 : vector<16x32xf32> to vector<2x8x32xf32>
    %13 = vector.shape_cast %10 : vector<16x32xf32> to vector<2x8x32xf32>
    %14 = vector.shape_cast %11 : vector<16x32xf32> to vector<2x8x32xf32>
    %15 = vector.extract_strided_slice %12 {offsets = [0, 0, 0], sizes = [2, 8, 8], strides = [1, 1, 1]} : vector<2x8x32xf32> to vector<2x8x8xf32>
    %16 = vector.extract_strided_slice %13 {offsets = [0, 0, 0], sizes = [2, 8, 8], strides = [1, 1, 1]} : vector<2x8x32xf32> to vector<2x8x8xf32>
    %17 = vector.extract_strided_slice %14 {offsets = [0, 0, 0], sizes = [2, 8, 8], strides = [1, 1, 1]} : vector<2x8x32xf32> to vector<2x8x8xf32>
    "tpu.trace_start"() <{level = 10 : i32, message = "btd,bsd->bts"}> : () -> ()
    %cst_9 = arith.constant dense<0.000000e+00> : vector<2x8x8xf32>
    %18 = tpu.matmul %15, %16, %cst_9 {dimension_numbers = #tpu.dot_dimension_numbers<[2], [2], [1], [1], [0, 0, 0, 1, 1, 1], [0], [0]>} : vector<2x8x8xf32>, vector<2x8x8xf32>, vector<2x8x8xf32> -> vector<2x8x8xf32>
    "tpu.trace_stop"() : () -> ()
    %cst_10 = arith.constant 0.353553385 : f32
    %19 = vector.broadcast %cst_10 : f32 to vector<2x8x8xf32>
    %20 = arith.mulf %18, %19 : vector<2x8x8xf32>
    %cst_11 = arith.constant dense<0xFF800000> : vector<2x8xf32>
    %21 = vector.multi_reduction <maximumf>, %20, %cst_11 [2] : vector<2x8x8xf32> to vector<2x8xf32>
    %22 = vector.shape_cast %21 : vector<2x8xf32> to vector<2x8x1xf32>
    %23 = vector.broadcast %22 : vector<2x8x1xf32> to vector<2x8x8xf32>
    %24 = arith.subf %20, %23 : vector<2x8x8xf32>
    %25 = math.exp %24 : vector<2x8x8xf32>
    %cst_12 = arith.constant dense<0.000000e+00> : vector<2x8xf32>
    %26 = vector.multi_reduction <add>, %25, %cst_12 [2] : vector<2x8x8xf32> to vector<2x8xf32>
    %27 = vector.shape_cast %26 : vector<2x8xf32> to vector<2x8x1xf32>
    %28 = tpu.reciprocal %27 {approx = true} : vector<2x8x1xf32> -> vector<2x8x1xf32>
    %29 = vector.broadcast %28 : vector<2x8x1xf32> to vector<2x8x8xf32>
    %30 = arith.mulf %25, %29 : vector<2x8x8xf32>
    "tpu.trace_start"() <{level = 10 : i32, message = "bts,bsd->btd"}> : () -> ()
    %cst_13 = arith.constant dense<0.000000e+00> : vector<2x8x8xf32>
    %31 = tpu.matmul %30, %17, %cst_13 {dimension_numbers = #tpu.dot_dimension_numbers<[2], [1], [1], [2], [0, 0, 0, 1, 1, 2], [0], [0]>} : vector<2x8x8xf32>, vector<2x8x8xf32>, vector<2x8x8xf32> -> vector<2x8x8xf32>
    "tpu.trace_stop"() : () -> ()
    %32 = vector.extract_strided_slice %12 {offsets = [0, 0, 8], sizes = [2, 8, 8], strides = [1, 1, 1]} : vector<2x8x32xf32> to vector<2x8x8xf32>
    %33 = vector.extract_strided_slice %13 {offsets = [0, 0, 8], sizes = [2, 8, 8], strides = [1, 1, 1]} : vector<2x8x32xf32> to vector<2x8x8xf32>
    %34 = vector.extract_strided_slice %14 {offsets = [0, 0, 8], sizes = [2, 8, 8], strides = [1, 1, 1]} : vector<2x8x32xf32> to vector<2x8x8xf32>
    "tpu.trace_start"() <{level = 10 : i32, message = "btd,bsd->bts"}> : () -> ()
    %cst_14 = arith.constant dense<0.000000e+00> : vector<2x8x8xf32>
    %35 = tpu.matmul %32, %33, %cst_14 {dimension_numbers = #tpu.dot_dimension_numbers<[2], [2], [1], [1], [0, 0, 0, 1, 1, 1], [0], [0]>} : vector<2x8x8xf32>, vector<2x8x8xf32>, vector<2x8x8xf32> -> vector<2x8x8xf32>
    "tpu.trace_stop"() : () -> ()
    %cst_15 = arith.constant 0.353553385 : f32
    %36 = vector.broadcast %cst_15 : f32 to vector<2x8x8xf32>
    %37 = arith.mulf %35, %36 : vector<2x8x8xf32>
    %cst_16 = arith.constant dense<0xFF800000> : vector<2x8xf32>
    %38 = vector.multi_reduction <maximumf>, %37, %cst_16 [2] : vector<2x8x8xf32> to vector<2x8xf32>
    %39 = vector.shape_cast %38 : vector<2x8xf32> to vector<2x8x1xf32>
    %40 = vector.broadcast %39 : vector<2x8x1xf32> to vector<2x8x8xf32>
    %41 = arith.subf %37, %40 : vector<2x8x8xf32>
    %42 = math.exp %41 : vector<2x8x8xf32>
    %cst_17 = arith.constant dense<0.000000e+00> : vector<2x8xf32>
    %43 = vector.multi_reduction <add>, %42, %cst_17 [2] : vector<2x8x8xf32> to vector<2x8xf32>
    %44 = vector.shape_cast %43 : vector<2x8xf32> to vector<2x8x1xf32>
    %45 = tpu.reciprocal %44 {approx = true} : vector<2x8x1xf32> -> vector<2x8x1xf32>
    %46 = vector.broadcast %45 : vector<2x8x1xf32> to vector<2x8x8xf32>
    %47 = arith.mulf %42, %46 : vector<2x8x8xf32>
    "tpu.trace_start"() <{level = 10 : i32, message = "bts,bsd->btd"}> : () -> ()
    %cst_18 = arith.constant dense<0.000000e+00> : vector<2x8x8xf32>
    %48 = tpu.matmul %47, %34, %cst_18 {dimension_numbers = #tpu.dot_dimension_numbers<[2], [1], [1], [2], [0, 0, 0, 1, 1, 2], [0], [0]>} : vector<2x8x8xf32>, vector<2x8x8xf32>, vector<2x8x8xf32> -> vector<2x8x8xf32>
    "tpu.trace_stop"() : () -> ()
    %49 = vector.extract_strided_slice %12 {offsets = [0, 0, 16], sizes = [2, 8, 8], strides = [1, 1, 1]} : vector<2x8x32xf32> to vector<2x8x8xf32>
    %50 = vector.extract_strided_slice %13 {offsets = [0, 0, 16], sizes = [2, 8, 8], strides = [1, 1, 1]} : vector<2x8x32xf32> to vector<2x8x8xf32>
    %51 = vector.extract_strided_slice %14 {offsets = [0, 0, 16], sizes = [2, 8, 8], strides = [1, 1, 1]} : vector<2x8x32xf32> to vector<2x8x8xf32>
    "tpu.trace_start"() <{level = 10 : i32, message = "btd,bsd->bts"}> : () -> ()
    %cst_19 = arith.constant dense<0.000000e+00> : vector<2x8x8xf32>
    %52 = tpu.matmul %49, %50, %cst_19 {dimension_numbers = #tpu.dot_dimension_numbers<[2], [2], [1], [1], [0, 0, 0, 1, 1, 1], [0], [0]>} : vector<2x8x8xf32>, vector<2x8x8xf32>, vector<2x8x8xf32> -> vector<2x8x8xf32>
    "tpu.trace_stop"() : () -> ()
    %cst_20 = arith.constant 0.353553385 : f32
    %53 = vector.broadcast %cst_20 : f32 to vector<2x8x8xf32>
    %54 = arith.mulf %52, %53 : vector<2x8x8xf32>
    %cst_21 = arith.constant dense<0xFF800000> : vector<2x8xf32>
    %55 = vector.multi_reduction <maximumf>, %54, %cst_21 [2] : vector<2x8x8xf32> to vector<2x8xf32>
    %56 = vector.shape_cast %55 : vector<2x8xf32> to vector<2x8x1xf32>
    %57 = vector.broadcast %56 : vector<2x8x1xf32> to vector<2x8x8xf32>
    %58 = arith.subf %54, %57 : vector<2x8x8xf32>
    %59 = math.exp %58 : vector<2x8x8xf32>
    %cst_22 = arith.constant dense<0.000000e+00> : vector<2x8xf32>
    %60 = vector.multi_reduction <add>, %59, %cst_22 [2] : vector<2x8x8xf32> to vector<2x8xf32>
    %61 = vector.shape_cast %60 : vector<2x8xf32> to vector<2x8x1xf32>
    %62 = tpu.reciprocal %61 {approx = true} : vector<2x8x1xf32> -> vector<2x8x1xf32>
    %63 = vector.broadcast %62 : vector<2x8x1xf32> to vector<2x8x8xf32>
    %64 = arith.mulf %59, %63 : vector<2x8x8xf32>
    "tpu.trace_start"() <{level = 10 : i32, message = "bts,bsd->btd"}> : () -> ()
    %cst_23 = arith.constant dense<0.000000e+00> : vector<2x8x8xf32>
    %65 = tpu.matmul %64, %51, %cst_23 {dimension_numbers = #tpu.dot_dimension_numbers<[2], [1], [1], [2], [0, 0, 0, 1, 1, 2], [0], [0]>} : vector<2x8x8xf32>, vector<2x8x8xf32>, vector<2x8x8xf32> -> vector<2x8x8xf32>
    "tpu.trace_stop"() : () -> ()
    %66 = vector.extract_strided_slice %12 {offsets = [0, 0, 24], sizes = [2, 8, 8], strides = [1, 1, 1]} : vector<2x8x32xf32> to vector<2x8x8xf32>
    %67 = vector.extract_strided_slice %13 {offsets = [0, 0, 24], sizes = [2, 8, 8], strides = [1, 1, 1]} : vector<2x8x32xf32> to vector<2x8x8xf32>
    %68 = vector.extract_strided_slice %14 {offsets = [0, 0, 24], sizes = [2, 8, 8], strides = [1, 1, 1]} : vector<2x8x32xf32> to vector<2x8x8xf32>
    "tpu.trace_start"() <{level = 10 : i32, message = "btd,bsd->bts"}> : () -> ()
    %cst_24 = arith.constant dense<0.000000e+00> : vector<2x8x8xf32>
    %69 = tpu.matmul %66, %67, %cst_24 {dimension_numbers = #tpu.dot_dimension_numbers<[2], [2], [1], [1], [0, 0, 0, 1, 1, 1], [0], [0]>} : vector<2x8x8xf32>, vector<2x8x8xf32>, vector<2x8x8xf32> -> vector<2x8x8xf32>
    "tpu.trace_stop"() : () -> ()
    %cst_25 = arith.constant 0.353553385 : f32
    %70 = vector.broadcast %cst_25 : f32 to vector<2x8x8xf32>
    %71 = arith.mulf %69, %70 : vector<2x8x8xf32>
    %cst_26 = arith.constant dense<0xFF800000> : vector<2x8xf32>
    %72 = vector.multi_reduction <maximumf>, %71, %cst_26 [2] : vector<2x8x8xf32> to vector<2x8xf32>
    %73 = vector.shape_cast %72 : vector<2x8xf32> to vector<2x8x1xf32>
    %74 = vector.broadcast %73 : vector<2x8x1xf32> to vector<2x8x8xf32>
    %75 = arith.subf %71, %74 : vector<2x8x8xf32>
    %76 = math.exp %75 : vector<2x8x8xf32>
    %cst_27 = arith.constant dense<0.000000e+00> : vector<2x8xf32>
    %77 = vector.multi_reduction <add>, %76, %cst_27 [2] : vector<2x8x8xf32> to vector<2x8xf32>
    %78 = vector.shape_cast %77 : vector<2x8xf32> to vector<2x8x1xf32>
    %79 = tpu.reciprocal %78 {approx = true} : vector<2x8x1xf32> -> vector<2x8x1xf32>
    %80 = vector.broadcast %79 : vector<2x8x1xf32> to vector<2x8x8xf32>
    %81 = arith.mulf %76, %80 : vector<2x8x8xf32>
    "tpu.trace_start"() <{level = 10 : i32, message = "bts,bsd->btd"}> : () -> ()
    %cst_28 = arith.constant dense<0.000000e+00> : vector<2x8x8xf32>
    %82 = tpu.matmul %81, %68, %cst_28 {dimension_numbers = #tpu.dot_dimension_numbers<[2], [1], [1], [2], [0, 0, 0, 1, 1, 2], [0], [0]>} : vector<2x8x8xf32>, vector<2x8x8xf32>, vector<2x8x8xf32> -> vector<2x8x8xf32>
    "tpu.trace_stop"() : () -> ()
    %83 = tpu.concatenate %31, %48, %65, %82 in 2 : vector<2x8x8xf32>, vector<2x8x8xf32>, vector<2x8x8xf32>, vector<2x8x8xf32> -> vector<2x8x32xf32>
    %84 = vector.shape_cast %83 : vector<2x8x32xf32> to vector<16x32xf32>
    %c0_29 = arith.constant 0 : index
    %c0_30 = arith.constant 0 : index
    %c0_31 = arith.constant 0 : index
    %85 = vector.load %arg4[%c0_29, %c0_30, %c0_31] : memref<2x32x32xf32, #tpu.memory_space<vmem>>, vector<1x32x32xf32>
    %86 = vector.shape_cast %85 : vector<1x32x32xf32> to vector<32x32xf32>
    %cst_32 = arith.constant dense<0.000000e+00> : vector<16x32xf32>
    %87 = tpu.matmul %84, %86, %cst_32 {dimension_numbers = #tpu.dot_dimension_numbers<[1], [0], [0], [1], [0, 0, 1, 1], [], []>} : vector<16x32xf32>, vector<32x32xf32>, vector<16x32xf32> -> vector<16x32xf32>
    %c0_33 = arith.constant 0 : index
    %c0_34 = arith.constant 0 : index
    %c0_35 = arith.constant 0 : index
    %88 = vector.load %arg5[%c0_33, %c0_34, %c0_35] : memref<2x1x32xf32, #tpu.memory_space<vmem>>, vector<1x1x32xf32>
    %89 = vector.shape_cast %88 : vector<1x1x32xf32> to vector<1x32xf32>
    %90 = vector.broadcast %89 : vector<1x32xf32> to vector<16x32xf32>
    %91 = arith.addf %87, %90 : vector<16x32xf32>
    %92 = arith.addf %0, %91 : vector<16x32xf32>
    %c0_36 = arith.constant 0 : index
    %c0_37 = arith.constant 0 : index
    %c0_38 = arith.constant 0 : index
    %93 = vector.load %arg16[%c0_36, %c0_37, %c0_38] : memref<2x1x32xf32, #tpu.memory_space<vmem>>, vector<1x1x32xf32>
    %94 = vector.shape_cast %93 : vector<1x1x32xf32> to vector<1x32xf32>
    %c0_39 = arith.constant 0 : index
    %c0_40 = arith.constant 0 : index
    %c0_41 = arith.constant 0 : index
    %95 = vector.load %arg17[%c0_39, %c0_40, %c0_41] : memref<2x1x32xf32, #tpu.memory_space<vmem>>, vector<1x1x32xf32>
    %96 = vector.shape_cast %95 : vector<1x1x32xf32> to vector<1x32xf32>
    %cst_42 = arith.constant dense<0.000000e+00> : vector<16xf32>
    %97 = vector.multi_reduction <add>, %92, %cst_42 [1] : vector<16x32xf32> to vector<16xf32>
    %98 = vector.shape_cast %97 : vector<16xf32> to vector<16x1xf32>
    %cst_43 = arith.constant 3.200000e+01 : f32
    %99 = vector.broadcast %cst_43 : f32 to vector<16x1xf32>
    %100 = arith.divf %98, %99 : vector<16x1xf32>
    %101 = vector.broadcast %100 : vector<16x1xf32> to vector<16x32xf32>
    %102 = arith.subf %92, %101 : vector<16x32xf32>
    %103 = arith.mulf %102, %102 : vector<16x32xf32>
    %cst_44 = arith.constant dense<0.000000e+00> : vector<16xf32>
    %104 = vector.multi_reduction <add>, %103, %cst_44 [1] : vector<16x32xf32> to vector<16xf32>
    %105 = vector.shape_cast %104 : vector<16xf32> to vector<16x1xf32>
    %cst_45 = arith.constant 3.200000e+01 : f32
    %106 = vector.broadcast %cst_45 : f32 to vector<16x1xf32>
    %107 = arith.divf %105, %106 : vector<16x1xf32>
    %cst_46 = arith.constant 9.99999974E-6 : f32
    %108 = vector.broadcast %cst_46 : f32 to vector<16x1xf32>
    %109 = arith.addf %107, %108 : vector<16x1xf32>
    %110 = math.rsqrt %109 : vector<16x1xf32>
    %111 = vector.broadcast %110 : vector<16x1xf32> to vector<16x32xf32>
    %112 = arith.mulf %102, %111 : vector<16x32xf32>
    %113 = vector.broadcast %94 : vector<1x32xf32> to vector<16x32xf32>
    %114 = arith.mulf %112, %113 : vector<16x32xf32>
    %115 = vector.broadcast %96 : vector<1x32xf32> to vector<16x32xf32>
    %116 = arith.addf %114, %115 : vector<16x32xf32>
    %c0_47 = arith.constant 0 : index
    %c0_48 = arith.constant 0 : index
    %c0_49 = arith.constant 0 : index
    %117 = vector.load %arg6[%c0_47, %c0_48, %c0_49] : memref<2x32x32xf32, #tpu.memory_space<vmem>>, vector<1x32x32xf32>
    %118 = vector.shape_cast %117 : vector<1x32x32xf32> to vector<32x32xf32>
    %cst_50 = arith.constant dense<0.000000e+00> : vector<16x32xf32>
    %119 = tpu.matmul %116, %118, %cst_50 {dimension_numbers = #tpu.dot_dimension_numbers<[1], [0], [0], [1], [0, 0, 1, 1], [], []>} : vector<16x32xf32>, vector<32x32xf32>, vector<16x32xf32> -> vector<16x32xf32>
    %c0_51 = arith.constant 0 : index
    %c0_52 = arith.constant 0 : index
    %c0_53 = arith.constant 0 : index
    %120 = vector.load %arg7[%c0_51, %c0_52, %c0_53] : memref<2x1x32xf32, #tpu.memory_space<vmem>>, vector<1x1x32xf32>
    %121 = vector.shape_cast %120 : vector<1x1x32xf32> to vector<1x32xf32>
    %122 = vector.broadcast %121 : vector<1x32xf32> to vector<16x32xf32>
    %123 = arith.addf %119, %122 : vector<16x32xf32>
    %c0_54 = arith.constant 0 : index
    %c0_55 = arith.constant 0 : index
    %c0_56 = arith.constant 0 : index
    %124 = vector.load %arg8[%c0_54, %c0_55, %c0_56] : memref<2x32x64xf32, #tpu.memory_space<vmem>>, vector<1x32x64xf32>
    %125 = vector.shape_cast %124 : vector<1x32x64xf32> to vector<32x64xf32>
    %cst_57 = arith.constant dense<0.000000e+00> : vector<16x64xf32>
    %126 = tpu.matmul %1, %125, %cst_57 {dimension_numbers = #tpu.dot_dimension_numbers<[1], [0], [0], [1], [0, 0, 1, 1], [], []>} : vector<16x32xf32>, vector<32x64xf32>, vector<16x64xf32> -> vector<16x64xf32>
    %c0_58 = arith.constant 0 : index
    %c0_59 = arith.constant 0 : index
    %c0_60 = arith.constant 0 : index
    %127 = vector.load %arg9[%c0_58, %c0_59, %c0_60] : memref<2x1x64xf32, #tpu.memory_space<vmem>>, vector<1x1x64xf32>
    %128 = vector.shape_cast %127 : vector<1x1x64xf32> to vector<1x64xf32>
    %129 = vector.broadcast %128 : vector<1x64xf32> to vector<16x64xf32>
    %130 = arith.addf %126, %129 : vector<16x64xf32>
    %131 = vector.extract_strided_slice %130 {offsets = [0, 0], sizes = [16, 32], strides = [1, 1]} : vector<16x64xf32> to vector<16x32xf32>
    %132 = vector.extract_strided_slice %130 {offsets = [0, 32], sizes = [16, 32], strides = [1, 1]} : vector<16x64xf32> to vector<16x32xf32>
    %133 = vector.shape_cast %123 : vector<16x32xf32> to vector<2x8x32xf32>
    %134 = vector.shape_cast %131 : vector<16x32xf32> to vector<2x8x32xf32>
    %135 = vector.shape_cast %132 : vector<16x32xf32> to vector<2x8x32xf32>
    %136 = vector.extract_strided_slice %133 {offsets = [0, 0, 0], sizes = [2, 8, 8], strides = [1, 1, 1]} : vector<2x8x32xf32> to vector<2x8x8xf32>
    %137 = vector.extract_strided_slice %134 {offsets = [0, 0, 0], sizes = [2, 8, 8], strides = [1, 1, 1]} : vector<2x8x32xf32> to vector<2x8x8xf32>
    %138 = vector.extract_strided_slice %135 {offsets = [0, 0, 0], sizes = [2, 8, 8], strides = [1, 1, 1]} : vector<2x8x32xf32> to vector<2x8x8xf32>
    "tpu.trace_start"() <{level = 10 : i32, message = "btd,bsd->bts"}> : () -> ()
    %cst_61 = arith.constant dense<0.000000e+00> : vector<2x8x8xf32>
    %139 = tpu.matmul %136, %137, %cst_61 {dimension_numbers = #tpu.dot_dimension_numbers<[2], [2], [1], [1], [0, 0, 0, 1, 1, 1], [0], [0]>} : vector<2x8x8xf32>, vector<2x8x8xf32>, vector<2x8x8xf32> -> vector<2x8x8xf32>
    "tpu.trace_stop"() : () -> ()
    %cst_62 = arith.constant 0.353553385 : f32
    %140 = vector.broadcast %cst_62 : f32 to vector<2x8x8xf32>
    %141 = arith.mulf %139, %140 : vector<2x8x8xf32>
    %cst_63 = arith.constant dense<0xFF800000> : vector<2x8xf32>
    %142 = vector.multi_reduction <maximumf>, %141, %cst_63 [2] : vector<2x8x8xf32> to vector<2x8xf32>
    %143 = vector.shape_cast %142 : vector<2x8xf32> to vector<2x8x1xf32>
    %144 = vector.broadcast %143 : vector<2x8x1xf32> to vector<2x8x8xf32>
    %145 = arith.subf %141, %144 : vector<2x8x8xf32>
    %146 = math.exp %145 : vector<2x8x8xf32>
    %cst_64 = arith.constant dense<0.000000e+00> : vector<2x8xf32>
    %147 = vector.multi_reduction <add>, %146, %cst_64 [2] : vector<2x8x8xf32> to vector<2x8xf32>
    %148 = vector.shape_cast %147 : vector<2x8xf32> to vector<2x8x1xf32>
    %149 = tpu.reciprocal %148 {approx = true} : vector<2x8x1xf32> -> vector<2x8x1xf32>
    %150 = vector.broadcast %149 : vector<2x8x1xf32> to vector<2x8x8xf32>
    %151 = arith.mulf %146, %150 : vector<2x8x8xf32>
    "tpu.trace_start"() <{level = 10 : i32, message = "bts,bsd->btd"}> : () -> ()
    %cst_65 = arith.constant dense<0.000000e+00> : vector<2x8x8xf32>
    %152 = tpu.matmul %151, %138, %cst_65 {dimension_numbers = #tpu.dot_dimension_numbers<[2], [1], [1], [2], [0, 0, 0, 1, 1, 2], [0], [0]>} : vector<2x8x8xf32>, vector<2x8x8xf32>, vector<2x8x8xf32> -> vector<2x8x8xf32>
    "tpu.trace_stop"() : () -> ()
    %153 = vector.extract_strided_slice %133 {offsets = [0, 0, 8], sizes = [2, 8, 8], strides = [1, 1, 1]} : vector<2x8x32xf32> to vector<2x8x8xf32>
    %154 = vector.extract_strided_slice %134 {offsets = [0, 0, 8], sizes = [2, 8, 8], strides = [1, 1, 1]} : vector<2x8x32xf32> to vector<2x8x8xf32>
    %155 = vector.extract_strided_slice %135 {offsets = [0, 0, 8], sizes = [2, 8, 8], strides = [1, 1, 1]} : vector<2x8x32xf32> to vector<2x8x8xf32>
    "tpu.trace_start"() <{level = 10 : i32, message = "btd,bsd->bts"}> : () -> ()
    %cst_66 = arith.constant dense<0.000000e+00> : vector<2x8x8xf32>
    %156 = tpu.matmul %153, %154, %cst_66 {dimension_numbers = #tpu.dot_dimension_numbers<[2], [2], [1], [1], [0, 0, 0, 1, 1, 1], [0], [0]>} : vector<2x8x8xf32>, vector<2x8x8xf32>, vector<2x8x8xf32> -> vector<2x8x8xf32>
    "tpu.trace_stop"() : () -> ()
    %cst_67 = arith.constant 0.353553385 : f32
    %157 = vector.broadcast %cst_67 : f32 to vector<2x8x8xf32>
    %158 = arith.mulf %156, %157 : vector<2x8x8xf32>
    %cst_68 = arith.constant dense<0xFF800000> : vector<2x8xf32>
    %159 = vector.multi_reduction <maximumf>, %158, %cst_68 [2] : vector<2x8x8xf32> to vector<2x8xf32>
    %160 = vector.shape_cast %159 : vector<2x8xf32> to vector<2x8x1xf32>
    %161 = vector.broadcast %160 : vector<2x8x1xf32> to vector<2x8x8xf32>
    %162 = arith.subf %158, %161 : vector<2x8x8xf32>
    %163 = math.exp %162 : vector<2x8x8xf32>
    %cst_69 = arith.constant dense<0.000000e+00> : vector<2x8xf32>
    %164 = vector.multi_reduction <add>, %163, %cst_69 [2] : vector<2x8x8xf32> to vector<2x8xf32>
    %165 = vector.shape_cast %164 : vector<2x8xf32> to vector<2x8x1xf32>
    %166 = tpu.reciprocal %165 {approx = true} : vector<2x8x1xf32> -> vector<2x8x1xf32>
    %167 = vector.broadcast %166 : vector<2x8x1xf32> to vector<2x8x8xf32>
    %168 = arith.mulf %163, %167 : vector<2x8x8xf32>
    "tpu.trace_start"() <{level = 10 : i32, message = "bts,bsd->btd"}> : () -> ()
    %cst_70 = arith.constant dense<0.000000e+00> : vector<2x8x8xf32>
    %169 = tpu.matmul %168, %155, %cst_70 {dimension_numbers = #tpu.dot_dimension_numbers<[2], [1], [1], [2], [0, 0, 0, 1, 1, 2], [0], [0]>} : vector<2x8x8xf32>, vector<2x8x8xf32>, vector<2x8x8xf32> -> vector<2x8x8xf32>
    "tpu.trace_stop"() : () -> ()
    %170 = vector.extract_strided_slice %133 {offsets = [0, 0, 16], sizes = [2, 8, 8], strides = [1, 1, 1]} : vector<2x8x32xf32> to vector<2x8x8xf32>
    %171 = vector.extract_strided_slice %134 {offsets = [0, 0, 16], sizes = [2, 8, 8], strides = [1, 1, 1]} : vector<2x8x32xf32> to vector<2x8x8xf32>
    %172 = vector.extract_strided_slice %135 {offsets = [0, 0, 16], sizes = [2, 8, 8], strides = [1, 1, 1]} : vector<2x8x32xf32> to vector<2x8x8xf32>
    "tpu.trace_start"() <{level = 10 : i32, message = "btd,bsd->bts"}> : () -> ()
    %cst_71 = arith.constant dense<0.000000e+00> : vector<2x8x8xf32>
    %173 = tpu.matmul %170, %171, %cst_71 {dimension_numbers = #tpu.dot_dimension_numbers<[2], [2], [1], [1], [0, 0, 0, 1, 1, 1], [0], [0]>} : vector<2x8x8xf32>, vector<2x8x8xf32>, vector<2x8x8xf32> -> vector<2x8x8xf32>
    "tpu.trace_stop"() : () -> ()
    %cst_72 = arith.constant 0.353553385 : f32
    %174 = vector.broadcast %cst_72 : f32 to vector<2x8x8xf32>
    %175 = arith.mulf %173, %174 : vector<2x8x8xf32>
    %cst_73 = arith.constant dense<0xFF800000> : vector<2x8xf32>
    %176 = vector.multi_reduction <maximumf>, %175, %cst_73 [2] : vector<2x8x8xf32> to vector<2x8xf32>
    %177 = vector.shape_cast %176 : vector<2x8xf32> to vector<2x8x1xf32>
    %178 = vector.broadcast %177 : vector<2x8x1xf32> to vector<2x8x8xf32>
    %179 = arith.subf %175, %178 : vector<2x8x8xf32>
    %180 = math.exp %179 : vector<2x8x8xf32>
    %cst_74 = arith.constant dense<0.000000e+00> : vector<2x8xf32>
    %181 = vector.multi_reduction <add>, %180, %cst_74 [2] : vector<2x8x8xf32> to vector<2x8xf32>
    %182 = vector.shape_cast %181 : vector<2x8xf32> to vector<2x8x1xf32>
    %183 = tpu.reciprocal %182 {approx = true} : vector<2x8x1xf32> -> vector<2x8x1xf32>
    %184 = vector.broadcast %183 : vector<2x8x1xf32> to vector<2x8x8xf32>
    %185 = arith.mulf %180, %184 : vector<2x8x8xf32>
    "tpu.trace_start"() <{level = 10 : i32, message = "bts,bsd->btd"}> : () -> ()
    %cst_75 = arith.constant dense<0.000000e+00> : vector<2x8x8xf32>
    %186 = tpu.matmul %185, %172, %cst_75 {dimension_numbers = #tpu.dot_dimension_numbers<[2], [1], [1], [2], [0, 0, 0, 1, 1, 2], [0], [0]>} : vector<2x8x8xf32>, vector<2x8x8xf32>, vector<2x8x8xf32> -> vector<2x8x8xf32>
    "tpu.trace_stop"() : () -> ()
    %187 = vector.extract_strided_slice %133 {offsets = [0, 0, 24], sizes = [2, 8, 8], strides = [1, 1, 1]} : vector<2x8x32xf32> to vector<2x8x8xf32>
    %188 = vector.extract_strided_slice %134 {offsets = [0, 0, 24], sizes = [2, 8, 8], strides = [1, 1, 1]} : vector<2x8x32xf32> to vector<2x8x8xf32>
    %189 = vector.extract_strided_slice %135 {offsets = [0, 0, 24], sizes = [2, 8, 8], strides = [1, 1, 1]} : vector<2x8x32xf32> to vector<2x8x8xf32>
    "tpu.trace_start"() <{level = 10 : i32, message = "btd,bsd->bts"}> : () -> ()
    %cst_76 = arith.constant dense<0.000000e+00> : vector<2x8x8xf32>
    %190 = tpu.matmul %187, %188, %cst_76 {dimension_numbers = #tpu.dot_dimension_numbers<[2], [2], [1], [1], [0, 0, 0, 1, 1, 1], [0], [0]>} : vector<2x8x8xf32>, vector<2x8x8xf32>, vector<2x8x8xf32> -> vector<2x8x8xf32>
    "tpu.trace_stop"() : () -> ()
    %cst_77 = arith.constant 0.353553385 : f32
    %191 = vector.broadcast %cst_77 : f32 to vector<2x8x8xf32>
    %192 = arith.mulf %190, %191 : vector<2x8x8xf32>
    %cst_78 = arith.constant dense<0xFF800000> : vector<2x8xf32>
    %193 = vector.multi_reduction <maximumf>, %192, %cst_78 [2] : vector<2x8x8xf32> to vector<2x8xf32>
    %194 = vector.shape_cast %193 : vector<2x8xf32> to vector<2x8x1xf32>
    %195 = vector.broadcast %194 : vector<2x8x1xf32> to vector<2x8x8xf32>
    %196 = arith.subf %192, %195 : vector<2x8x8xf32>
    %197 = math.exp %196 : vector<2x8x8xf32>
    %cst_79 = arith.constant dense<0.000000e+00> : vector<2x8xf32>
    %198 = vector.multi_reduction <add>, %197, %cst_79 [2] : vector<2x8x8xf32> to vector<2x8xf32>
    %199 = vector.shape_cast %198 : vector<2x8xf32> to vector<2x8x1xf32>
    %200 = tpu.reciprocal %199 {approx = true} : vector<2x8x1xf32> -> vector<2x8x1xf32>
    %201 = vector.broadcast %200 : vector<2x8x1xf32> to vector<2x8x8xf32>
    %202 = arith.mulf %197, %201 : vector<2x8x8xf32>
    "tpu.trace_start"() <{level = 10 : i32, message = "bts,bsd->btd"}> : () -> ()
    %cst_80 = arith.constant dense<0.000000e+00> : vector<2x8x8xf32>
    %203 = tpu.matmul %202, %189, %cst_80 {dimension_numbers = #tpu.dot_dimension_numbers<[2], [1], [1], [2], [0, 0, 0, 1, 1, 2], [0], [0]>} : vector<2x8x8xf32>, vector<2x8x8xf32>, vector<2x8x8xf32> -> vector<2x8x8xf32>
    "tpu.trace_stop"() : () -> ()
    %204 = tpu.concatenate %152, %169, %186, %203 in 2 : vector<2x8x8xf32>, vector<2x8x8xf32>, vector<2x8x8xf32>, vector<2x8x8xf32> -> vector<2x8x32xf32>
    %205 = vector.shape_cast %204 : vector<2x8x32xf32> to vector<16x32xf32>
    %c0_81 = arith.constant 0 : index
    %c0_82 = arith.constant 0 : index
    %c0_83 = arith.constant 0 : index
    %206 = vector.load %arg10[%c0_81, %c0_82, %c0_83] : memref<2x32x32xf32, #tpu.memory_space<vmem>>, vector<1x32x32xf32>
    %207 = vector.shape_cast %206 : vector<1x32x32xf32> to vector<32x32xf32>
    %cst_84 = arith.constant dense<0.000000e+00> : vector<16x32xf32>
    %208 = tpu.matmul %205, %207, %cst_84 {dimension_numbers = #tpu.dot_dimension_numbers<[1], [0], [0], [1], [0, 0, 1, 1], [], []>} : vector<16x32xf32>, vector<32x32xf32>, vector<16x32xf32> -> vector<16x32xf32>
    %c0_85 = arith.constant 0 : index
    %c0_86 = arith.constant 0 : index
    %c0_87 = arith.constant 0 : index
    %209 = vector.load %arg11[%c0_85, %c0_86, %c0_87] : memref<2x1x32xf32, #tpu.memory_space<vmem>>, vector<1x1x32xf32>
    %210 = vector.shape_cast %209 : vector<1x1x32xf32> to vector<1x32xf32>
    %211 = vector.broadcast %210 : vector<1x32xf32> to vector<16x32xf32>
    %212 = arith.addf %208, %211 : vector<16x32xf32>
    %213 = arith.addf %116, %212 : vector<16x32xf32>
    %c0_88 = arith.constant 0 : index
    %c0_89 = arith.constant 0 : index
    %c0_90 = arith.constant 0 : index
    %214 = vector.load %arg18[%c0_88, %c0_89, %c0_90] : memref<2x1x32xf32, #tpu.memory_space<vmem>>, vector<1x1x32xf32>
    %215 = vector.shape_cast %214 : vector<1x1x32xf32> to vector<1x32xf32>
    %c0_91 = arith.constant 0 : index
    %c0_92 = arith.constant 0 : index
    %c0_93 = arith.constant 0 : index
    %216 = vector.load %arg19[%c0_91, %c0_92, %c0_93] : memref<2x1x32xf32, #tpu.memory_space<vmem>>, vector<1x1x32xf32>
    %217 = vector.shape_cast %216 : vector<1x1x32xf32> to vector<1x32xf32>
    %cst_94 = arith.constant dense<0.000000e+00> : vector<16xf32>
    %218 = vector.multi_reduction <add>, %213, %cst_94 [1] : vector<16x32xf32> to vector<16xf32>
    %219 = vector.shape_cast %218 : vector<16xf32> to vector<16x1xf32>
    %cst_95 = arith.constant 3.200000e+01 : f32
    %220 = vector.broadcast %cst_95 : f32 to vector<16x1xf32>
    %221 = arith.divf %219, %220 : vector<16x1xf32>
    %222 = vector.broadcast %221 : vector<16x1xf32> to vector<16x32xf32>
    %223 = arith.subf %213, %222 : vector<16x32xf32>
    %224 = arith.mulf %223, %223 : vector<16x32xf32>
    %cst_96 = arith.constant dense<0.000000e+00> : vector<16xf32>
    %225 = vector.multi_reduction <add>, %224, %cst_96 [1] : vector<16x32xf32> to vector<16xf32>
    %226 = vector.shape_cast %225 : vector<16xf32> to vector<16x1xf32>
    %cst_97 = arith.constant 3.200000e+01 : f32
    %227 = vector.broadcast %cst_97 : f32 to vector<16x1xf32>
    %228 = arith.divf %226, %227 : vector<16x1xf32>
    %cst_98 = arith.constant 9.99999974E-6 : f32
    %229 = vector.broadcast %cst_98 : f32 to vector<16x1xf32>
    %230 = arith.addf %228, %229 : vector<16x1xf32>
    %231 = math.rsqrt %230 : vector<16x1xf32>
    %232 = vector.broadcast %231 : vector<16x1xf32> to vector<16x32xf32>
    %233 = arith.mulf %223, %232 : vector<16x32xf32>
    %234 = vector.broadcast %215 : vector<1x32xf32> to vector<16x32xf32>
    %235 = arith.mulf %233, %234 : vector<16x32xf32>
    %236 = vector.broadcast %217 : vector<1x32xf32> to vector<16x32xf32>
    %237 = arith.addf %235, %236 : vector<16x32xf32>
    %c0_99 = arith.constant 0 : index
    %c0_100 = arith.constant 0 : index
    %c0_101 = arith.constant 0 : index
    %238 = vector.load %arg12[%c0_99, %c0_100, %c0_101] : memref<2x32x64xf32, #tpu.memory_space<vmem>>, vector<1x32x64xf32>
    %239 = vector.shape_cast %238 : vector<1x32x64xf32> to vector<32x64xf32>
    %cst_102 = arith.constant dense<0.000000e+00> : vector<16x64xf32>
    %240 = tpu.matmul %237, %239, %cst_102 {dimension_numbers = #tpu.dot_dimension_numbers<[1], [0], [0], [1], [0, 0, 1, 1], [], []>} : vector<16x32xf32>, vector<32x64xf32>, vector<16x64xf32> -> vector<16x64xf32>
    %c0_103 = arith.constant 0 : index
    %c0_104 = arith.constant 0 : index
    %c0_105 = arith.constant 0 : index
    %241 = vector.load %arg13[%c0_103, %c0_104, %c0_105] : memref<2x1x64xf32, #tpu.memory_space<vmem>>, vector<1x1x64xf32>
    %242 = vector.shape_cast %241 : vector<1x1x64xf32> to vector<1x64xf32>
    %243 = vector.broadcast %242 : vector<1x64xf32> to vector<16x64xf32>
    %244 = arith.addf %240, %243 : vector<16x64xf32>
    %cst_106 = arith.constant 0.000000e+00 : f32
    %245 = vector.broadcast %cst_106 : f32 to vector<16x64xf32>
    %246 = arith.maximumf %244, %245 : vector<16x64xf32>
    %c0_107 = arith.constant 0 : index
    %c0_108 = arith.constant 0 : index
    %c0_109 = arith.constant 0 : index
    %247 = vector.load %arg14[%c0_107, %c0_108, %c0_109] : memref<2x64x32xf32, #tpu.memory_space<vmem>>, vector<1x64x32xf32>
    %248 = vector.shape_cast %247 : vector<1x64x32xf32> to vector<64x32xf32>
    %cst_110 = arith.constant dense<0.000000e+00> : vector<16x32xf32>
    %249 = tpu.matmul %246, %248, %cst_110 {dimension_numbers = #tpu.dot_dimension_numbers<[1], [0], [0], [1], [0, 0, 1, 1], [], []>} : vector<16x64xf32>, vector<64x32xf32>, vector<16x32xf32> -> vector<16x32xf32>
    %c0_111 = arith.constant 0 : index
    %c0_112 = arith.constant 0 : index
    %c0_113 = arith.constant 0 : index
    %250 = vector.load %arg15[%c0_111, %c0_112, %c0_113] : memref<2x1x32xf32, #tpu.memory_space<vmem>>, vector<1x1x32xf32>
    %251 = vector.shape_cast %250 : vector<1x1x32xf32> to vector<1x32xf32>
    %252 = vector.broadcast %251 : vector<1x32xf32> to vector<16x32xf32>
    %253 = arith.addf %249, %252 : vector<16x32xf32>
    %254 = arith.addf %237, %253 : vector<16x32xf32>
    %c0_114 = arith.constant 0 : index
    %c0_115 = arith.constant 0 : index
    %c0_116 = arith.constant 0 : index
    %255 = vector.load %arg20[%c0_114, %c0_115, %c0_116] : memref<2x1x32xf32, #tpu.memory_space<vmem>>, vector<1x1x32xf32>
    %256 = vector.shape_cast %255 : vector<1x1x32xf32> to vector<1x32xf32>
    %c0_117 = arith.constant 0 : index
    %c0_118 = arith.constant 0 : index
    %c0_119 = arith.constant 0 : index
    %257 = vector.load %arg21[%c0_117, %c0_118, %c0_119] : memref<2x1x32xf32, #tpu.memory_space<vmem>>, vector<1x1x32xf32>
    %258 = vector.shape_cast %257 : vector<1x1x32xf32> to vector<1x32xf32>
    %cst_120 = arith.constant dense<0.000000e+00> : vector<16xf32>
    %259 = vector.multi_reduction <add>, %254, %cst_120 [1] : vector<16x32xf32> to vector<16xf32>
    %260 = vector.shape_cast %259 : vector<16xf32> to vector<16x1xf32>
    %cst_121 = arith.constant 3.200000e+01 : f32
    %261 = vector.broadcast %cst_121 : f32 to vector<16x1xf32>
    %262 = arith.divf %260, %261 : vector<16x1xf32>
    %263 = vector.broadcast %262 : vector<16x1xf32> to vector<16x32xf32>
    %264 = arith.subf %254, %263 : vector<16x32xf32>
    %265 = arith.mulf %264, %264 : vector<16x32xf32>
    %cst_122 = arith.constant dense<0.000000e+00> : vector<16xf32>
    %266 = vector.multi_reduction <add>, %265, %cst_122 [1] : vector<16x32xf32> to vector<16xf32>
    %267 = vector.shape_cast %266 : vector<16xf32> to vector<16x1xf32>
    %cst_123 = arith.constant 3.200000e+01 : f32
    %268 = vector.broadcast %cst_123 : f32 to vector<16x1xf32>
    %269 = arith.divf %267, %268 : vector<16x1xf32>
    %cst_124 = arith.constant 9.99999974E-6 : f32
    %270 = vector.broadcast %cst_124 : f32 to vector<16x1xf32>
    %271 = arith.addf %269, %270 : vector<16x1xf32>
    %272 = math.rsqrt %271 : vector<16x1xf32>
    %273 = vector.broadcast %272 : vector<16x1xf32> to vector<16x32xf32>
    %274 = arith.mulf %264, %273 : vector<16x32xf32>
    %275 = vector.broadcast %256 : vector<1x32xf32> to vector<16x32xf32>
    %276 = arith.mulf %274, %275 : vector<16x32xf32>
    %277 = vector.broadcast %258 : vector<1x32xf32> to vector<16x32xf32>
    %278 = arith.addf %276, %277 : vector<16x32xf32>
    %c1 = arith.constant 1 : index
    %c0_125 = arith.constant 0 : index
    %c0_126 = arith.constant 0 : index
    %279 = vector.load %arg2[%c1, %c0_125, %c0_126] : memref<2x32x96xf32, #tpu.memory_space<vmem>>, vector<1x32x96xf32>
    %280 = vector.shape_cast %279 : vector<1x32x96xf32> to vector<32x96xf32>
    %cst_127 = arith.constant dense<0.000000e+00> : vector<16x96xf32>
    %281 = tpu.matmul %278, %280, %cst_127 {dimension_numbers = #tpu.dot_dimension_numbers<[1], [0], [0], [1], [0, 0, 1, 1], [], []>} : vector<16x32xf32>, vector<32x96xf32>, vector<16x96xf32> -> vector<16x96xf32>
    %c1_128 = arith.constant 1 : index
    %c0_129 = arith.constant 0 : index
    %c0_130 = arith.constant 0 : index
    %282 = vector.load %arg3[%c1_128, %c0_129, %c0_130] : memref<2x1x96xf32, #tpu.memory_space<vmem>>, vector<1x1x96xf32>
    %283 = vector.shape_cast %282 : vector<1x1x96xf32> to vector<1x96xf32>
    %284 = vector.broadcast %283 : vector<1x96xf32> to vector<16x96xf32>
    %285 = arith.addf %281, %284 : vector<16x96xf32>
    %286 = vector.extract_strided_slice %285 {offsets = [0, 0], sizes = [16, 32], strides = [1, 1]} : vector<16x96xf32> to vector<16x32xf32>
    %287 = vector.extract_strided_slice %285 {offsets = [0, 32], sizes = [16, 32], strides = [1, 1]} : vector<16x96xf32> to vector<16x32xf32>
    %288 = vector.extract_strided_slice %285 {offsets = [0, 64], sizes = [16, 32], strides = [1, 1]} : vector<16x96xf32> to vector<16x32xf32>
    %289 = vector.shape_cast %286 : vector<16x32xf32> to vector<2x8x32xf32>
    %290 = vector.shape_cast %287 : vector<16x32xf32> to vector<2x8x32xf32>
    %291 = vector.shape_cast %288 : vector<16x32xf32> to vector<2x8x32xf32>
    %292 = vector.extract_strided_slice %289 {offsets = [0, 0, 0], sizes = [2, 8, 8], strides = [1, 1, 1]} : vector<2x8x32xf32> to vector<2x8x8xf32>
    %293 = vector.extract_strided_slice %290 {offsets = [0, 0, 0], sizes = [2, 8, 8], strides = [1, 1, 1]} : vector<2x8x32xf32> to vector<2x8x8xf32>
    %294 = vector.extract_strided_slice %291 {offsets = [0, 0, 0], sizes = [2, 8, 8], strides = [1, 1, 1]} : vector<2x8x32xf32> to vector<2x8x8xf32>
    "tpu.trace_start"() <{level = 10 : i32, message = "btd,bsd->bts"}> : () -> ()
    %cst_131 = arith.constant dense<0.000000e+00> : vector<2x8x8xf32>
    %295 = tpu.matmul %292, %293, %cst_131 {dimension_numbers = #tpu.dot_dimension_numbers<[2], [2], [1], [1], [0, 0, 0, 1, 1, 1], [0], [0]>} : vector<2x8x8xf32>, vector<2x8x8xf32>, vector<2x8x8xf32> -> vector<2x8x8xf32>
    "tpu.trace_stop"() : () -> ()
    %cst_132 = arith.constant 0.353553385 : f32
    %296 = vector.broadcast %cst_132 : f32 to vector<2x8x8xf32>
    %297 = arith.mulf %295, %296 : vector<2x8x8xf32>
    %cst_133 = arith.constant dense<0xFF800000> : vector<2x8xf32>
    %298 = vector.multi_reduction <maximumf>, %297, %cst_133 [2] : vector<2x8x8xf32> to vector<2x8xf32>
    %299 = vector.shape_cast %298 : vector<2x8xf32> to vector<2x8x1xf32>
    %300 = vector.broadcast %299 : vector<2x8x1xf32> to vector<2x8x8xf32>
    %301 = arith.subf %297, %300 : vector<2x8x8xf32>
    %302 = math.exp %301 : vector<2x8x8xf32>
    %cst_134 = arith.constant dense<0.000000e+00> : vector<2x8xf32>
    %303 = vector.multi_reduction <add>, %302, %cst_134 [2] : vector<2x8x8xf32> to vector<2x8xf32>
    %304 = vector.shape_cast %303 : vector<2x8xf32> to vector<2x8x1xf32>
    %305 = tpu.reciprocal %304 {approx = true} : vector<2x8x1xf32> -> vector<2x8x1xf32>
    %306 = vector.broadcast %305 : vector<2x8x1xf32> to vector<2x8x8xf32>
    %307 = arith.mulf %302, %306 : vector<2x8x8xf32>
    "tpu.trace_start"() <{level = 10 : i32, message = "bts,bsd->btd"}> : () -> ()
    %cst_135 = arith.constant dense<0.000000e+00> : vector<2x8x8xf32>
    %308 = tpu.matmul %307, %294, %cst_135 {dimension_numbers = #tpu.dot_dimension_numbers<[2], [1], [1], [2], [0, 0, 0, 1, 1, 2], [0], [0]>} : vector<2x8x8xf32>, vector<2x8x8xf32>, vector<2x8x8xf32> -> vector<2x8x8xf32>
    "tpu.trace_stop"() : () -> ()
    %309 = vector.extract_strided_slice %289 {offsets = [0, 0, 8], sizes = [2, 8, 8], strides = [1, 1, 1]} : vector<2x8x32xf32> to vector<2x8x8xf32>
    %310 = vector.extract_strided_slice %290 {offsets = [0, 0, 8], sizes = [2, 8, 8], strides = [1, 1, 1]} : vector<2x8x32xf32> to vector<2x8x8xf32>
    %311 = vector.extract_strided_slice %291 {offsets = [0, 0, 8], sizes = [2, 8, 8], strides = [1, 1, 1]} : vector<2x8x32xf32> to vector<2x8x8xf32>
    "tpu.trace_start"() <{level = 10 : i32, message = "btd,bsd->bts"}> : () -> ()
    %cst_136 = arith.constant dense<0.000000e+00> : vector<2x8x8xf32>
    %312 = tpu.matmul %309, %310, %cst_136 {dimension_numbers = #tpu.dot_dimension_numbers<[2], [2], [1], [1], [0, 0, 0, 1, 1, 1], [0], [0]>} : vector<2x8x8xf32>, vector<2x8x8xf32>, vector<2x8x8xf32> -> vector<2x8x8xf32>
    "tpu.trace_stop"() : () -> ()
    %cst_137 = arith.constant 0.353553385 : f32
    %313 = vector.broadcast %cst_137 : f32 to vector<2x8x8xf32>
    %314 = arith.mulf %312, %313 : vector<2x8x8xf32>
    %cst_138 = arith.constant dense<0xFF800000> : vector<2x8xf32>
    %315 = vector.multi_reduction <maximumf>, %314, %cst_138 [2] : vector<2x8x8xf32> to vector<2x8xf32>
    %316 = vector.shape_cast %315 : vector<2x8xf32> to vector<2x8x1xf32>
    %317 = vector.broadcast %316 : vector<2x8x1xf32> to vector<2x8x8xf32>
    %318 = arith.subf %314, %317 : vector<2x8x8xf32>
    %319 = math.exp %318 : vector<2x8x8xf32>
    %cst_139 = arith.constant dense<0.000000e+00> : vector<2x8xf32>
    %320 = vector.multi_reduction <add>, %319, %cst_139 [2] : vector<2x8x8xf32> to vector<2x8xf32>
    %321 = vector.shape_cast %320 : vector<2x8xf32> to vector<2x8x1xf32>
    %322 = tpu.reciprocal %321 {approx = true} : vector<2x8x1xf32> -> vector<2x8x1xf32>
    %323 = vector.broadcast %322 : vector<2x8x1xf32> to vector<2x8x8xf32>
    %324 = arith.mulf %319, %323 : vector<2x8x8xf32>
    "tpu.trace_start"() <{level = 10 : i32, message = "bts,bsd->btd"}> : () -> ()
    %cst_140 = arith.constant dense<0.000000e+00> : vector<2x8x8xf32>
    %325 = tpu.matmul %324, %311, %cst_140 {dimension_numbers = #tpu.dot_dimension_numbers<[2], [1], [1], [2], [0, 0, 0, 1, 1, 2], [0], [0]>} : vector<2x8x8xf32>, vector<2x8x8xf32>, vector<2x8x8xf32> -> vector<2x8x8xf32>
    "tpu.trace_stop"() : () -> ()
    %326 = vector.extract_strided_slice %289 {offsets = [0, 0, 16], sizes = [2, 8, 8], strides = [1, 1, 1]} : vector<2x8x32xf32> to vector<2x8x8xf32>
    %327 = vector.extract_strided_slice %290 {offsets = [0, 0, 16], sizes = [2, 8, 8], strides = [1, 1, 1]} : vector<2x8x32xf32> to vector<2x8x8xf32>
    %328 = vector.extract_strided_slice %291 {offsets = [0, 0, 16], sizes = [2, 8, 8], strides = [1, 1, 1]} : vector<2x8x32xf32> to vector<2x8x8xf32>
    "tpu.trace_start"() <{level = 10 : i32, message = "btd,bsd->bts"}> : () -> ()
    %cst_141 = arith.constant dense<0.000000e+00> : vector<2x8x8xf32>
    %329 = tpu.matmul %326, %327, %cst_141 {dimension_numbers = #tpu.dot_dimension_numbers<[2], [2], [1], [1], [0, 0, 0, 1, 1, 1], [0], [0]>} : vector<2x8x8xf32>, vector<2x8x8xf32>, vector<2x8x8xf32> -> vector<2x8x8xf32>
    "tpu.trace_stop"() : () -> ()
    %cst_142 = arith.constant 0.353553385 : f32
    %330 = vector.broadcast %cst_142 : f32 to vector<2x8x8xf32>
    %331 = arith.mulf %329, %330 : vector<2x8x8xf32>
    %cst_143 = arith.constant dense<0xFF800000> : vector<2x8xf32>
    %332 = vector.multi_reduction <maximumf>, %331, %cst_143 [2] : vector<2x8x8xf32> to vector<2x8xf32>
    %333 = vector.shape_cast %332 : vector<2x8xf32> to vector<2x8x1xf32>
    %334 = vector.broadcast %333 : vector<2x8x1xf32> to vector<2x8x8xf32>
    %335 = arith.subf %331, %334 : vector<2x8x8xf32>
    %336 = math.exp %335 : vector<2x8x8xf32>
    %cst_144 = arith.constant dense<0.000000e+00> : vector<2x8xf32>
    %337 = vector.multi_reduction <add>, %336, %cst_144 [2] : vector<2x8x8xf32> to vector<2x8xf32>
    %338 = vector.shape_cast %337 : vector<2x8xf32> to vector<2x8x1xf32>
    %339 = tpu.reciprocal %338 {approx = true} : vector<2x8x1xf32> -> vector<2x8x1xf32>
    %340 = vector.broadcast %339 : vector<2x8x1xf32> to vector<2x8x8xf32>
    %341 = arith.mulf %336, %340 : vector<2x8x8xf32>
    "tpu.trace_start"() <{level = 10 : i32, message = "bts,bsd->btd"}> : () -> ()
    %cst_145 = arith.constant dense<0.000000e+00> : vector<2x8x8xf32>
    %342 = tpu.matmul %341, %328, %cst_145 {dimension_numbers = #tpu.dot_dimension_numbers<[2], [1], [1], [2], [0, 0, 0, 1, 1, 2], [0], [0]>} : vector<2x8x8xf32>, vector<2x8x8xf32>, vector<2x8x8xf32> -> vector<2x8x8xf32>
    "tpu.trace_stop"() : () -> ()
    %343 = vector.extract_strided_slice %289 {offsets = [0, 0, 24], sizes = [2, 8, 8], strides = [1, 1, 1]} : vector<2x8x32xf32> to vector<2x8x8xf32>
    %344 = vector.extract_strided_slice %290 {offsets = [0, 0, 24], sizes = [2, 8, 8], strides = [1, 1, 1]} : vector<2x8x32xf32> to vector<2x8x8xf32>
    %345 = vector.extract_strided_slice %291 {offsets = [0, 0, 24], sizes = [2, 8, 8], strides = [1, 1, 1]} : vector<2x8x32xf32> to vector<2x8x8xf32>
    "tpu.trace_start"() <{level = 10 : i32, message = "btd,bsd->bts"}> : () -> ()
    %cst_146 = arith.constant dense<0.000000e+00> : vector<2x8x8xf32>
    %346 = tpu.matmul %343, %344, %cst_146 {dimension_numbers = #tpu.dot_dimension_numbers<[2], [2], [1], [1], [0, 0, 0, 1, 1, 1], [0], [0]>} : vector<2x8x8xf32>, vector<2x8x8xf32>, vector<2x8x8xf32> -> vector<2x8x8xf32>
    "tpu.trace_stop"() : () -> ()
    %cst_147 = arith.constant 0.353553385 : f32
    %347 = vector.broadcast %cst_147 : f32 to vector<2x8x8xf32>
    %348 = arith.mulf %346, %347 : vector<2x8x8xf32>
    %cst_148 = arith.constant dense<0xFF800000> : vector<2x8xf32>
    %349 = vector.multi_reduction <maximumf>, %348, %cst_148 [2] : vector<2x8x8xf32> to vector<2x8xf32>
    %350 = vector.shape_cast %349 : vector<2x8xf32> to vector<2x8x1xf32>
    %351 = vector.broadcast %350 : vector<2x8x1xf32> to vector<2x8x8xf32>
    %352 = arith.subf %348, %351 : vector<2x8x8xf32>
    %353 = math.exp %352 : vector<2x8x8xf32>
    %cst_149 = arith.constant dense<0.000000e+00> : vector<2x8xf32>
    %354 = vector.multi_reduction <add>, %353, %cst_149 [2] : vector<2x8x8xf32> to vector<2x8xf32>
    %355 = vector.shape_cast %354 : vector<2x8xf32> to vector<2x8x1xf32>
    %356 = tpu.reciprocal %355 {approx = true} : vector<2x8x1xf32> -> vector<2x8x1xf32>
    %357 = vector.broadcast %356 : vector<2x8x1xf32> to vector<2x8x8xf32>
    %358 = arith.mulf %353, %357 : vector<2x8x8xf32>
    "tpu.trace_start"() <{level = 10 : i32, message = "bts,bsd->btd"}> : () -> ()
    %cst_150 = arith.constant dense<0.000000e+00> : vector<2x8x8xf32>
    %359 = tpu.matmul %358, %345, %cst_150 {dimension_numbers = #tpu.dot_dimension_numbers<[2], [1], [1], [2], [0, 0, 0, 1, 1, 2], [0], [0]>} : vector<2x8x8xf32>, vector<2x8x8xf32>, vector<2x8x8xf32> -> vector<2x8x8xf32>
    "tpu.trace_stop"() : () -> ()
    %360 = tpu.concatenate %308, %325, %342, %359 in 2 : vector<2x8x8xf32>, vector<2x8x8xf32>, vector<2x8x8xf32>, vector<2x8x8xf32> -> vector<2x8x32xf32>
    %361 = vector.shape_cast %360 : vector<2x8x32xf32> to vector<16x32xf32>
    %c1_151 = arith.constant 1 : index
    %c0_152 = arith.constant 0 : index
    %c0_153 = arith.constant 0 : index
    %362 = vector.load %arg4[%c1_151, %c0_152, %c0_153] : memref<2x32x32xf32, #tpu.memory_space<vmem>>, vector<1x32x32xf32>
    %363 = vector.shape_cast %362 : vector<1x32x32xf32> to vector<32x32xf32>
    %cst_154 = arith.constant dense<0.000000e+00> : vector<16x32xf32>
    %364 = tpu.matmul %361, %363, %cst_154 {dimension_numbers = #tpu.dot_dimension_numbers<[1], [0], [0], [1], [0, 0, 1, 1], [], []>} : vector<16x32xf32>, vector<32x32xf32>, vector<16x32xf32> -> vector<16x32xf32>
    %c1_155 = arith.constant 1 : index
    %c0_156 = arith.constant 0 : index
    %c0_157 = arith.constant 0 : index
    %365 = vector.load %arg5[%c1_155, %c0_156, %c0_157] : memref<2x1x32xf32, #tpu.memory_space<vmem>>, vector<1x1x32xf32>
    %366 = vector.shape_cast %365 : vector<1x1x32xf32> to vector<1x32xf32>
    %367 = vector.broadcast %366 : vector<1x32xf32> to vector<16x32xf32>
    %368 = arith.addf %364, %367 : vector<16x32xf32>
    %369 = arith.addf %278, %368 : vector<16x32xf32>
    %c1_158 = arith.constant 1 : index
    %c0_159 = arith.constant 0 : index
    %c0_160 = arith.constant 0 : index
    %370 = vector.load %arg16[%c1_158, %c0_159, %c0_160] : memref<2x1x32xf32, #tpu.memory_space<vmem>>, vector<1x1x32xf32>
    %371 = vector.shape_cast %370 : vector<1x1x32xf32> to vector<1x32xf32>
    %c1_161 = arith.constant 1 : index
    %c0_162 = arith.constant 0 : index
    %c0_163 = arith.constant 0 : index
    %372 = vector.load %arg17[%c1_161, %c0_162, %c0_163] : memref<2x1x32xf32, #tpu.memory_space<vmem>>, vector<1x1x32xf32>
    %373 = vector.shape_cast %372 : vector<1x1x32xf32> to vector<1x32xf32>
    %cst_164 = arith.constant dense<0.000000e+00> : vector<16xf32>
    %374 = vector.multi_reduction <add>, %369, %cst_164 [1] : vector<16x32xf32> to vector<16xf32>
    %375 = vector.shape_cast %374 : vector<16xf32> to vector<16x1xf32>
    %cst_165 = arith.constant 3.200000e+01 : f32
    %376 = vector.broadcast %cst_165 : f32 to vector<16x1xf32>
    %377 = arith.divf %375, %376 : vector<16x1xf32>
    %378 = vector.broadcast %377 : vector<16x1xf32> to vector<16x32xf32>
    %379 = arith.subf %369, %378 : vector<16x32xf32>
    %380 = arith.mulf %379, %379 : vector<16x32xf32>
    %cst_166 = arith.constant dense<0.000000e+00> : vector<16xf32>
    %381 = vector.multi_reduction <add>, %380, %cst_166 [1] : vector<16x32xf32> to vector<16xf32>
    %382 = vector.shape_cast %381 : vector<16xf32> to vector<16x1xf32>
    %cst_167 = arith.constant 3.200000e+01 : f32
    %383 = vector.broadcast %cst_167 : f32 to vector<16x1xf32>
    %384 = arith.divf %382, %383 : vector<16x1xf32>
    %cst_168 = arith.constant 9.99999974E-6 : f32
    %385 = vector.broadcast %cst_168 : f32 to vector<16x1xf32>
    %386 = arith.addf %384, %385 : vector<16x1xf32>
    %387 = math.rsqrt %386 : vector<16x1xf32>
    %388 = vector.broadcast %387 : vector<16x1xf32> to vector<16x32xf32>
    %389 = arith.mulf %379, %388 : vector<16x32xf32>
    %390 = vector.broadcast %371 : vector<1x32xf32> to vector<16x32xf32>
    %391 = arith.mulf %389, %390 : vector<16x32xf32>
    %392 = vector.broadcast %373 : vector<1x32xf32> to vector<16x32xf32>
    %393 = arith.addf %391, %392 : vector<16x32xf32>
    %c1_169 = arith.constant 1 : index
    %c0_170 = arith.constant 0 : index
    %c0_171 = arith.constant 0 : index
    %394 = vector.load %arg6[%c1_169, %c0_170, %c0_171] : memref<2x32x32xf32, #tpu.memory_space<vmem>>, vector<1x32x32xf32>
    %395 = vector.shape_cast %394 : vector<1x32x32xf32> to vector<32x32xf32>
    %cst_172 = arith.constant dense<0.000000e+00> : vector<16x32xf32>
    %396 = tpu.matmul %393, %395, %cst_172 {dimension_numbers = #tpu.dot_dimension_numbers<[1], [0], [0], [1], [0, 0, 1, 1], [], []>} : vector<16x32xf32>, vector<32x32xf32>, vector<16x32xf32> -> vector<16x32xf32>
    %c1_173 = arith.constant 1 : index
    %c0_174 = arith.constant 0 : index
    %c0_175 = arith.constant 0 : index
    %397 = vector.load %arg7[%c1_173, %c0_174, %c0_175] : memref<2x1x32xf32, #tpu.memory_space<vmem>>, vector<1x1x32xf32>
    %398 = vector.shape_cast %397 : vector<1x1x32xf32> to vector<1x32xf32>
    %399 = vector.broadcast %398 : vector<1x32xf32> to vector<16x32xf32>
    %400 = arith.addf %396, %399 : vector<16x32xf32>
    %c1_176 = arith.constant 1 : index
    %c0_177 = arith.constant 0 : index
    %c0_178 = arith.constant 0 : index
    %401 = vector.load %arg8[%c1_176, %c0_177, %c0_178] : memref<2x32x64xf32, #tpu.memory_space<vmem>>, vector<1x32x64xf32>
    %402 = vector.shape_cast %401 : vector<1x32x64xf32> to vector<32x64xf32>
    %cst_179 = arith.constant dense<0.000000e+00> : vector<16x64xf32>
    %403 = tpu.matmul %1, %402, %cst_179 {dimension_numbers = #tpu.dot_dimension_numbers<[1], [0], [0], [1], [0, 0, 1, 1], [], []>} : vector<16x32xf32>, vector<32x64xf32>, vector<16x64xf32> -> vector<16x64xf32>
    %c1_180 = arith.constant 1 : index
    %c0_181 = arith.constant 0 : index
    %c0_182 = arith.constant 0 : index
    %404 = vector.load %arg9[%c1_180, %c0_181, %c0_182] : memref<2x1x64xf32, #tpu.memory_space<vmem>>, vector<1x1x64xf32>
    %405 = vector.shape_cast %404 : vector<1x1x64xf32> to vector<1x64xf32>
    %406 = vector.broadcast %405 : vector<1x64xf32> to vector<16x64xf32>
    %407 = arith.addf %403, %406 : vector<16x64xf32>
    %408 = vector.extract_strided_slice %407 {offsets = [0, 0], sizes = [16, 32], strides = [1, 1]} : vector<16x64xf32> to vector<16x32xf32>
    %409 = vector.extract_strided_slice %407 {offsets = [0, 32], sizes = [16, 32], strides = [1, 1]} : vector<16x64xf32> to vector<16x32xf32>
    %410 = vector.shape_cast %400 : vector<16x32xf32> to vector<2x8x32xf32>
    %411 = vector.shape_cast %408 : vector<16x32xf32> to vector<2x8x32xf32>
    %412 = vector.shape_cast %409 : vector<16x32xf32> to vector<2x8x32xf32>
    %413 = vector.extract_strided_slice %410 {offsets = [0, 0, 0], sizes = [2, 8, 8], strides = [1, 1, 1]} : vector<2x8x32xf32> to vector<2x8x8xf32>
    %414 = vector.extract_strided_slice %411 {offsets = [0, 0, 0], sizes = [2, 8, 8], strides = [1, 1, 1]} : vector<2x8x32xf32> to vector<2x8x8xf32>
    %415 = vector.extract_strided_slice %412 {offsets = [0, 0, 0], sizes = [2, 8, 8], strides = [1, 1, 1]} : vector<2x8x32xf32> to vector<2x8x8xf32>
    "tpu.trace_start"() <{level = 10 : i32, message = "btd,bsd->bts"}> : () -> ()
    %cst_183 = arith.constant dense<0.000000e+00> : vector<2x8x8xf32>
    %416 = tpu.matmul %413, %414, %cst_183 {dimension_numbers = #tpu.dot_dimension_numbers<[2], [2], [1], [1], [0, 0, 0, 1, 1, 1], [0], [0]>} : vector<2x8x8xf32>, vector<2x8x8xf32>, vector<2x8x8xf32> -> vector<2x8x8xf32>
    "tpu.trace_stop"() : () -> ()
    %cst_184 = arith.constant 0.353553385 : f32
    %417 = vector.broadcast %cst_184 : f32 to vector<2x8x8xf32>
    %418 = arith.mulf %416, %417 : vector<2x8x8xf32>
    %cst_185 = arith.constant dense<0xFF800000> : vector<2x8xf32>
    %419 = vector.multi_reduction <maximumf>, %418, %cst_185 [2] : vector<2x8x8xf32> to vector<2x8xf32>
    %420 = vector.shape_cast %419 : vector<2x8xf32> to vector<2x8x1xf32>
    %421 = vector.broadcast %420 : vector<2x8x1xf32> to vector<2x8x8xf32>
    %422 = arith.subf %418, %421 : vector<2x8x8xf32>
    %423 = math.exp %422 : vector<2x8x8xf32>
    %cst_186 = arith.constant dense<0.000000e+00> : vector<2x8xf32>
    %424 = vector.multi_reduction <add>, %423, %cst_186 [2] : vector<2x8x8xf32> to vector<2x8xf32>
    %425 = vector.shape_cast %424 : vector<2x8xf32> to vector<2x8x1xf32>
    %426 = tpu.reciprocal %425 {approx = true} : vector<2x8x1xf32> -> vector<2x8x1xf32>
    %427 = vector.broadcast %426 : vector<2x8x1xf32> to vector<2x8x8xf32>
    %428 = arith.mulf %423, %427 : vector<2x8x8xf32>
    "tpu.trace_start"() <{level = 10 : i32, message = "bts,bsd->btd"}> : () -> ()
    %cst_187 = arith.constant dense<0.000000e+00> : vector<2x8x8xf32>
    %429 = tpu.matmul %428, %415, %cst_187 {dimension_numbers = #tpu.dot_dimension_numbers<[2], [1], [1], [2], [0, 0, 0, 1, 1, 2], [0], [0]>} : vector<2x8x8xf32>, vector<2x8x8xf32>, vector<2x8x8xf32> -> vector<2x8x8xf32>
    "tpu.trace_stop"() : () -> ()
    %430 = vector.extract_strided_slice %410 {offsets = [0, 0, 8], sizes = [2, 8, 8], strides = [1, 1, 1]} : vector<2x8x32xf32> to vector<2x8x8xf32>
    %431 = vector.extract_strided_slice %411 {offsets = [0, 0, 8], sizes = [2, 8, 8], strides = [1, 1, 1]} : vector<2x8x32xf32> to vector<2x8x8xf32>
    %432 = vector.extract_strided_slice %412 {offsets = [0, 0, 8], sizes = [2, 8, 8], strides = [1, 1, 1]} : vector<2x8x32xf32> to vector<2x8x8xf32>
    "tpu.trace_start"() <{level = 10 : i32, message = "btd,bsd->bts"}> : () -> ()
    %cst_188 = arith.constant dense<0.000000e+00> : vector<2x8x8xf32>
    %433 = tpu.matmul %430, %431, %cst_188 {dimension_numbers = #tpu.dot_dimension_numbers<[2], [2], [1], [1], [0, 0, 0, 1, 1, 1], [0], [0]>} : vector<2x8x8xf32>, vector<2x8x8xf32>, vector<2x8x8xf32> -> vector<2x8x8xf32>
    "tpu.trace_stop"() : () -> ()
    %cst_189 = arith.constant 0.353553385 : f32
    %434 = vector.broadcast %cst_189 : f32 to vector<2x8x8xf32>
    %435 = arith.mulf %433, %434 : vector<2x8x8xf32>
    %cst_190 = arith.constant dense<0xFF800000> : vector<2x8xf32>
    %436 = vector.multi_reduction <maximumf>, %435, %cst_190 [2] : vector<2x8x8xf32> to vector<2x8xf32>
    %437 = vector.shape_cast %436 : vector<2x8xf32> to vector<2x8x1xf32>
    %438 = vector.broadcast %437 : vector<2x8x1xf32> to vector<2x8x8xf32>
    %439 = arith.subf %435, %438 : vector<2x8x8xf32>
    %440 = math.exp %439 : vector<2x8x8xf32>
    %cst_191 = arith.constant dense<0.000000e+00> : vector<2x8xf32>
    %441 = vector.multi_reduction <add>, %440, %cst_191 [2] : vector<2x8x8xf32> to vector<2x8xf32>
    %442 = vector.shape_cast %441 : vector<2x8xf32> to vector<2x8x1xf32>
    %443 = tpu.reciprocal %442 {approx = true} : vector<2x8x1xf32> -> vector<2x8x1xf32>
    %444 = vector.broadcast %443 : vector<2x8x1xf32> to vector<2x8x8xf32>
    %445 = arith.mulf %440, %444 : vector<2x8x8xf32>
    "tpu.trace_start"() <{level = 10 : i32, message = "bts,bsd->btd"}> : () -> ()
    %cst_192 = arith.constant dense<0.000000e+00> : vector<2x8x8xf32>
    %446 = tpu.matmul %445, %432, %cst_192 {dimension_numbers = #tpu.dot_dimension_numbers<[2], [1], [1], [2], [0, 0, 0, 1, 1, 2], [0], [0]>} : vector<2x8x8xf32>, vector<2x8x8xf32>, vector<2x8x8xf32> -> vector<2x8x8xf32>
    "tpu.trace_stop"() : () -> ()
    %447 = vector.extract_strided_slice %410 {offsets = [0, 0, 16], sizes = [2, 8, 8], strides = [1, 1, 1]} : vector<2x8x32xf32> to vector<2x8x8xf32>
    %448 = vector.extract_strided_slice %411 {offsets = [0, 0, 16], sizes = [2, 8, 8], strides = [1, 1, 1]} : vector<2x8x32xf32> to vector<2x8x8xf32>
    %449 = vector.extract_strided_slice %412 {offsets = [0, 0, 16], sizes = [2, 8, 8], strides = [1, 1, 1]} : vector<2x8x32xf32> to vector<2x8x8xf32>
    "tpu.trace_start"() <{level = 10 : i32, message = "btd,bsd->bts"}> : () -> ()
    %cst_193 = arith.constant dense<0.000000e+00> : vector<2x8x8xf32>
    %450 = tpu.matmul %447, %448, %cst_193 {dimension_numbers = #tpu.dot_dimension_numbers<[2], [2], [1], [1], [0, 0, 0, 1, 1, 1], [0], [0]>} : vector<2x8x8xf32>, vector<2x8x8xf32>, vector<2x8x8xf32> -> vector<2x8x8xf32>
    "tpu.trace_stop"() : () -> ()
    %cst_194 = arith.constant 0.353553385 : f32
    %451 = vector.broadcast %cst_194 : f32 to vector<2x8x8xf32>
    %452 = arith.mulf %450, %451 : vector<2x8x8xf32>
    %cst_195 = arith.constant dense<0xFF800000> : vector<2x8xf32>
    %453 = vector.multi_reduction <maximumf>, %452, %cst_195 [2] : vector<2x8x8xf32> to vector<2x8xf32>
    %454 = vector.shape_cast %453 : vector<2x8xf32> to vector<2x8x1xf32>
    %455 = vector.broadcast %454 : vector<2x8x1xf32> to vector<2x8x8xf32>
    %456 = arith.subf %452, %455 : vector<2x8x8xf32>
    %457 = math.exp %456 : vector<2x8x8xf32>
    %cst_196 = arith.constant dense<0.000000e+00> : vector<2x8xf32>
    %458 = vector.multi_reduction <add>, %457, %cst_196 [2] : vector<2x8x8xf32> to vector<2x8xf32>
    %459 = vector.shape_cast %458 : vector<2x8xf32> to vector<2x8x1xf32>
    %460 = tpu.reciprocal %459 {approx = true} : vector<2x8x1xf32> -> vector<2x8x1xf32>
    %461 = vector.broadcast %460 : vector<2x8x1xf32> to vector<2x8x8xf32>
    %462 = arith.mulf %457, %461 : vector<2x8x8xf32>
    "tpu.trace_start"() <{level = 10 : i32, message = "bts,bsd->btd"}> : () -> ()
    %cst_197 = arith.constant dense<0.000000e+00> : vector<2x8x8xf32>
    %463 = tpu.matmul %462, %449, %cst_197 {dimension_numbers = #tpu.dot_dimension_numbers<[2], [1], [1], [2], [0, 0, 0, 1, 1, 2], [0], [0]>} : vector<2x8x8xf32>, vector<2x8x8xf32>, vector<2x8x8xf32> -> vector<2x8x8xf32>
    "tpu.trace_stop"() : () -> ()
    %464 = vector.extract_strided_slice %410 {offsets = [0, 0, 24], sizes = [2, 8, 8], strides = [1, 1, 1]} : vector<2x8x32xf32> to vector<2x8x8xf32>
    %465 = vector.extract_strided_slice %411 {offsets = [0, 0, 24], sizes = [2, 8, 8], strides = [1, 1, 1]} : vector<2x8x32xf32> to vector<2x8x8xf32>
    %466 = vector.extract_strided_slice %412 {offsets = [0, 0, 24], sizes = [2, 8, 8], strides = [1, 1, 1]} : vector<2x8x32xf32> to vector<2x8x8xf32>
    "tpu.trace_start"() <{level = 10 : i32, message = "btd,bsd->bts"}> : () -> ()
    %cst_198 = arith.constant dense<0.000000e+00> : vector<2x8x8xf32>
    %467 = tpu.matmul %464, %465, %cst_198 {dimension_numbers = #tpu.dot_dimension_numbers<[2], [2], [1], [1], [0, 0, 0, 1, 1, 1], [0], [0]>} : vector<2x8x8xf32>, vector<2x8x8xf32>, vector<2x8x8xf32> -> vector<2x8x8xf32>
    "tpu.trace_stop"() : () -> ()
    %cst_199 = arith.constant 0.353553385 : f32
    %468 = vector.broadcast %cst_199 : f32 to vector<2x8x8xf32>
    %469 = arith.mulf %467, %468 : vector<2x8x8xf32>
    %cst_200 = arith.constant dense<0xFF800000> : vector<2x8xf32>
    %470 = vector.multi_reduction <maximumf>, %469, %cst_200 [2] : vector<2x8x8xf32> to vector<2x8xf32>
    %471 = vector.shape_cast %470 : vector<2x8xf32> to vector<2x8x1xf32>
    %472 = vector.broadcast %471 : vector<2x8x1xf32> to vector<2x8x8xf32>
    %473 = arith.subf %469, %472 : vector<2x8x8xf32>
    %474 = math.exp %473 : vector<2x8x8xf32>
    %cst_201 = arith.constant dense<0.000000e+00> : vector<2x8xf32>
    %475 = vector.multi_reduction <add>, %474, %cst_201 [2] : vector<2x8x8xf32> to vector<2x8xf32>
    %476 = vector.shape_cast %475 : vector<2x8xf32> to vector<2x8x1xf32>
    %477 = tpu.reciprocal %476 {approx = true} : vector<2x8x1xf32> -> vector<2x8x1xf32>
    %478 = vector.broadcast %477 : vector<2x8x1xf32> to vector<2x8x8xf32>
    %479 = arith.mulf %474, %478 : vector<2x8x8xf32>
    "tpu.trace_start"() <{level = 10 : i32, message = "bts,bsd->btd"}> : () -> ()
    %cst_202 = arith.constant dense<0.000000e+00> : vector<2x8x8xf32>
    %480 = tpu.matmul %479, %466, %cst_202 {dimension_numbers = #tpu.dot_dimension_numbers<[2], [1], [1], [2], [0, 0, 0, 1, 1, 2], [0], [0]>} : vector<2x8x8xf32>, vector<2x8x8xf32>, vector<2x8x8xf32> -> vector<2x8x8xf32>
    "tpu.trace_stop"() : () -> ()
    %481 = tpu.concatenate %429, %446, %463, %480 in 2 : vector<2x8x8xf32>, vector<2x8x8xf32>, vector<2x8x8xf32>, vector<2x8x8xf32> -> vector<2x8x32xf32>
    %482 = vector.shape_cast %481 : vector<2x8x32xf32> to vector<16x32xf32>
    %c1_203 = arith.constant 1 : index
    %c0_204 = arith.constant 0 : index
    %c0_205 = arith.constant 0 : index
    %483 = vector.load %arg10[%c1_203, %c0_204, %c0_205] : memref<2x32x32xf32, #tpu.memory_space<vmem>>, vector<1x32x32xf32>
    %484 = vector.shape_cast %483 : vector<1x32x32xf32> to vector<32x32xf32>
    %cst_206 = arith.constant dense<0.000000e+00> : vector<16x32xf32>
    %485 = tpu.matmul %482, %484, %cst_206 {dimension_numbers = #tpu.dot_dimension_numbers<[1], [0], [0], [1], [0, 0, 1, 1], [], []>} : vector<16x32xf32>, vector<32x32xf32>, vector<16x32xf32> -> vector<16x32xf32>
    %c1_207 = arith.constant 1 : index
    %c0_208 = arith.constant 0 : index
    %c0_209 = arith.constant 0 : index
    %486 = vector.load %arg11[%c1_207, %c0_208, %c0_209] : memref<2x1x32xf32, #tpu.memory_space<vmem>>, vector<1x1x32xf32>
    %487 = vector.shape_cast %486 : vector<1x1x32xf32> to vector<1x32xf32>
    %488 = vector.broadcast %487 : vector<1x32xf32> to vector<16x32xf32>
    %489 = arith.addf %485, %488 : vector<16x32xf32>
    %490 = arith.addf %393, %489 : vector<16x32xf32>
    %c1_210 = arith.constant 1 : index
    %c0_211 = arith.constant 0 : index
    %c0_212 = arith.constant 0 : index
    %491 = vector.load %arg18[%c1_210, %c0_211, %c0_212] : memref<2x1x32xf32, #tpu.memory_space<vmem>>, vector<1x1x32xf32>
    %492 = vector.shape_cast %491 : vector<1x1x32xf32> to vector<1x32xf32>
    %c1_213 = arith.constant 1 : index
    %c0_214 = arith.constant 0 : index
    %c0_215 = arith.constant 0 : index
    %493 = vector.load %arg19[%c1_213, %c0_214, %c0_215] : memref<2x1x32xf32, #tpu.memory_space<vmem>>, vector<1x1x32xf32>
    %494 = vector.shape_cast %493 : vector<1x1x32xf32> to vector<1x32xf32>
    %cst_216 = arith.constant dense<0.000000e+00> : vector<16xf32>
    %495 = vector.multi_reduction <add>, %490, %cst_216 [1] : vector<16x32xf32> to vector<16xf32>
    %496 = vector.shape_cast %495 : vector<16xf32> to vector<16x1xf32>
    %cst_217 = arith.constant 3.200000e+01 : f32
    %497 = vector.broadcast %cst_217 : f32 to vector<16x1xf32>
    %498 = arith.divf %496, %497 : vector<16x1xf32>
    %499 = vector.broadcast %498 : vector<16x1xf32> to vector<16x32xf32>
    %500 = arith.subf %490, %499 : vector<16x32xf32>
    %501 = arith.mulf %500, %500 : vector<16x32xf32>
    %cst_218 = arith.constant dense<0.000000e+00> : vector<16xf32>
    %502 = vector.multi_reduction <add>, %501, %cst_218 [1] : vector<16x32xf32> to vector<16xf32>
    %503 = vector.shape_cast %502 : vector<16xf32> to vector<16x1xf32>
    %cst_219 = arith.constant 3.200000e+01 : f32
    %504 = vector.broadcast %cst_219 : f32 to vector<16x1xf32>
    %505 = arith.divf %503, %504 : vector<16x1xf32>
    %cst_220 = arith.constant 9.99999974E-6 : f32
    %506 = vector.broadcast %cst_220 : f32 to vector<16x1xf32>
    %507 = arith.addf %505, %506 : vector<16x1xf32>
    %508 = math.rsqrt %507 : vector<16x1xf32>
    %509 = vector.broadcast %508 : vector<16x1xf32> to vector<16x32xf32>
    %510 = arith.mulf %500, %509 : vector<16x32xf32>
    %511 = vector.broadcast %492 : vector<1x32xf32> to vector<16x32xf32>
    %512 = arith.mulf %510, %511 : vector<16x32xf32>
    %513 = vector.broadcast %494 : vector<1x32xf32> to vector<16x32xf32>
    %514 = arith.addf %512, %513 : vector<16x32xf32>
    %c1_221 = arith.constant 1 : index
    %c0_222 = arith.constant 0 : index
    %c0_223 = arith.constant 0 : index
    %515 = vector.load %arg12[%c1_221, %c0_222, %c0_223] : memref<2x32x64xf32, #tpu.memory_space<vmem>>, vector<1x32x64xf32>
    %516 = vector.shape_cast %515 : vector<1x32x64xf32> to vector<32x64xf32>
    %cst_224 = arith.constant dense<0.000000e+00> : vector<16x64xf32>
    %517 = tpu.matmul %514, %516, %cst_224 {dimension_numbers = #tpu.dot_dimension_numbers<[1], [0], [0], [1], [0, 0, 1, 1], [], []>} : vector<16x32xf32>, vector<32x64xf32>, vector<16x64xf32> -> vector<16x64xf32>
    %c1_225 = arith.constant 1 : index
    %c0_226 = arith.constant 0 : index
    %c0_227 = arith.constant 0 : index
    %518 = vector.load %arg13[%c1_225, %c0_226, %c0_227] : memref<2x1x64xf32, #tpu.memory_space<vmem>>, vector<1x1x64xf32>
    %519 = vector.shape_cast %518 : vector<1x1x64xf32> to vector<1x64xf32>
    %520 = vector.broadcast %519 : vector<1x64xf32> to vector<16x64xf32>
    %521 = arith.addf %517, %520 : vector<16x64xf32>
    %cst_228 = arith.constant 0.000000e+00 : f32
    %522 = vector.broadcast %cst_228 : f32 to vector<16x64xf32>
    %523 = arith.maximumf %521, %522 : vector<16x64xf32>
    %c1_229 = arith.constant 1 : index
    %c0_230 = arith.constant 0 : index
    %c0_231 = arith.constant 0 : index
    %524 = vector.load %arg14[%c1_229, %c0_230, %c0_231] : memref<2x64x32xf32, #tpu.memory_space<vmem>>, vector<1x64x32xf32>
    %525 = vector.shape_cast %524 : vector<1x64x32xf32> to vector<64x32xf32>
    %cst_232 = arith.constant dense<0.000000e+00> : vector<16x32xf32>
    %526 = tpu.matmul %523, %525, %cst_232 {dimension_numbers = #tpu.dot_dimension_numbers<[1], [0], [0], [1], [0, 0, 1, 1], [], []>} : vector<16x64xf32>, vector<64x32xf32>, vector<16x32xf32> -> vector<16x32xf32>
    %c1_233 = arith.constant 1 : index
    %c0_234 = arith.constant 0 : index
    %c0_235 = arith.constant 0 : index
    %527 = vector.load %arg15[%c1_233, %c0_234, %c0_235] : memref<2x1x32xf32, #tpu.memory_space<vmem>>, vector<1x1x32xf32>
    %528 = vector.shape_cast %527 : vector<1x1x32xf32> to vector<1x32xf32>
    %529 = vector.broadcast %528 : vector<1x32xf32> to vector<16x32xf32>
    %530 = arith.addf %526, %529 : vector<16x32xf32>
    %531 = arith.addf %514, %530 : vector<16x32xf32>
    %c1_236 = arith.constant 1 : index
    %c0_237 = arith.constant 0 : index
    %c0_238 = arith.constant 0 : index
    %532 = vector.load %arg20[%c1_236, %c0_237, %c0_238] : memref<2x1x32xf32, #tpu.memory_space<vmem>>, vector<1x1x32xf32>
    %533 = vector.shape_cast %532 : vector<1x1x32xf32> to vector<1x32xf32>
    %c1_239 = arith.constant 1 : index
    %c0_240 = arith.constant 0 : index
    %c0_241 = arith.constant 0 : index
    %534 = vector.load %arg21[%c1_239, %c0_240, %c0_241] : memref<2x1x32xf32, #tpu.memory_space<vmem>>, vector<1x1x32xf32>
    %535 = vector.shape_cast %534 : vector<1x1x32xf32> to vector<1x32xf32>
    %cst_242 = arith.constant dense<0.000000e+00> : vector<16xf32>
    %536 = vector.multi_reduction <add>, %531, %cst_242 [1] : vector<16x32xf32> to vector<16xf32>
    %537 = vector.shape_cast %536 : vector<16xf32> to vector<16x1xf32>
    %cst_243 = arith.constant 3.200000e+01 : f32
    %538 = vector.broadcast %cst_243 : f32 to vector<16x1xf32>
    %539 = arith.divf %537, %538 : vector<16x1xf32>
    %540 = vector.broadcast %539 : vector<16x1xf32> to vector<16x32xf32>
    %541 = arith.subf %531, %540 : vector<16x32xf32>
    %542 = arith.mulf %541, %541 : vector<16x32xf32>
    %cst_244 = arith.constant dense<0.000000e+00> : vector<16xf32>
    %543 = vector.multi_reduction <add>, %542, %cst_244 [1] : vector<16x32xf32> to vector<16xf32>
    %544 = vector.shape_cast %543 : vector<16xf32> to vector<16x1xf32>
    %cst_245 = arith.constant 3.200000e+01 : f32
    %545 = vector.broadcast %cst_245 : f32 to vector<16x1xf32>
    %546 = arith.divf %544, %545 : vector<16x1xf32>
    %cst_246 = arith.constant 9.99999974E-6 : f32
    %547 = vector.broadcast %cst_246 : f32 to vector<16x1xf32>
    %548 = arith.addf %546, %547 : vector<16x1xf32>
    %549 = math.rsqrt %548 : vector<16x1xf32>
    %550 = vector.broadcast %549 : vector<16x1xf32> to vector<16x32xf32>
    %551 = arith.mulf %541, %550 : vector<16x32xf32>
    %552 = vector.broadcast %533 : vector<1x32xf32> to vector<16x32xf32>
    %553 = arith.mulf %551, %552 : vector<16x32xf32>
    %554 = vector.broadcast %535 : vector<1x32xf32> to vector<16x32xf32>
    %555 = arith.addf %553, %554 : vector<16x32xf32>
    %c0_247 = arith.constant 0 : index
    %c0_248 = arith.constant 0 : index
    %556 = vector.load %arg22[%c0_247, %c0_248] : memref<1x32xf32, #tpu.memory_space<vmem>>, vector<1x32xf32>
    %c0_249 = arith.constant 0 : index
    %c0_250 = arith.constant 0 : index
    %557 = vector.load %arg23[%c0_249, %c0_250] : memref<1x32xf32, #tpu.memory_space<vmem>>, vector<1x32xf32>
    %cst_251 = arith.constant dense<0.000000e+00> : vector<16xf32>
    %558 = vector.multi_reduction <add>, %555, %cst_251 [1] : vector<16x32xf32> to vector<16xf32>
    %559 = vector.shape_cast %558 : vector<16xf32> to vector<16x1xf32>
    %cst_252 = arith.constant 3.200000e+01 : f32
    %560 = vector.broadcast %cst_252 : f32 to vector<16x1xf32>
    %561 = arith.divf %559, %560 : vector<16x1xf32>
    %562 = vector.broadcast %561 : vector<16x1xf32> to vector<16x32xf32>
    %563 = arith.subf %555, %562 : vector<16x32xf32>
    %564 = arith.mulf %563, %563 : vector<16x32xf32>
    %cst_253 = arith.constant dense<0.000000e+00> : vector<16xf32>
    %565 = vector.multi_reduction <add>, %564, %cst_253 [1] : vector<16x32xf32> to vector<16xf32>
    %566 = vector.shape_cast %565 : vector<16xf32> to vector<16x1xf32>
    %cst_254 = arith.constant 3.200000e+01 : f32
    %567 = vector.broadcast %cst_254 : f32 to vector<16x1xf32>
    %568 = arith.divf %566, %567 : vector<16x1xf32>
    %cst_255 = arith.constant 9.99999974E-6 : f32
    %569 = vector.broadcast %cst_255 : f32 to vector<16x1xf32>
    %570 = arith.addf %568, %569 : vector<16x1xf32>
    %571 = math.rsqrt %570 : vector<16x1xf32>
    %572 = vector.broadcast %571 : vector<16x1xf32> to vector<16x32xf32>
    %573 = arith.mulf %563, %572 : vector<16x32xf32>
    %574 = vector.broadcast %556 : vector<1x32xf32> to vector<16x32xf32>
    %575 = arith.mulf %573, %574 : vector<16x32xf32>
    %576 = vector.broadcast %557 : vector<1x32xf32> to vector<16x32xf32>
    %577 = arith.addf %575, %576 : vector<16x32xf32>
    %578 = vector.shape_cast %577 : vector<16x32xf32> to vector<2x8x32xf32>
    %c0_256 = arith.constant 0 : index
    %c0_257 = arith.constant 0 : index
    %c0_258 = arith.constant 0 : index
    %579 = vector.load %arg24[%c0_256, %c0_257, %c0_258] : memref<1x1x32xf32, #tpu.memory_space<vmem>>, vector<1x1x32xf32>
    %580 = vector.broadcast %579 : vector<1x1x32xf32> to vector<2x8x32xf32>
    %581 = arith.mulf %578, %580 : vector<2x8x32xf32>
    %cst_259 = arith.constant dense<0.000000e+00> : vector<2x8xf32>
    %582 = vector.multi_reduction <add>, %581, %cst_259 [2] : vector<2x8x32xf32> to vector<2x8xf32>
    %c0_260 = arith.constant 0 : index
    %c0_261 = arith.constant 0 : index
    %583 = vector.load %arg25[%c0_260, %c0_261] : memref<1x1xf32, #tpu.memory_space<vmem>>, vector<1x1xf32>
    %584 = vector.broadcast %583 : vector<1x1xf32> to vector<2x8xf32>
    %585 = arith.addf %582, %584 : vector<2x8xf32>
    %c0_262 = arith.constant 0 : index
    %c0_263 = arith.constant 0 : index
    %586 = vector.load %arg26[%c0_262, %c0_263] : memref<2x8xf32, #tpu.memory_space<vmem>>, vector<2x8xf32>
    tpu.vector_store %arg26[%c0_262, %c0_263], %585 {strides = array<i32>} : memref<2x8xf32, #tpu.memory_space<vmem>>, vector<2x8xf32>,
    return
  }
}

</mosaic_0001>

<llo_original>
// kernel: pulse_decoder_forward.1
$region0: #{pulse_decoder_forward.1}
  #allocation0 [shape = 'u32[]', space=smem, size = 0x4, offset = 0x4, fixed_abs, tag = 'smem constant byte address 0x4 - core index']
  #allocation1 [shape = 'u32[72,128]{1,0:T(1,128)}', space=vmem, size = 0x9000, scoped, tag = 'internal scratch']
  #allocation2 [shape = 'f32[1,1]{1,0:T(1,128)S(1)}', space=vmem, size = 0x200, scoped, tag = 'scoped memory for pulse_decoder_forward.1']
  %s0 = inlined_call_operand.vmem [shape: f32[16,32], index: 0, kind: input, shape index: {}]
  %s1 = inlined_call_operand.vmem [shape: f32[16,32], index: 1, kind: input, shape index: {}]
  %s2 = inlined_call_operand.vmem [shape: f32[2,32,96], index: 2, kind: input, shape index: {}]
  %s3 = inlined_call_operand.vmem [shape: f32[2,1,96], index: 3, kind: input, shape index: {}]
  %s4 = inlined_call_operand.vmem [shape: f32[2,32,32], index: 4, kind: input, shape index: {}]
  %s5 = inlined_call_operand.vmem [shape: f32[2,1,32], index: 5, kind: input, shape index: {}]
  %s6 = inlined_call_operand.vmem [shape: f32[2,32,32], index: 6, kind: input, shape index: {}]
  %s7 = inlined_call_operand.vmem [shape: f32[2,1,32], index: 7, kind: input, shape index: {}]
  %s8 = inlined_call_operand.hbm [shape: f32[2,32,64], index: 8, kind: input, shape index: {}]
  %s9 = inlined_call_operand.vmem [shape: f32[2,1,64], index: 9, kind: input, shape index: {}]
  %s10 = inlined_call_operand.hbm [shape: f32[2,32,32], index: 10, kind: input, shape index: {}]
  %s11 = inlined_call_operand.vmem [shape: f32[2,1,32], index: 11, kind: input, shape index: {}]
  %s12 = inlined_call_operand.hbm [shape: f32[2,32,64], index: 12, kind: input, shape index: {}]
  %s13 = inlined_call_operand.hbm [shape: f32[2,1,64], index: 13, kind: input, shape index: {}]
  %s14 = inlined_call_operand.vmem [shape: f32[2,64,32], index: 14, kind: input, shape index: {}]
  %s15 = inlined_call_operand.hbm [shape: f32[2,1,32], index: 15, kind: input, shape index: {}]
  %s16 = inlined_call_operand.hbm [shape: f32[2,1,32], index: 16, kind: input, shape index: {}]
  %s17 = inlined_call_operand.hbm [shape: f32[2,1,32], index: 17, kind: input, shape index: {}]
  %s18 = inlined_call_operand.hbm [shape: f32[2,1,32], index: 18, kind: input, shape index: {}]
  %s19 = inlined_call_operand.hbm [shape: f32[2,1,32], index: 19, kind: input, shape index: {}]
  %s20 = inlined_call_operand.hbm [shape: f32[2,1,32], index: 20, kind: input, shape index: {}]
  %s21 = inlined_call_operand.hbm [shape: f32[2,1,32], index: 21, kind: input, shape index: {}]
  %s22 = inlined_call_operand.hbm [shape: f32[1,32], index: 22, kind: input, shape index: {}]
  %s23 = inlined_call_operand.hbm [shape: f32[1,32], index: 23, kind: input, shape index: {}]
  %s24 = inlined_call_operand.hbm [shape: f32[1,1,32], index: 24, kind: input, shape index: {}]
  %s25 = inlined_call_operand.<no memory space> [shape: f32[1,1], index: 25, kind: input, shape index: {}]
  %s26 = inlined_call_operand.hbm [shape: f32[2,8], index: 26, kind: output, shape index: {}]
  %s27 = sld [smem:[#allocation0]]
  $region170: #{pulse_decoder_forward.1} parent=0
    _
  %s29 = ssub.s32 1, %s27
  %s30 = scalar_select 0, %s29, %s27
  %v31 = vstv %s25
  %32 = vst [vmem:[#allocation2] sm:$0x1] %v31
  $region1: #{pulse_decoder_forward.1} parent=0
    #allocation3 [shape = 'u8[32768]{0}', space=vmem, size = 0x8000, scoped, tag = 'input window, operand 8, single buffered']
    #allocation4 [shape = 's32[1]{0}', space=sflag, size = 0x4, scoped, tag = 'scoped memory for pulse_decoder_forward.1']
    #allocation5 [shape = 's32[1]{0}', space=sflag, size = 0x4, scoped, tag = 'scoped memory for pulse_decoder_forward.1']
    #allocation6 [shape = 'u8[32768]{0}', space=vmem, size = 0x8000, scoped, tag = 'input window, operand 10, single buffered']
    #allocation7 [shape = 's32[1]{0}', space=sflag, size = 0x4, scoped, tag = 'scoped memory for pulse_decoder_forward.1']
    #allocation8 [shape = 'u8[32768]{0}', space=vmem, size = 0x8000, scoped, tag = 'input window, operand 12, single buffered']
    #allocation9 [shape = 'u8[1024]{0}', space=vmem, size = 0x400, scoped, tag = 'input window, operand 13, single buffered']
    #allocation10 [shape = 's32[1]{0}', space=sflag, size = 0x4, scoped, tag = 'scoped memory for pulse_decoder_forward.1']
    #allocation11 [shape = 'u8[1024]{0}', space=vmem, size = 0x400, scoped, tag = 'input window, operand 15, single buffered']
    #allocation12 [shape = 'u8[1024]{0}', space=vmem, size = 0x400, scoped, tag = 'input window, operand 16, single buffered']
    #allocation13 [shape = 's32[1]{0}', space=sflag, size = 0x4, scoped, tag = 'scoped memory for pulse_decoder_forward.1']
    #allocation14 [shape = 'u8[1024]{0}', space=vmem, size = 0x400, scoped, tag = 'input window, operand 17, single buffered']
    #allocation15 [shape = 'u8[1024]{0}', space=vmem, size = 0x400, scoped, tag = 'input window, operand 18, single buffered']
    #allocation16 [shape = 's32[1]{0}', space=sflag, size = 0x4, scoped, tag = 'scoped memory for pulse_decoder_forward.1']
    #allocation17 [shape = 'u8[1024]{0}', space=vmem, size = 0x400, scoped, tag = 'input window, operand 19, single buffered']
    #allocation18 [shape = 'u8[1024]{0}', space=vmem, size = 0x400, scoped, tag = 'input window, operand 20, single buffered']
    #allocation19 [shape = 's32[1]{0}', space=sflag, size = 0x4, scoped, tag = 'scoped memory for pulse_decoder_forward.1']
    #allocation20 [shape = 'u8[1024]{0}', space=vmem, size = 0x400, scoped, tag = 'input window, operand 21, single buffered']
    #allocation21 [shape = 'u8[512]{0}', space=vmem, size = 0x400, scoped, tag = 'input window, operand 22, single buffered']
    #allocation22 [shape = 's32[1]{0}', space=sflag, size = 0x4, scoped, tag = 'scoped memory for pulse_decoder_forward.1']
    #allocation23 [shape = 'u8[512]{0}', space=vmem, size = 0x400, scoped, tag = 'input window, operand 23, single buffered']
    #allocation24 [shape = 'u8[512]{0}', space=vmem, size = 0x400, scoped, tag = 'input window, operand 24, single buffered']
    #allocation25 [shape = 's32[1]{0}', space=sflag, size = 0x4, scoped, tag = 'scoped memory for pulse_decoder_forward.1']
    #allocation26 [shape = 'u8[1024]{0}', space=vmem, size = 0x400, scoped, tag = 'output window, operand 0, single buffered']
    %33 = vsyncpa [#allocation4], 0
    %34 = vsyncpa [#allocation7], 0
    %35 = vsyncpa [#allocation10], 0
    %36 = vsyncpa [#allocation13], 0
    %37 = vsyncpa [#allocation16], 0
    %38 = vsyncpa [#allocation19], 0
    %39 = vsyncpa [#allocation22], 0
    %40 = vsyncpa [#allocation25], 0
    %41 = vsyncpa [#allocation5], 0
    // Predicated region
    $region2: #{pulse_decoder_forward.1} parent=1 // pred_check
      _
    $region3: #{pulse_decoder_forward.1} parent=1 // pred_check_branch
      %43 = sbr.rel (0) target = $region5
    $region4: #{pulse_decoder_forward.1} parent=1 // pred_region
      _
    $region5: #{pulse_decoder_forward.1} parent=1 // pred_fallthru
      _
    // Predicated region
    $region6: #{pulse_decoder_forward.1} parent=1 // pred_check
      _
    $region7: #{pulse_decoder_forward.1} parent=1 // pred_check_branch
      %45 = sbr.rel (0) target = $region9
    $region8: #{pulse_decoder_forward.1} parent=1 // pred_region
      _
    $region9: #{pulse_decoder_forward.1} parent=1 // pred_fallthru
      _
    // Predicated region
    $region10: #{pulse_decoder_forward.1} parent=1 // pred_check
      _
    $region11: #{pulse_decoder_forward.1} parent=1 // pred_check_branch
      %47 = sbr.rel (0) target = $region13
    $region12: #{pulse_decoder_forward.1} parent=1 // pred_region
      _
    $region13: #{pulse_decoder_forward.1} parent=1 // pred_fallthru
      _
    // Predicated region
    $region14: #{pulse_decoder_forward.1} parent=1 // pred_check
      _
    $region15: #{pulse_decoder_forward.1} parent=1 // pred_check_branch
      %49 = sbr.rel (0) target = $region17
    $region16: #{pulse_decoder_forward.1} parent=1 // pred_region
      _
    $region17: #{pulse_decoder_forward.1} parent=1 // pred_fallthru
      _
    // Predicated region
    $region18: #{pulse_decoder_forward.1} parent=1 // pred_check
      _
    $region19: #{pulse_decoder_forward.1} parent=1 // pred_check_branch
      %51 = sbr.rel (0) target = $region21
    $region20: #{pulse_decoder_forward.1} parent=1 // pred_region
      _
    $region21: #{pulse_decoder_forward.1} parent=1 // pred_fallthru
      _
    // Predicated region
    $region22: #{pulse_decoder_forward.1} parent=1 // pred_check
      _
    $region23: #{pulse_decoder_forward.1} parent=1 // pred_check_branch
      %53 = sbr.rel (0) target = $region25
    $region24: #{pulse_decoder_forward.1} parent=1 // pred_region
      _
    $region25: #{pulse_decoder_forward.1} parent=1 // pred_fallthru
      _
    // Predicated region
    $region26: #{pulse_decoder_forward.1} parent=1 // pred_check
      _
    $region27: #{pulse_decoder_forward.1} parent=1 // pred_check_branch
      %55 = sbr.rel (0) target = $region29
    $region28: #{pulse_decoder_forward.1} parent=1 // pred_region
      _
    $region29: #{pulse_decoder_forward.1} parent=1 // pred_fallthru
      _
    // Predicated region
    $region30: #{pulse_decoder_forward.1} parent=1 // pred_check
      _
    $region31: #{pulse_decoder_forward.1} parent=1 // pred_check_branch
      %57 = sbr.rel (0) target = $region33
    $region32: #{pulse_decoder_forward.1} parent=1 // pred_region
      _
    $region33: #{pulse_decoder_forward.1} parent=1 // pred_fallthru
      _
    // Predicated region
    $region34: #{pulse_decoder_forward.1} parent=1 // pred_check
      _
    $region35: #{pulse_decoder_forward.1} parent=1 // pred_check_branch
      %59 = sbr.rel (0) target = $region37
    $region36: #{pulse_decoder_forward.1} parent=1 // pred_region
      %61 = vsyncadd [#allocation4], 0
      %s62 = sshll.u32 %s8, 4
      %s63 = int_to_ptr.hbm [resolvable:$true] %s62
      %s64 = sshll.u32 [#allocation3], 4
      %s65 = int_to_ptr.vmem [resolvable:$true] %s64
      %70 = dma.hbm_to_vmem [thread:$0]  %s63, 1024, %s65, [#allocation4], 128, 128, 8
    $region37: #{pulse_decoder_forward.1} parent=1 // pred_fallthru
      _
    // Predicated region
    $region38: #{pulse_decoder_forward.1} parent=1 // pred_check
      _
    $region39: #{pulse_decoder_forward.1} parent=1 // pred_check_branch
      %72 = sbr.rel (0) target = $region41
    $region40: #{pulse_decoder_forward.1} parent=1 // pred_region
      _
    $region41: #{pulse_decoder_forward.1} parent=1 // pred_fallthru
      _
    // Predicated region
    $region42: #{pulse_decoder_forward.1} parent=1 // pred_check
      _
    $region43: #{pulse_decoder_forward.1} parent=1 // pred_check_branch
      %74 = sbr.rel (0) target = $region45
    $region44: #{pulse_decoder_forward.1} parent=1 // pred_region
      %76 = vsyncadd [#allocation7], 0
      %s77 = sshll.u32 %s10, 4
      %s78 = int_to_ptr.hbm [resolvable:$true] %s77
      %s79 = sshll.u32 [#allocation6], 4
      %s80 = int_to_ptr.vmem [resolvable:$true] %s79
      %85 = dma.hbm_to_vmem [thread:$0]  %s78, 1024, %s80, [#allocation7], 128, 128, 8
    $region45: #{pulse_decoder_forward.1} parent=1 // pred_fallthru
      _
    // Predicated region
    $region46: #{pulse_decoder_forward.1} parent=1 // pred_check
      _
    $region47: #{pulse_decoder_forward.1} parent=1 // pred_check_branch
      %87 = sbr.rel (0) target = $region49
    $region48: #{pulse_decoder_forward.1} parent=1 // pred_region
      _
    $region49: #{pulse_decoder_forward.1} parent=1 // pred_fallthru
      _
    // Predicated region
    $region50: #{pulse_decoder_forward.1} parent=1 // pred_check
      _
    $region51: #{pulse_decoder_forward.1} parent=1 // pred_check_branch
      %89 = sbr.rel (0) target = $region53
    $region52: #{pulse_decoder_forward.1} parent=1 // pred_region
      %91 = vsyncadd [#allocation7], 0
      %s92 = sshll.u32 %s12, 4
      %s93 = int_to_ptr.hbm [resolvable:$true] %s92
      %s94 = sshll.u32 [#allocation8], 4
      %s95 = int_to_ptr.vmem [resolvable:$true] %s94
      %100 = dma.hbm_to_vmem [thread:$0]  %s93, 1024, %s95, [#allocation7], 128, 128, 8
    $region53: #{pulse_decoder_forward.1} parent=1 // pred_fallthru
      _
    // Predicated region
    $region54: #{pulse_decoder_forward.1} parent=1 // pred_check
      _
    $region55: #{pulse_decoder_forward.1} parent=1 // pred_check_branch
      %102 = sbr.rel (0) target = $region57
    $region56: #{pulse_decoder_forward.1} parent=1 // pred_region
      %104 = vsyncadd [#allocation10], 0
      %s105 = sshll.u32 %s13, 4
      %s106 = int_to_ptr.hbm [resolvable:$true] %s105
      %s107 = sshll.u32 [#allocation9], 4
      %s108 = int_to_ptr.vmem [resolvable:$true] %s107
      %113 = dma.hbm_to_vmem [thread:$0]  %s106, 32, %s108, [#allocation10], 16, 16, 1
    $region57: #{pulse_decoder_forward.1} parent=1 // pred_fallthru
      _
    // Predicated region
    $region58: #{pulse_decoder_forward.1} parent=1 // pred_check
      _
    $region59: #{pulse_decoder_forward.1} parent=1 // pred_check_branch
      %115 = sbr.rel (0) target = $region61
    $region60: #{pulse_decoder_forward.1} parent=1 // pred_region
      _
    $region61: #{pulse_decoder_forward.1} parent=1 // pred_fallthru
      _
    // Predicated region
    $region62: #{pulse_decoder_forward.1} parent=1 // pred_check
      _
    $region63: #{pulse_decoder_forward.1} parent=1 // pred_check_branch
      %117 = sbr.rel (0) target = $region65
    $region64: #{pulse_decoder_forward.1} parent=1 // pred_region
      %119 = vsyncadd [#allocation10], 0
      %s120 = sshll.u32 %s15, 4
      %s121 = int_to_ptr.hbm [resolvable:$true] %s120
      %s122 = sshll.u32 [#allocation11], 4
      %s123 = int_to_ptr.vmem [resolvable:$true] %s122
      %128 = dma.hbm_to_vmem [thread:$0]  %s121, 32, %s123, [#allocation10], 16, 16, 1
    $region65: #{pulse_decoder_forward.1} parent=1 // pred_fallthru
      _
    // Predicated region
    $region66: #{pulse_decoder_forward.1} parent=1 // pred_check
      _
    $region67: #{pulse_decoder_forward.1} parent=1 // pred_check_branch
      %130 = sbr.rel (0) target = $region69
    $region68: #{pulse_decoder_forward.1} parent=1 // pred_region
      %132 = vsyncadd [#allocation13], 0
      %s133 = sshll.u32 %s16, 4
      %s134 = int_to_ptr.hbm [resolvable:$true] %s133
      %s135 = sshll.u32 [#allocation12], 4
      %s136 = int_to_ptr.vmem [resolvable:$true] %s135
      %141 = dma.hbm_to_vmem [thread:$0]  %s134, 32, %s136, [#allocation13], 16, 16, 1
    $region69: #{pulse_decoder_forward.1} parent=1 // pred_fallthru
      _
    // Predicated region
    $region70: #{pulse_decoder_forward.1} parent=1 // pred_check
      _
    $region71: #{pulse_decoder_forward.1} parent=1 // pred_check_branch
      %143 = sbr.rel (0) target = $region73
    $region72: #{pulse_decoder_forward.1} parent=1 // pred_region
      %145 = vsyncadd [#allocation13], 0
      %s146 = sshll.u32 %s17, 4
      %s147 = int_to_ptr.hbm [resolvable:$true] %s146
      %s148 = sshll.u32 [#allocation14], 4
      %s149 = int_to_ptr.vmem [resolvable:$true] %s148
      %154 = dma.hbm_to_vmem [thread:$0]  %s147, 32, %s149, [#allocation13], 16, 16, 1
    $region73: #{pulse_decoder_forward.1} parent=1 // pred_fallthru
      _
    // Predicated region
    $region74: #{pulse_decoder_forward.1} parent=1 // pred_check
      _
    $region75: #{pulse_decoder_forward.1} parent=1 // pred_check_branch
      %156 = sbr.rel (0) target = $region77
    $region76: #{pulse_decoder_forward.1} parent=1 // pred_region
      %158 = vsyncadd [#allocation16], 0
      %s159 = sshll.u32 %s18, 4
      %s160 = int_to_ptr.hbm [resolvable:$true] %s159
      %s161 = sshll.u32 [#allocation15], 4
      %s162 = int_to_ptr.vmem [resolvable:$true] %s161
      %167 = dma.hbm_to_vmem [thread:$0]  %s160, 32, %s162, [#allocation16], 16, 16, 1
    $region77: #{pulse_decoder_forward.1} parent=1 // pred_fallthru
      _
    // Predicated region
    $region78: #{pulse_decoder_forward.1} parent=1 // pred_check
      _
    $region79: #{pulse_decoder_forward.1} parent=1 // pred_check_branch
      %169 = sbr.rel (0) target = $region81
    $region80: #{pulse_decoder_forward.1} parent=1 // pred_region
      %171 = vsyncadd [#allocation16], 0
      %s172 = sshll.u32 %s19, 4
      %s173 = int_to_ptr.hbm [resolvable:$true] %s172
      %s174 = sshll.u32 [#allocation17], 4
      %s175 = int_to_ptr.vmem [resolvable:$true] %s174
      %180 = dma.hbm_to_vmem [thread:$0]  %s173, 32, %s175, [#allocation16], 16, 16, 1
    $region81: #{pulse_decoder_forward.1} parent=1 // pred_fallthru
      _
    // Predicated region
    $region82: #{pulse_decoder_forward.1} parent=1 // pred_check
      _
    $region83: #{pulse_decoder_forward.1} parent=1 // pred_check_branch
      %182 = sbr.rel (0) target = $region85
    $region84: #{pulse_decoder_forward.1} parent=1 // pred_region
      %184 = vsyncadd [#allocation19], 0
      %s185 = sshll.u32 %s20, 4
      %s186 = int_to_ptr.hbm [resolvable:$true] %s185
      %s187 = sshll.u32 [#allocation18], 4
      %s188 = int_to_ptr.vmem [resolvable:$true] %s187
      %193 = dma.hbm_to_vmem [thread:$0]  %s186, 32, %s188, [#allocation19], 16, 16, 1
    $region85: #{pulse_decoder_forward.1} parent=1 // pred_fallthru
      _
    // Predicated region
    $region86: #{pulse_decoder_forward.1} parent=1 // pred_check
      _
    $region87: #{pulse_decoder_forward.1} parent=1 // pred_check_branch
      %195 = sbr.rel (0) target = $region89
    $region88: #{pulse_decoder_forward.1} parent=1 // pred_region
      %197 = vsyncadd [#allocation19], 0
      %s198 = sshll.u32 %s21, 4
      %s199 = int_to_ptr.hbm [resolvable:$true] %s198
      %s200 = sshll.u32 [#allocation20], 4
      %s201 = int_to_ptr.vmem [resolvable:$true] %s200
      %206 = dma.hbm_to_vmem [thread:$0]  %s199, 32, %s201, [#allocation19], 16, 16, 1
    $region89: #{pulse_decoder_forward.1} parent=1 // pred_fallthru
      _
    // Predicated region
    $region90: #{pulse_decoder_forward.1} parent=1 // pred_check
      _
    $region91: #{pulse_decoder_forward.1} parent=1 // pred_check_branch
      %208 = sbr.rel (0) target = $region93
    $region92: #{pulse_decoder_forward.1} parent=1 // pred_region
      %210 = vsyncadd [#allocation22], 0
      %s212 = sshll.u32 %s22, 4
      %s213 = int_to_ptr.hbm [resolvable:$true] %s212
      %s214 = sshll.u32 [#allocation21], 4
      %s215 = int_to_ptr.vmem [resolvable:$true] %s214
      %217 = dma.hbm_to_vmem [thread:$0]  %s213, 16, %s215, [#allocation22]
    $region93: #{pulse_decoder_forward.1} parent=1 // pred_fallthru
      _
    // Predicated region
    $region94: #{pulse_decoder_forward.1} parent=1 // pred_check
      _
    $region95: #{pulse_decoder_forward.1} parent=1 // pred_check_branch
      %219 = sbr.rel (0) target = $region97
    $region96: #{pulse_decoder_forward.1} parent=1 // pred_region
      %221 = vsyncadd [#allocation22], 0
      %s223 = sshll.u32 %s23, 4
      %s224 = int_to_ptr.hbm [resolvable:$true] %s223
      %s225 = sshll.u32 [#allocation23], 4
      %s226 = int_to_ptr.vmem [resolvable:$true] %s225
      %228 = dma.hbm_to_vmem [thread:$0]  %s224, 16, %s226, [#allocation22]
    $region97: #{pulse_decoder_forward.1} parent=1 // pred_fallthru
      _
    // Predicated region
    $region98: #{pulse_decoder_forward.1} parent=1 // pred_check
      _
    $region99: #{pulse_decoder_forward.1} parent=1 // pred_check_branch
      %230 = sbr.rel (0) target = $region101
    $region100: #{pulse_decoder_forward.1} parent=1 // pred_region
      %232 = vsyncadd [#allocation25], 0
      %s234 = sshll.u32 %s24, 4
      %s235 = int_to_ptr.hbm [resolvable:$true] %s234
      %s236 = sshll.u32 [#allocation24], 4
      %s237 = int_to_ptr.vmem [resolvable:$true] %s236
      %239 = dma.hbm_to_vmem [thread:$0]  %s235, 16, %s237, [#allocation25]
    $region101: #{pulse_decoder_forward.1} parent=1 // pred_fallthru
      _
    // Predicated region
    $region102: #{pulse_decoder_forward.1} parent=1 // pred_check
      _
    $region103: #{pulse_decoder_forward.1} parent=1 // pred_check_branch
      %241 = sbr.rel (0) target = $region105
    $region104: #{pulse_decoder_forward.1} parent=1 // pred_region
      _
    $region105: #{pulse_decoder_forward.1} parent=1 // pred_fallthru
      _
    // Predicated region
    $region106: #{pulse_decoder_forward.1} parent=1 // pred_check
      _
    $region107: #{pulse_decoder_forward.1} parent=1 // pred_check_branch
      %243 = sbr.rel (0) target = $region109
    $region108: #{pulse_decoder_forward.1} parent=1 // pred_region
      %245 = dma.done [#allocation4], 1024
    $region109: #{pulse_decoder_forward.1} parent=1 // pred_fallthru
      _
    // Predicated region
    $region110: #{pulse_decoder_forward.1} parent=1 // pred_check
      _
    $region111: #{pulse_decoder_forward.1} parent=1 // pred_check_branch
      %247 = sbr.rel (0) target = $region113
    $region112: #{pulse_decoder_forward.1} parent=1 // pred_region
      %249 = dma.done [#allocation7], 1024
    $region113: #{pulse_decoder_forward.1} parent=1 // pred_fallthru
      _
    // Predicated region
    $region114: #{pulse_decoder_forward.1} parent=1 // pred_check
      _
    $region115: #{pulse_decoder_forward.1} parent=1 // pred_check_branch
      %251 = sbr.rel (0) target = $region117
    $region116: #{pulse_decoder_forward.1} parent=1 // pred_region
      %253 = dma.done [#allocation7], 1024
    $region117: #{pulse_decoder_forward.1} parent=1 // pred_fallthru
      _
    // Predicated region
    $region118: #{pulse_decoder_forward.1} parent=1 // pred_check
      _
    $region119: #{pulse_decoder_forward.1} parent=1 // pred_check_branch
      %255 = sbr.rel (0) target = $region121
    $region120: #{pulse_decoder_forward.1} parent=1 // pred_region
      %257 = dma.done [#allocation10], 32
    $region121: #{pulse_decoder_forward.1} parent=1 // pred_fallthru
      _
    // Predicated region
    $region122: #{pulse_decoder_forward.1} parent=1 // pred_check
      _
    $region123: #{pulse_decoder_forward.1} parent=1 // pred_check_branch
      %259 = sbr.rel (0) target = $region125
    $region124: #{pulse_decoder_forward.1} parent=1 // pred_region
      %261 = dma.done [#allocation10], 32
    $region125: #{pulse_decoder_forward.1} parent=1 // pred_fallthru
      _
    // Predicated region
    $region126: #{pulse_decoder_forward.1} parent=1 // pred_check
      _
    $region127: #{pulse_decoder_forward.1} parent=1 // pred_check_branch
      %263 = sbr.rel (0) target = $region129
    $region128: #{pulse_decoder_forward.1} parent=1 // pred_region
      %265 = dma.done [#allocation13], 32
    $region129: #{pulse_decoder_forward.1} parent=1 // pred_fallthru
      _
    // Predicated region
    $region130: #{pulse_decoder_forward.1} parent=1 // pred_check
      _
    $region131: #{pulse_decoder_forward.1} parent=1 // pred_check_branch
      %267 = sbr.rel (0) target = $region133
    $region132: #{pulse_decoder_forward.1} parent=1 // pred_region
      %269 = dma.done [#allocation13], 32
    $region133: #{pulse_decoder_forward.1} parent=1 // pred_fallthru
      _
    // Predicated region
    $region134: #{pulse_decoder_forward.1} parent=1 // pred_check
      _
    $region135: #{pulse_decoder_forward.1} parent=1 // pred_check_branch
      %271 = sbr.rel (0) target = $region137
    $region136: #{pulse_decoder_forward.1} parent=1 // pred_region
      %273 = dma.done [#allocation16], 32
    $region137: #{pulse_decoder_forward.1} parent=1 // pred_fallthru
      _
    // Predicated region
    $region138: #{pulse_decoder_forward.1} parent=1 // pred_check
      _
    $region139: #{pulse_decoder_forward.1} parent=1 // pred_check_branch
      %275 = sbr.rel (0) target = $region141
    $region140: #{pulse_decoder_forward.1} parent=1 // pred_region
      %277 = dma.done [#allocation16], 32
    $region141: #{pulse_decoder_forward.1} parent=1 // pred_fallthru
      _
    // Predicated region
    $region142: #{pulse_decoder_forward.1} parent=1 // pred_check
      _
    $region143: #{pulse_decoder_forward.1} parent=1 // pred_check_branch
      %279 = sbr.rel (0) target = $region145
    $region144: #{pulse_decoder_forward.1} parent=1 // pred_region
      %281 = dma.done [#allocation19], 32
    $region145: #{pulse_decoder_forward.1} parent=1 // pred_fallthru
      _
    // Predicated region
    $region146: #{pulse_decoder_forward.1} parent=1 // pred_check
      _
    $region147: #{pulse_decoder_forward.1} parent=1 // pred_check_branch
      %283 = sbr.rel (0) target = $region149
    $region148: #{pulse_decoder_forward.1} parent=1 // pred_region
      %285 = dma.done [#allocation19], 32
    $region149: #{pulse_decoder_forward.1} parent=1 // pred_fallthru
      _
    // Predicated region
    $region150: #{pulse_decoder_forward.1} parent=1 // pred_check
      _
    $region151: #{pulse_decoder_forward.1} parent=1 // pred_check_branch
      %287 = sbr.rel (0) target = $region153
    $region152: #{pulse_decoder_forward.1} parent=1 // pred_region
      %289 = dma.done [#allocation22], 16
    $region153: #{pulse_decoder_forward.1} parent=1 // pred_fallthru
      _
    // Predicated region
    $region154: #{pulse_decoder_forward.1} parent=1 // pred_check
      _
    $region155: #{pulse_decoder_forward.1} parent=1 // pred_check_branch
      %291 = sbr.rel (0) target = $region157
    $region156: #{pulse_decoder_forward.1} parent=1 // pred_region
      %293 = dma.done [#allocation22], 16
    $region157: #{pulse_decoder_forward.1} parent=1 // pred_fallthru
      _
    // Predicated region
    $region158: #{pulse_decoder_forward.1} parent=1 // pred_check
      _
    $region159: #{pulse_decoder_forward.1} parent=1 // pred_check_branch
      %295 = sbr.rel (0) target = $region161
    $region160: #{pulse_decoder_forward.1} parent=1 // pred_region
      %297 = dma.done [#allocation25], 16
    $region161: #{pulse_decoder_forward.1} parent=1 // pred_fallthru
      _
    %v298 = vld [vmem:[%s0] sm:$0xff]
    %v299 = vld [vmem:[%s0 + $0x8] sm:$0xff]
    %v300 = vld [vmem:[%s1] sm:$0xff]
    %v301 = vld [vmem:[%s1 + $0x8] sm:$0xff]
    %v302 = vld [vmem:[%s2] sm:$0xff]
    %v303 = vld [vmem:[%s2 + $0x8] sm:$0xff]
    %v304 = vld [vmem:[%s2 + $0x10] sm:$0xff]
    %v305 = vld [vmem:[%s2 + $0x18] sm:$0xff]
    %v306 = vld [vmem:[%s3] sm:$0x1]
    %v308 = vperm.slane %v306, 0
    %vm310 = vcmask 261120
    %v312 = vsel %vm310, %v298, 0
    %v315 = vsel %vm310, %v299, 0
    %317 = vmatpush.msra.mxu0 0.0
    %318 = vmatpush.msra.mxu0 0.0
    %319 = vmatpush.msra.mxu0 0.0
    %320 = vmatpush.msra.mxu0 0.0
    %321 = vmatpush.msra.mxu0 0.0
    %322 = vmatpush.msra.mxu0 0.0
    %323 = vmatpush.msra.mxu0 0.0
    %324 = vmatpush.msra.mxu0 0.0
    %325 = vmatpush.msra.mxu0 0.0
    %326 = vmatpush.msra.mxu0 0.0
    %327 = vmatpush.msra.mxu0 0.0
    %328 = vmatpush.msra.mxu0 0.0
    %329 = vmatpush.msra.mxu0 %v305
    %330 = vmatpush.msra.mxu0 %v304
    %331 = vmatpush.msra.mxu0 %v303
    %332 = vmatpush.msra.mxu0 %v302
    %333 = vmatmul.f32.gmra.mxu0 %v312
    %v334 = vpop.f32.mrf.mxu0
    %v335 = vadd.f32 %v308, %v334
    %336 = vmatmul.f32.gmra.mxu0 %v315
    %v337 = vpop.f32.mrf.mxu0
    %v338 = vadd.f32 %v308, %v337
    %339 = vdwg.mxu0
    %341 = vrot.lane.b32.xlu0 %v335, 96
    %v342 = vpop.permute.xlu0 %341
    %vm343 = vcmask 64512
    %v344 = vsel %vm343, %v335, 0
    %v346 = vsel %vm343, %v342, 0
    %348 = vmatpush.xpose.msra.mxu0 0.0
    %349 = vmatpush.xpose.msra.mxu0 0.0
    %350 = vmatpush.xpose.msra.mxu0 0.0
    %351 = vmatpush.xpose.msra.mxu0 0.0
    %352 = vmatpush.xpose.msra.mxu0 0.0
    %353 = vmatpush.xpose.msra.mxu0 0.0
    %354 = vmatpush.xpose.msra.mxu0 0.0
    %355 = vmatpush.xpose.msra.mxu0 0.0
    %356 = vmatpush.xpose.msra.mxu0 0.0
    %357 = vmatpush.xpose.msra.mxu0 0.0
    %358 = vmatpush.xpose.msra.mxu0 0.0
    %359 = vmatpush.xpose.msra.mxu0 0.0
    %360 = vmatpush.xpose.msra.mxu0 0.0
    %361 = vmatpush.xpose.msra.mxu0 0.0
    %362 = vmatpush.xpose.msra.mxu0 0.0
    %363 = vmatpush.xpose.msra.mxu0 %v346
    %364 = vmatmul.f32.gmra.mxu0 %v344
    %v365 = vpop.f32.mrf.mxu0
    %v366 = vadd.f32 0.0, %v365
    %367 = vdwg.mxu0
    %369 = vrot.lane.b32.xlu0 %v338, 96
    %v370 = vpop.permute.xlu0 %369
    %v371 = vsel %vm343, %v338, 0
    %v373 = vsel %vm343, %v370, 0
    %375 = vmatpush.xpose.msra.mxu0 0.0
    %376 = vmatpush.xpose.msra.mxu0 0.0
    %377 = vmatpush.xpose.msra.mxu0 0.0
    %378 = vmatpush.xpose.msra.mxu0 0.0
    %379 = vmatpush.xpose.msra.mxu0 0.0
    %380 = vmatpush.xpose.msra.mxu0 0.0
    %381 = vmatpush.xpose.msra.mxu0 0.0
    %382 = vmatpush.xpose.msra.mxu0 0.0
    %383 = vmatpush.xpose.msra.mxu0 0.0
    %384 = vmatpush.xpose.msra.mxu0 0.0
    %385 = vmatpush.xpose.msra.mxu0 0.0
    %386 = vmatpush.xpose.msra.mxu0 0.0
    %387 = vmatpush.xpose.msra.mxu0 0.0
    %388 = vmatpush.xpose.msra.mxu0 0.0
    %389 = vmatpush.xpose.msra.mxu0 0.0
    %390 = vmatpush.xpose.msra.mxu0 %v373
    %391 = vmatmul.f32.gmra.mxu0 %v371
    %v392 = vpop.f32.mrf.mxu0
    %v393 = vadd.f32 0.0, %v392
    %394 = vdwg.mxu0
    %v395 = vmul.f32 %v366, 0.35355338
    %v396 = vmul.f32 %v393, 0.35355338
    %v397 = vsel %vm343, %v395, -inf
    %398 = vmax.xlane.f32.xlu0 %v397
    %v399 = vpop.xlane.xlu0 %398
    %v400 = vsel %vm343, %v396, -inf
    %401 = vmax.xlane.f32.xlu0 %v400
    %v402 = vpop.xlane.xlu0 %401
    %v403 = vsub.f32 %v395, %v399
    %v404 = vsub.f32 %v396, %v402
    %v405 = vmul.f32 %v403, 1.442695
    %v406 = vpow.pop %v405
    %v407 = vmul.f32 %v404, 1.442695
    %v408 = vpow.pop %v407
    %v409 = vsel %vm343, %v406, 0.0
    %410 = vadd.xlane.f32.xlu0 %v409
    %v411 = vpop.xlane.xlu0 %410
    %v412 = vsel %vm343, %v408, 0.0
    %413 = vadd.xlane.f32.xlu0 %v412
    %v414 = vpop.xlane.xlu0 %413
    %v415 = vrcp.pop %v411
    %v416 = vrcp.pop %v414
    %v417 = vmul.f32 %v406, %v415
    %v418 = vmul.f32 %v408, %v416
    %419 = vrot.lane.b32.xlu0 %v335, 64
    %v420 = vpop.permute.xlu0 %419
    %v423 = vsel %vm343, %v417, 0
    %425 = vmatpush.msra.mxu0 0.0
    %426 = vmatpush.msra.mxu0 0.0
    %427 = vmatpush.msra.mxu0 0.0
    %428 = vmatpush.msra.mxu0 0.0
    %429 = vmatpush.msra.mxu0 0.0
    %430 = vmatpush.msra.mxu0 0.0
    %431 = vmatpush.msra.mxu0 0.0
    %432 = vmatpush.msra.mxu0 0.0
    %433 = vmatpush.msra.mxu0 0.0
    %434 = vmatpush.msra.mxu0 0.0
    %435 = vmatpush.msra.mxu0 0.0
    %436 = vmatpush.msra.mxu0 0.0
    %437 = vmatpush.msra.mxu0 0.0
    %438 = vmatpush.msra.mxu0 0.0
    %439 = vmatpush.msra.mxu0 0.0
    %440 = vmatpush.msra.mxu0 %v420
    %441 = vmatmul.f32.gmra.mxu0 %v423
    %v442 = vpop.f32.mrf.mxu0
    %v443 = vadd.f32 0.0, %v442
    %444 = vdwg.mxu0
    %445 = vrot.lane.b32.xlu0 %v338, 64
    %v446 = vpop.permute.xlu0 %445
    %v449 = vsel %vm343, %v418, 0
    %451 = vmatpush.msra.mxu0 0.0
    %452 = vmatpush.msra.mxu0 0.0
    %453 = vmatpush.msra.mxu0 0.0
    %454 = vmatpush.msra.mxu0 0.0
    %455 = vmatpush.msra.mxu0 0.0
    %456 = vmatpush.msra.mxu0 0.0
    %457 = vmatpush.msra.mxu0 0.0
    %458 = vmatpush.msra.mxu0 0.0
    %459 = vmatpush.msra.mxu0 0.0
    %460 = vmatpush.msra.mxu0 0.0
    %461 = vmatpush.msra.mxu0 0.0
    %462 = vmatpush.msra.mxu0 0.0
    %463 = vmatpush.msra.mxu0 0.0
    %464 = vmatpush.msra.mxu0 0.0
    %465 = vmatpush.msra.mxu0 0.0
    %466 = vmatpush.msra.mxu0 %v446
    %467 = vmatmul.f32.gmra.mxu0 %v449
    %v468 = vpop.f32.mrf.mxu0
    %v469 = vadd.f32 0.0, %v468
    %470 = vdwg.mxu0
    %471 = vrot.lane.b32.xlu0 %v335, 120
    %v472 = vpop.permute.xlu0 %471
    %473 = vrot.lane.b32.xlu0 %v335, 88
    %v474 = vpop.permute.xlu0 %473
    %v475 = vsel %vm343, %v472, 0
    %v477 = vsel %vm343, %v474, 0
    %479 = vmatpush.xpose.msra.mxu0 0.0
    %480 = vmatpush.xpose.msra.mxu0 0.0
    %481 = vmatpush.xpose.msra.mxu0 0.0
    %482 = vmatpush.xpose.msra.mxu0 0.0
    %483 = vmatpush.xpose.msra.mxu0 0.0
    %484 = vmatpush.xpose.msra.mxu0 0.0
    %485 = vmatpush.xpose.msra.mxu0 0.0
    %486 = vmatpush.xpose.msra.mxu0 0.0
    %487 = vmatpush.xpose.msra.mxu0 0.0
    %488 = vmatpush.xpose.msra.mxu0 0.0
    %489 = vmatpush.xpose.msra.mxu0 0.0
    %490 = vmatpush.xpose.msra.mxu0 0.0
    %491 = vmatpush.xpose.msra.mxu0 0.0
    %492 = vmatpush.xpose.msra.mxu0 0.0
    %493 = vmatpush.xpose.msra.mxu0 0.0
    %494 = vmatpush.xpose.msra.mxu0 %v477
    %495 = vmatmul.f32.gmra.mxu0 %v475
    %v496 = vpop.f32.mrf.mxu0
    %v497 = vadd.f32 0.0, %v496
    %498 = vdwg.mxu0
    %499 = vrot.lane.b32.xlu0 %v338, 120
    %v500 = vpop.permute.xlu0 %499
    %501 = vrot.lane.b32.xlu0 %v338, 88
    %v502 = vpop.permute.xlu0 %501
    %v503 = vsel %vm343, %v500, 0
    %v505 = vsel %vm343, %v502, 0
    %507 = vmatpush.xpose.msra.mxu0 0.0
    %508 = vmatpush.xpose.msra.mxu0 0.0
    %509 = vmatpush.xpose.msra.mxu0 0.0
    %510 = vmatpush.xpose.msra.mxu0 0.0
    %511 = vmatpush.xpose.msra.mxu0 0.0
    %512 = vmatpush.xpose.msra.mxu0 0.0
    %513 = vmatpush.xpose.msra.mxu0 0.0
    %514 = vmatpush.xpose.msra.mxu0 0.0
    %515 = vmatpush.xpose.msra.mxu0 0.0
    %516 = vmatpush.xpose.msra.mxu0 0.0
    %517 = vmatpush.xpose.msra.mxu0 0.0
    %518 = vmatpush.xpose.msra.mxu0 0.0
    %519 = vmatpush.xpose.msra.mxu0 0.0
    %520 = vmatpush.xpose.msra.mxu0 0.0
    %521 = vmatpush.xpose.msra.mxu0 0.0
    %522 = vmatpush.xpose.msra.mxu0 %v505
    %523 = vmatmul.f32.gmra.mxu0 %v503
    %v524 = vpop.f32.mrf.mxu0
    %v525 = vadd.f32 0.0, %v524
    %526 = vdwg.mxu0
    %v527 = vmul.f32 %v497, 0.35355338
    %v528 = vmul.f32 %v525, 0.35355338
    %v529 = vsel %vm343, %v527, -inf
    %530 = vmax.xlane.f32.xlu0 %v529
    %v531 = vpop.xlane.xlu0 %530
    %v532 = vsel %vm343, %v528, -inf
    %533 = vmax.xlane.f32.xlu0 %v532
    %v534 = vpop.xlane.xlu0 %533
    %v535 = vsub.f32 %v527, %v531
    %v536 = vsub.f32 %v528, %v534
    %v537 = vmul.f32 %v535, 1.442695
    %v538 = vpow.pop %v537
    %v539 = vmul.f32 %v536, 1.442695
    %v540 = vpow.pop %v539
    %v541 = vsel %vm343, %v538, 0.0
    %542 = vadd.xlane.f32.xlu0 %v541
    %v543 = vpop.xlane.xlu0 %542
    %v544 = vsel %vm343, %v540, 0.0
    %545 = vadd.xlane.f32.xlu0 %v544
    %v546 = vpop.xlane.xlu0 %545
    %v547 = vrcp.pop %v543
    %v548 = vrcp.pop %v546
    %v549 = vmul.f32 %v538, %v547
    %v550 = vmul.f32 %v540, %v548
    %551 = vrot.lane.b32.xlu0 %v335, 56
    %v552 = vpop.permute.xlu0 %551
    %v555 = vsel %vm343, %v549, 0
    %557 = vmatpush.msra.mxu0 0.0
    %558 = vmatpush.msra.mxu0 0.0
    %559 = vmatpush.msra.mxu0 0.0
    %560 = vmatpush.msra.mxu0 0.0
    %561 = vmatpush.msra.mxu0 0.0
    %562 = vmatpush.msra.mxu0 0.0
    %563 = vmatpush.msra.mxu0 0.0
    %564 = vmatpush.msra.mxu0 0.0
    %565 = vmatpush.msra.mxu0 0.0
    %566 = vmatpush.msra.mxu0 0.0
    %567 = vmatpush.msra.mxu0 0.0
    %568 = vmatpush.msra.mxu0 0.0
    %569 = vmatpush.msra.mxu0 0.0
    %570 = vmatpush.msra.mxu0 0.0
    %571 = vmatpush.msra.mxu0 0.0
    %572 = vmatpush.msra.mxu0 %v552
    %573 = vmatmul.f32.gmra.mxu0 %v555
    %v574 = vpop.f32.mrf.mxu0
    %v575 = vadd.f32 0.0, %v574
    %576 = vdwg.mxu0
    %577 = vrot.lane.b32.xlu0 %v338, 56
    %v578 = vpop.permute.xlu0 %577
    %v581 = vsel %vm343, %v550, 0
    %583 = vmatpush.msra.mxu0 0.0
    %584 = vmatpush.msra.mxu0 0.0
    %585 = vmatpush.msra.mxu0 0.0
    %586 = vmatpush.msra.mxu0 0.0
    %587 = vmatpush.msra.mxu0 0.0
    %588 = vmatpush.msra.mxu0 0.0
    %589 = vmatpush.msra.mxu0 0.0
    %590 = vmatpush.msra.mxu0 0.0
    %591 = vmatpush.msra.mxu0 0.0
    %592 = vmatpush.msra.mxu0 0.0
    %593 = vmatpush.msra.mxu0 0.0
    %594 = vmatpush.msra.mxu0 0.0
    %595 = vmatpush.msra.mxu0 0.0
    %596 = vmatpush.msra.mxu0 0.0
    %597 = vmatpush.msra.mxu0 0.0
    %598 = vmatpush.msra.mxu0 %v578
    %599 = vmatmul.f32.gmra.mxu0 %v581
    %v600 = vpop.f32.mrf.mxu0
    %v601 = vadd.f32 0.0, %v600
    %602 = vdwg.mxu0
    %603 = vrot.lane.b32.xlu0 %v335, 112
    %v604 = vpop.permute.xlu0 %603
    %605 = vrot.lane.b32.xlu0 %v335, 80
    %v606 = vpop.permute.xlu0 %605
    %v607 = vsel %vm343, %v604, 0
    %v609 = vsel %vm343, %v606, 0
    %611 = vmatpush.xpose.msra.mxu0 0.0
    %612 = vmatpush.xpose.msra.mxu0 0.0
    %613 = vmatpush.xpose.msra.mxu0 0.0
    %614 = vmatpush.xpose.msra.mxu0 0.0
    %615 = vmatpush.xpose.msra.mxu0 0.0
    %616 = vmatpush.xpose.msra.mxu0 0.0
    %617 = vmatpush.xpose.msra.mxu0 0.0
    %618 = vmatpush.xpose.msra.mxu0 0.0
    %619 = vmatpush.xpose.msra.mxu0 0.0
    %620 = vmatpush.xpose.msra.mxu0 0.0
    %621 = vmatpush.xpose.msra.mxu0 0.0
    %622 = vmatpush.xpose.msra.mxu0 0.0
    %623 = vmatpush.xpose.msra.mxu0 0.0
    %624 = vmatpush.xpose.msra.mxu0 0.0
    %625 = vmatpush.xpose.msra.mxu0 0.0
    %626 = vmatpush.xpose.msra.mxu0 %v609
    %627 = vmatmul.f32.gmra.mxu0 %v607
    %v628 = vpop.f32.mrf.mxu0
    %v629 = vadd.f32 0.0, %v628
    %630 = vdwg.mxu0
    %631 = vrot.lane.b32.xlu0 %v338, 112
    %v632 = vpop.permute.xlu0 %631
    %633 = vrot.lane.b32.xlu0 %v338, 80
    %v634 = vpop.permute.xlu0 %633
    %v635 = vsel %vm343, %v632, 0
    %v637 = vsel %vm343, %v634, 0
    %639 = vmatpush.xpose.msra.mxu0 0.0
    %640 = vmatpush.xpose.msra.mxu0 0.0
    %641 = vmatpush.xpose.msra.mxu0 0.0
    %642 = vmatpush.xpose.msra.mxu0 0.0
    %643 = vmatpush.xpose.msra.mxu0 0.0
    %644 = vmatpush.xpose.msra.mxu0 0.0
    %645 = vmatpush.xpose.msra.mxu0 0.0
    %646 = vmatpush.xpose.msra.mxu0 0.0
    %647 = vmatpush.xpose.msra.mxu0 0.0
    %648 = vmatpush.xpose.msra.mxu0 0.0
    %649 = vmatpush.xpose.msra.mxu0 0.0
    %650 = vmatpush.xpose.msra.mxu0 0.0
    %651 = vmatpush.xpose.msra.mxu0 0.0
    %652 = vmatpush.xpose.msra.mxu0 0.0
    %653 = vmatpush.xpose.msra.mxu0 0.0
    %654 = vmatpush.xpose.msra.mxu0 %v637
    %655 = vmatmul.f32.gmra.mxu0 %v635
    %v656 = vpop.f32.mrf.mxu0
    %v657 = vadd.f32 0.0, %v656
    %658 = vdwg.mxu0
    %v659 = vmul.f32 %v629, 0.35355338
    %v660 = vmul.f32 %v657, 0.35355338
    %v661 = vsel %vm343, %v659, -inf
    %662 = vmax.xlane.f32.xlu0 %v661
    %v663 = vpop.xlane.xlu0 %662
    %v664 = vsel %vm343, %v660, -inf
    %665 = vmax.xlane.f32.xlu0 %v664
    %v666 = vpop.xlane.xlu0 %665
    %v667 = vsub.f32 %v659, %v663
    %v668 = vsub.f32 %v660, %v666
    %v669 = vmul.f32 %v667, 1.442695
    %v670 = vpow.pop %v669
    %v671 = vmul.f32 %v668, 1.442695
    %v672 = vpow.pop %v671
    %v673 = vsel %vm343, %v670, 0.0
    %674 = vadd.xlane.f32.xlu0 %v673
    %v675 = vpop.xlane.xlu0 %674
    %v676 = vsel %vm343, %v672, 0.0
    %677 = vadd.xlane.f32.xlu0 %v676
    %v678 = vpop.xlane.xlu0 %677
    %v679 = vrcp.pop %v675
    %v680 = vrcp.pop %v678
    %v681 = vmul.f32 %v670, %v679
    %v682 = vmul.f32 %v672, %v680
    %683 = vrot.lane.b32.xlu0 %v335, 48
    %v684 = vpop.permute.xlu0 %683
    %v687 = vsel %vm343, %v681, 0
    %689 = vmatpush.msra.mxu0 0.0
    %690 = vmatpush.msra.mxu0 0.0
    %691 = vmatpush.msra.mxu0 0.0
    %692 = vmatpush.msra.mxu0 0.0
    %693 = vmatpush.msra.mxu0 0.0
    %694 = vmatpush.msra.mxu0 0.0
    %695 = vmatpush.msra.mxu0 0.0
    %696 = vmatpush.msra.mxu0 0.0
    %697 = vmatpush.msra.mxu0 0.0
    %698 = vmatpush.msra.mxu0 0.0
    %699 = vmatpush.msra.mxu0 0.0
    %700 = vmatpush.msra.mxu0 0.0
    %701 = vmatpush.msra.mxu0 0.0
    %702 = vmatpush.msra.mxu0 0.0
    %703 = vmatpush.msra.mxu0 0.0
    %704 = vmatpush.msra.mxu0 %v684
    %705 = vmatmul.f32.gmra.mxu0 %v687
    %v706 = vpop.f32.mrf.mxu0
    %v707 = vadd.f32 0.0, %v706
    %708 = vdwg.mxu0
    %709 = vrot.lane.b32.xlu0 %v338, 48
    %v710 = vpop.permute.xlu0 %709
    %v713 = vsel %vm343, %v682, 0
    %715 = vmatpush.msra.mxu0 0.0
    %716 = vmatpush.msra.mxu0 0.0
    %717 = vmatpush.msra.mxu0 0.0
    %718 = vmatpush.msra.mxu0 0.0
    %719 = vmatpush.msra.mxu0 0.0
    %720 = vmatpush.msra.mxu0 0.0
    %721 = vmatpush.msra.mxu0 0.0
    %722 = vmatpush.msra.mxu0 0.0
    %723 = vmatpush.msra.mxu0 0.0
    %724 = vmatpush.msra.mxu0 0.0
    %725 = vmatpush.msra.mxu0 0.0
    %726 = vmatpush.msra.mxu0 0.0
    %727 = vmatpush.msra.mxu0 0.0
    %728 = vmatpush.msra.mxu0 0.0
    %729 = vmatpush.msra.mxu0 0.0
    %730 = vmatpush.msra.mxu0 %v710
    %731 = vmatmul.f32.gmra.mxu0 %v713
    %v732 = vpop.f32.mrf.mxu0
    %v733 = vadd.f32 0.0, %v732
    %734 = vdwg.mxu0
    %735 = vrot.lane.b32.xlu0 %v335, 104
    %v736 = vpop.permute.xlu0 %735
    %737 = vrot.lane.b32.xlu0 %v335, 72
    %v738 = vpop.permute.xlu0 %737
    %v739 = vsel %vm343, %v736, 0
    %v741 = vsel %vm343, %v738, 0
    %743 = vmatpush.xpose.msra.mxu0 0.0
    %744 = vmatpush.xpose.msra.mxu0 0.0
    %745 = vmatpush.xpose.msra.mxu0 0.0
    %746 = vmatpush.xpose.msra.mxu0 0.0
    %747 = vmatpush.xpose.msra.mxu0 0.0
    %748 = vmatpush.xpose.msra.mxu0 0.0
    %749 = vmatpush.xpose.msra.mxu0 0.0
    %750 = vmatpush.xpose.msra.mxu0 0.0
    %751 = vmatpush.xpose.msra.mxu0 0.0
    %752 = vmatpush.xpose.msra.mxu0 0.0
    %753 = vmatpush.xpose.msra.mxu0 0.0
    %754 = vmatpush.xpose.msra.mxu0 0.0
    %755 = vmatpush.xpose.msra.mxu0 0.0
    %756 = vmatpush.xpose.msra.mxu0 0.0
    %757 = vmatpush.xpose.msra.mxu0 0.0
    %758 = vmatpush.xpose.msra.mxu0 %v741
    %759 = vmatmul.f32.gmra.mxu0 %v739
    %v760 = vpop.f32.mrf.mxu0
    %v761 = vadd.f32 0.0, %v760
    %762 = vdwg.mxu0
    %763 = vrot.lane.b32.xlu0 %v338, 104
    %v764 = vpop.permute.xlu0 %763
    %765 = vrot.lane.b32.xlu0 %v338, 72
    %v766 = vpop.permute.xlu0 %765
    %v767 = vsel %vm343, %v764, 0
    %v769 = vsel %vm343, %v766, 0
    %771 = vmatpush.xpose.msra.mxu0 0.0
    %772 = vmatpush.xpose.msra.mxu0 0.0
    %773 = vmatpush.xpose.msra.mxu0 0.0
    %774 = vmatpush.xpose.msra.mxu0 0.0
    %775 = vmatpush.xpose.msra.mxu0 0.0
    %776 = vmatpush.xpose.msra.mxu0 0.0
    %777 = vmatpush.xpose.msra.mxu0 0.0
    %778 = vmatpush.xpose.msra.mxu0 0.0
    %779 = vmatpush.xpose.msra.mxu0 0.0
    %780 = vmatpush.xpose.msra.mxu0 0.0
    %781 = vmatpush.xpose.msra.mxu0 0.0
    %782 = vmatpush.xpose.msra.mxu0 0.0
    %783 = vmatpush.xpose.msra.mxu0 0.0
    %784 = vmatpush.xpose.msra.mxu0 0.0
    %785 = vmatpush.xpose.msra.mxu0 0.0
    %786 = vmatpush.xpose.msra.mxu0 %v769
    %787 = vmatmul.f32.gmra.mxu0 %v767
    %v788 = vpop.f32.mrf.mxu0
    %v789 = vadd.f32 0.0, %v788
    %790 = vdwg.mxu0
    %v791 = vmul.f32 %v761, 0.35355338
    %v792 = vmul.f32 %v789, 0.35355338
    %v793 = vsel %vm343, %v791, -inf
    %794 = vmax.xlane.f32.xlu0 %v793
    %v795 = vpop.xlane.xlu0 %794
    %v796 = vsel %vm343, %v792, -inf
    %797 = vmax.xlane.f32.xlu0 %v796
    %v798 = vpop.xlane.xlu0 %797
    %v799 = vsub.f32 %v791, %v795
    %v800 = vsub.f32 %v792, %v798
    %v801 = vmul.f32 %v799, 1.442695
    %v802 = vpow.pop %v801
    %v803 = vmul.f32 %v800, 1.442695
    %v804 = vpow.pop %v803
    %v805 = vsel %vm343, %v802, 0.0
    %806 = vadd.xlane.f32.xlu0 %v805
    %v807 = vpop.xlane.xlu0 %806
    %v808 = vsel %vm343, %v804, 0.0
    %809 = vadd.xlane.f32.xlu0 %v808
    %v810 = vpop.xlane.xlu0 %809
    %v811 = vrcp.pop %v807
    %v812 = vrcp.pop %v810
    %v813 = vmul.f32 %v802, %v811
    %v814 = vmul.f32 %v804, %v812
    %815 = vrot.lane.b32.xlu0 %v335, 40
    %v816 = vpop.permute.xlu0 %815
    %v819 = vsel %vm343, %v813, 0
    %821 = vmatpush.msra.mxu0 0.0
    %822 = vmatpush.msra.mxu0 0.0
    %823 = vmatpush.msra.mxu0 0.0
    %824 = vmatpush.msra.mxu0 0.0
    %825 = vmatpush.msra.mxu0 0.0
    %826 = vmatpush.msra.mxu0 0.0
    %827 = vmatpush.msra.mxu0 0.0
    %828 = vmatpush.msra.mxu0 0.0
    %829 = vmatpush.msra.mxu0 0.0
    %830 = vmatpush.msra.mxu0 0.0
    %831 = vmatpush.msra.mxu0 0.0
    %832 = vmatpush.msra.mxu0 0.0
    %833 = vmatpush.msra.mxu0 0.0
    %834 = vmatpush.msra.mxu0 0.0
    %835 = vmatpush.msra.mxu0 0.0
    %836 = vmatpush.msra.mxu0 %v816
    %837 = vmatmul.f32.gmra.mxu0 %v819
    %v838 = vpop.f32.mrf.mxu0
    %v839 = vadd.f32 0.0, %v838
    %840 = vdwg.mxu0
    %841 = vrot.lane.b32.xlu0 %v338, 40
    %v842 = vpop.permute.xlu0 %841
    %v845 = vsel %vm343, %v814, 0
    %847 = vmatpush.msra.mxu0 0.0
    %848 = vmatpush.msra.mxu0 0.0
    %849 = vmatpush.msra.mxu0 0.0
    %850 = vmatpush.msra.mxu0 0.0
    %851 = vmatpush.msra.mxu0 0.0
    %852 = vmatpush.msra.mxu0 0.0
    %853 = vmatpush.msra.mxu0 0.0
    %854 = vmatpush.msra.mxu0 0.0
    %855 = vmatpush.msra.mxu0 0.0
    %856 = vmatpush.msra.mxu0 0.0
    %857 = vmatpush.msra.mxu0 0.0
    %858 = vmatpush.msra.mxu0 0.0
    %859 = vmatpush.msra.mxu0 0.0
    %860 = vmatpush.msra.mxu0 0.0
    %861 = vmatpush.msra.mxu0 0.0
    %862 = vmatpush.msra.mxu0 %v842
    %863 = vmatmul.f32.gmra.mxu0 %v845
    %v864 = vpop.f32.mrf.mxu0
    %v865 = vadd.f32 0.0, %v864
    %866 = vdwg.mxu0
    %869 = vrot.lane.b32.xlu0 %v575, 8
    %v870 = vpop.permute.xlu0 %869
    %871 = vrot.lane.b32.xlu0 %v601, 8
    %v872 = vpop.permute.xlu0 %871
    %877 = vrot.lane.b32.xlu0 %v707, 16
    %v878 = vpop.permute.xlu0 %877
    %879 = vrot.lane.b32.xlu0 %v733, 16
    %v880 = vpop.permute.xlu0 %879
    %885 = vrot.lane.b32.xlu0 %v839, 24
    %v886 = vpop.permute.xlu0 %885
    %887 = vrot.lane.b32.xlu0 %v865, 24
    %v888 = vpop.permute.xlu0 %887
    %v891 = vsel %vm343, %v443, %v870
    %v892 = vsel %vm343, %v469, %v872
    %vm893 = vcmask 130048
    %v894 = vsel %vm893, %v891, %v878
    %v895 = vsel %vm893, %v892, %v880
    %vm896 = vcmask 195584
    %v897 = vsel %vm896, %v894, %v886
    %v898 = vsel %vm896, %v895, %v888
    %v899 = vld [vmem:[%s4] sm:$0xff]
    %v900 = vld [vmem:[%s4 + $0x8] sm:$0xff]
    %v901 = vld [vmem:[%s4 + $0x10] sm:$0xff]
    %v902 = vld [vmem:[%s4 + $0x18] sm:$0xff]
    %v903 = vld [vmem:[%s5] sm:$0x1]
    %v905 = vperm.slane %v903, 0
    %v908 = vsel %vm310, %v897, 0
    %v911 = vsel %vm310, %v898, 0
    %913 = vmatpush.msra.mxu0 0.0
    %914 = vmatpush.msra.mxu0 0.0
    %915 = vmatpush.msra.mxu0 0.0
    %916 = vmatpush.msra.mxu0 0.0
    %917 = vmatpush.msra.mxu0 0.0
    %918 = vmatpush.msra.mxu0 0.0
    %919 = vmatpush.msra.mxu0 0.0
    %920 = vmatpush.msra.mxu0 0.0
    %921 = vmatpush.msra.mxu0 0.0
    %922 = vmatpush.msra.mxu0 0.0
    %923 = vmatpush.msra.mxu0 0.0
    %924 = vmatpush.msra.mxu0 0.0
    %925 = vmatpush.msra.mxu0 %v902
    %926 = vmatpush.msra.mxu0 %v901
    %927 = vmatpush.msra.mxu0 %v900
    %928 = vmatpush.msra.mxu0 %v899
    %929 = vmatmul.f32.gmra.mxu0 %v908
    %v930 = vpop.f32.mrf.mxu0
    %v931 = vadd.f32 %v905, %v930
    %932 = vmatmul.f32.gmra.mxu0 %v911
    %v933 = vpop.f32.mrf.mxu0
    %v934 = vadd.f32 %v905, %v933
    %935 = vdwg.mxu0
    %v936 = vadd.f32 %v298, %v931
    %v937 = vadd.f32 %v299, %v934
    %v938 = vld [vmem:[#allocation12] sm:$0x1]
    %v939 = vld [vmem:[#allocation14] sm:$0x1]
    %v940 = vsel %vm310, %v936, 0.0
    %941 = vadd.xlane.f32.xlu0 %v940
    %v942 = vpop.xlane.xlu0 %941
    %v943 = vsel %vm310, %v937, 0.0
    %944 = vadd.xlane.f32.xlu0 %v943
    %v945 = vpop.xlane.xlu0 %944
    %v946 = vrcp.pop 32.0
    %v947 = vmul.f32 32.0, %v946
    %v948 = vsub.f32 1.0, %v947
    %v949 = vmul.f32 %v946, %v948
    %v950 = vadd.f32 %v946, %v949
    %vm951 = vweird.f32 %v946
    %v952 = vsel %vm951, %v946, %v950
    %v953 = vmul.f32 %v942, %v952
    %v954 = vmul.f32 %v945, %v952
    %v955 = vsub.f32 %v936, %v953
    %v956 = vsub.f32 %v937, %v954
    %v957 = vmul.f32 %v955, %v955
    %v958 = vmul.f32 %v956, %v956
    %v959 = vsel %vm310, %v957, 0.0
    %960 = vadd.xlane.f32.xlu0 %v959
    %v961 = vpop.xlane.xlu0 %960
    %v962 = vsel %vm310, %v958, 0.0
    %963 = vadd.xlane.f32.xlu0 %v962
    %v964 = vpop.xlane.xlu0 %963
    %v965 = vmul.f32 %v961, %v952
    %v966 = vmul.f32 %v964, %v952
    %v967 = vadd.f32 %v965, 1e-05
    %v968 = vadd.f32 %v966, 1e-05
    %v969 = vrsqrt.pop %v967
    %v970 = vmul.f32 %v969, %v967
    %v971 = vmul.f32 %v970, %v969
    %v972 = vmul.f32 0.5, %v971
    %v973 = vsub.f32 1.5, %v972
    %v974 = vmul.f32 %v969, %v973
    %vm975 = vweird.f32 %v967
    %vm976 = vweird.f32 %v969
    %vm977 = vmor %vm975, %vm976
    %v978 = vsel %vm977, %v969, %v974
    %v979 = vrsqrt.pop %v968
    %v980 = vmul.f32 %v979, %v968
    %v981 = vmul.f32 %v980, %v979
    %v982 = vmul.f32 0.5, %v981
    %v983 = vsub.f32 1.5, %v982
    %v984 = vmul.f32 %v979, %v983
    %vm985 = vweird.f32 %v968
    %vm986 = vweird.f32 %v979
    %vm987 = vmor %vm985, %vm986
    %v988 = vsel %vm987, %v979, %v984
    %v989 = vmul.f32 %v955, %v978
    %v990 = vmul.f32 %v956, %v988
    %v992 = vperm.slane %v938, 0
    %v994 = vmul.f32 %v989, %v992
    %v995 = vmul.f32 %v990, %v992
    %v997 = vperm.slane %v939, 0
    %v999 = vadd.f32 %v994, %v997
    %v1000 = vadd.f32 %v995, %v997
    %v1001 = vld [vmem:[%s6] sm:$0xff]
    %v1002 = vld [vmem:[%s6 + $0x8] sm:$0xff]
    %v1003 = vld [vmem:[%s6 + $0x10] sm:$0xff]
    %v1004 = vld [vmem:[%s6 + $0x18] sm:$0xff]
    %v1005 = vld [vmem:[%s7] sm:$0x1]
    %v1007 = vperm.slane %v1005, 0
    %v1010 = vsel %vm310, %v999, 0
    %v1013 = vsel %vm310, %v1000, 0
    %1015 = vmatpush.msra.mxu0 0.0
    %1016 = vmatpush.msra.mxu0 0.0
    %1017 = vmatpush.msra.mxu0 0.0
    %1018 = vmatpush.msra.mxu0 0.0
    %1019 = vmatpush.msra.mxu0 0.0
    %1020 = vmatpush.msra.mxu0 0.0
    %1021 = vmatpush.msra.mxu0 0.0
    %1022 = vmatpush.msra.mxu0 0.0
    %1023 = vmatpush.msra.mxu0 0.0
    %1024 = vmatpush.msra.mxu0 0.0
    %1025 = vmatpush.msra.mxu0 0.0
    %1026 = vmatpush.msra.mxu0 0.0
    %1027 = vmatpush.msra.mxu0 %v1004
    %1028 = vmatpush.msra.mxu0 %v1003
    %1029 = vmatpush.msra.mxu0 %v1002
    %1030 = vmatpush.msra.mxu0 %v1001
    %1031 = vmatmul.f32.gmra.mxu0 %v1010
    %v1032 = vpop.f32.mrf.mxu0
    %v1033 = vadd.f32 %v1007, %v1032
    %1034 = vmatmul.f32.gmra.mxu0 %v1013
    %v1035 = vpop.f32.mrf.mxu0
    %v1036 = vadd.f32 %v1007, %v1035
    %1037 = vdwg.mxu0
    %v1038 = vld [vmem:[#allocation3] sm:$0xff]
    %v1039 = vld [vmem:[#allocation3 + $0x8] sm:$0xff]
    %v1040 = vld [vmem:[#allocation3 + $0x10] sm:$0xff]
    %v1041 = vld [vmem:[#allocation3 + $0x18] sm:$0xff]
    %v1042 = vld [vmem:[%s9] sm:$0x1]
    %v1044 = vperm.slane %v1042, 0
    %v1047 = vsel %vm310, %v300, 0
    %v1050 = vsel %vm310, %v301, 0
    %1052 = vmatpush.msra.mxu0 0.0
    %1053 = vmatpush.msra.mxu0 0.0
    %1054 = vmatpush.msra.mxu0 0.0
    %1055 = vmatpush.msra.mxu0 0.0
    %1056 = vmatpush.msra.mxu0 0.0
    %1057 = vmatpush.msra.mxu0 0.0
    %1058 = vmatpush.msra.mxu0 0.0
    %1059 = vmatpush.msra.mxu0 0.0
    %1060 = vmatpush.msra.mxu0 0.0
    %1061 = vmatpush.msra.mxu0 0.0
    %1062 = vmatpush.msra.mxu0 0.0
    %1063 = vmatpush.msra.mxu0 0.0
    %1064 = vmatpush.msra.mxu0 %v1041
    %1065 = vmatpush.msra.mxu0 %v1040
    %1066 = vmatpush.msra.mxu0 %v1039
    %1067 = vmatpush.msra.mxu0 %v1038
    %1068 = vmatmul.f32.gmra.mxu0 %v1047
    %v1069 = vpop.f32.mrf.mxu0
    %v1070 = vadd.f32 %v1044, %v1069
    %1071 = vmatmul.f32.gmra.mxu0 %v1050
    %v1072 = vpop.f32.mrf.mxu0
    %v1073 = vadd.f32 %v1044, %v1072
    %1074 = vdwg.mxu0
    %v1076 = vsel %vm343, %v1033, 0
    %v1079 = vsel %vm343, %v1070, 0
    %1081 = vmatpush.xpose.msra.mxu0 0.0
    %1082 = vmatpush.xpose.msra.mxu0 0.0
    %1083 = vmatpush.xpose.msra.mxu0 0.0
    %1084 = vmatpush.xpose.msra.mxu0 0.0
    %1085 = vmatpush.xpose.msra.mxu0 0.0
    %1086 = vmatpush.xpose.msra.mxu0 0.0
    %1087 = vmatpush.xpose.msra.mxu0 0.0
    %1088 = vmatpush.xpose.msra.mxu0 0.0
    %1089 = vmatpush.xpose.msra.mxu0 0.0
    %1090 = vmatpush.xpose.msra.mxu0 0.0
    %1091 = vmatpush.xpose.msra.mxu0 0.0
    %1092 = vmatpush.xpose.msra.mxu0 0.0
    %1093 = vmatpush.xpose.msra.mxu0 0.0
    %1094 = vmatpush.xpose.msra.mxu0 0.0
    %1095 = vmatpush.xpose.msra.mxu0 0.0
    %1096 = vmatpush.xpose.msra.mxu0 %v1079
    %1097 = vmatmul.f32.gmra.mxu0 %v1076
    %v1098 = vpop.f32.mrf.mxu0
    %v1099 = vadd.f32 0.0, %v1098
    %1100 = vdwg.mxu0
    %v1102 = vsel %vm343, %v1036, 0
    %v1105 = vsel %vm343, %v1073, 0
    %1107 = vmatpush.xpose.msra.mxu0 0.0
    %1108 = vmatpush.xpose.msra.mxu0 0.0
    %1109 = vmatpush.xpose.msra.mxu0 0.0
    %1110 = vmatpush.xpose.msra.mxu0 0.0
    %1111 = vmatpush.xpose.msra.mxu0 0.0
    %1112 = vmatpush.xpose.msra.mxu0 0.0
    %1113 = vmatpush.xpose.msra.mxu0 0.0
    %1114 = vmatpush.xpose.msra.mxu0 0.0
    %1115 = vmatpush.xpose.msra.mxu0 0.0
    %1116 = vmatpush.xpose.msra.mxu0 0.0
    %1117 = vmatpush.xpose.msra.mxu0 0.0
    %1118 = vmatpush.xpose.msra.mxu0 0.0
    %1119 = vmatpush.xpose.msra.mxu0 0.0
    %1120 = vmatpush.xpose.msra.mxu0 0.0
    %1121 = vmatpush.xpose.msra.mxu0 0.0
    %1122 = vmatpush.xpose.msra.mxu0 %v1105
    %1123 = vmatmul.f32.gmra.mxu0 %v1102
    %v1124 = vpop.f32.mrf.mxu0
    %v1125 = vadd.f32 0.0, %v1124
    %1126 = vdwg.mxu0
    %v1127 = vmul.f32 %v1099, 0.35355338
    %v1128 = vmul.f32 %v1125, 0.35355338
    %v1129 = vsel %vm343, %v1127, -inf
    %1130 = vmax.xlane.f32.xlu0 %v1129
    %v1131 = vpop.xlane.xlu0 %1130
    %v1132 = vsel %vm343, %v1128, -inf
    %1133 = vmax.xlane.f32.xlu0 %v1132
    %v1134 = vpop.xlane.xlu0 %1133
    %v1135 = vsub.f32 %v1127, %v1131
    %v1136 = vsub.f32 %v1128, %v1134
    %v1137 = vmul.f32 %v1135, 1.442695
    %v1138 = vpow.pop %v1137
    %v1139 = vmul.f32 %v1136, 1.442695
    %v1140 = vpow.pop %v1139
    %v1141 = vsel %vm343, %v1138, 0.0
    %1142 = vadd.xlane.f32.xlu0 %v1141
    %v1143 = vpop.xlane.xlu0 %1142
    %v1144 = vsel %vm343, %v1140, 0.0
    %1145 = vadd.xlane.f32.xlu0 %v1144
    %v1146 = vpop.xlane.xlu0 %1145
    %v1147 = vrcp.pop %v1143
    %v1148 = vrcp.pop %v1146
    %v1149 = vmul.f32 %v1138, %v1147
    %v1150 = vmul.f32 %v1140, %v1148
    %1151 = vrot.lane.b32.xlu0 %v1070, 96
    %v1152 = vpop.permute.xlu0 %1151
    %v1155 = vsel %vm343, %v1149, 0
    %1157 = vmatpush.msra.mxu0 0.0
    %1158 = vmatpush.msra.mxu0 0.0
    %1159 = vmatpush.msra.mxu0 0.0
    %1160 = vmatpush.msra.mxu0 0.0
    %1161 = vmatpush.msra.mxu0 0.0
    %1162 = vmatpush.msra.mxu0 0.0
    %1163 = vmatpush.msra.mxu0 0.0
    %1164 = vmatpush.msra.mxu0 0.0
    %1165 = vmatpush.msra.mxu0 0.0
    %1166 = vmatpush.msra.mxu0 0.0
    %1167 = vmatpush.msra.mxu0 0.0
    %1168 = vmatpush.msra.mxu0 0.0
    %1169 = vmatpush.msra.mxu0 0.0
    %1170 = vmatpush.msra.mxu0 0.0
    %1171 = vmatpush.msra.mxu0 0.0
    %1172 = vmatpush.msra.mxu0 %v1152
    %1173 = vmatmul.f32.gmra.mxu0 %v1155
    %v1174 = vpop.f32.mrf.mxu0
    %v1175 = vadd.f32 0.0, %v1174
    %1176 = vdwg.mxu0
    %1177 = vrot.lane.b32.xlu0 %v1073, 96
    %v1178 = vpop.permute.xlu0 %1177
    %v1181 = vsel %vm343, %v1150, 0
    %1183 = vmatpush.msra.mxu0 0.0
    %1184 = vmatpush.msra.mxu0 0.0
    %1185 = vmatpush.msra.mxu0 0.0
    %1186 = vmatpush.msra.mxu0 0.0
    %1187 = vmatpush.msra.mxu0 0.0
    %1188 = vmatpush.msra.mxu0 0.0
    %1189 = vmatpush.msra.mxu0 0.0
    %1190 = vmatpush.msra.mxu0 0.0
    %1191 = vmatpush.msra.mxu0 0.0
    %1192 = vmatpush.msra.mxu0 0.0
    %1193 = vmatpush.msra.mxu0 0.0
    %1194 = vmatpush.msra.mxu0 0.0
    %1195 = vmatpush.msra.mxu0 0.0
    %1196 = vmatpush.msra.mxu0 0.0
    %1197 = vmatpush.msra.mxu0 0.0
    %1198 = vmatpush.msra.mxu0 %v1178
    %1199 = vmatmul.f32.gmra.mxu0 %v1181
    %v1200 = vpop.f32.mrf.mxu0
    %v1201 = vadd.f32 0.0, %v1200
    %1202 = vdwg.mxu0
    %1203 = vrot.lane.b32.xlu0 %v1033, 120
    %v1204 = vpop.permute.xlu0 %1203
    %1205 = vrot.lane.b32.xlu0 %v1070, 120
    %v1206 = vpop.permute.xlu0 %1205
    %v1207 = vsel %vm343, %v1204, 0
    %v1209 = vsel %vm343, %v1206, 0
    %1211 = vmatpush.xpose.msra.mxu0 0.0
    %1212 = vmatpush.xpose.msra.mxu0 0.0
    %1213 = vmatpush.xpose.msra.mxu0 0.0
    %1214 = vmatpush.xpose.msra.mxu0 0.0
    %1215 = vmatpush.xpose.msra.mxu0 0.0
    %1216 = vmatpush.xpose.msra.mxu0 0.0
    %1217 = vmatpush.xpose.msra.mxu0 0.0
    %1218 = vmatpush.xpose.msra.mxu0 0.0
    %1219 = vmatpush.xpose.msra.mxu0 0.0
    %1220 = vmatpush.xpose.msra.mxu0 0.0
    %1221 = vmatpush.xpose.msra.mxu0 0.0
    %1222 = vmatpush.xpose.msra.mxu0 0.0
    %1223 = vmatpush.xpose.msra.mxu0 0.0
    %1224 = vmatpush.xpose.msra.mxu0 0.0
    %1225 = vmatpush.xpose.msra.mxu0 0.0
    %1226 = vmatpush.xpose.msra.mxu0 %v1209
    %1227 = vmatmul.f32.gmra.mxu0 %v1207
    %v1228 = vpop.f32.mrf.mxu0
    %v1229 = vadd.f32 0.0, %v1228
    %1230 = vdwg.mxu0
    %1231 = vrot.lane.b32.xlu0 %v1036, 120
    %v1232 = vpop.permute.xlu0 %1231
    %1233 = vrot.lane.b32.xlu0 %v1073, 120
    %v1234 = vpop.permute.xlu0 %1233
    %v1235 = vsel %vm343, %v1232, 0
    %v1237 = vsel %vm343, %v1234, 0
    %1239 = vmatpush.xpose.msra.mxu0 0.0
    %1240 = vmatpush.xpose.msra.mxu0 0.0
    %1241 = vmatpush.xpose.msra.mxu0 0.0
    %1242 = vmatpush.xpose.msra.mxu0 0.0
    %1243 = vmatpush.xpose.msra.mxu0 0.0
    %1244 = vmatpush.xpose.msra.mxu0 0.0
    %1245 = vmatpush.xpose.msra.mxu0 0.0
    %1246 = vmatpush.xpose.msra.mxu0 0.0
    %1247 = vmatpush.xpose.msra.mxu0 0.0
    %1248 = vmatpush.xpose.msra.mxu0 0.0
    %1249 = vmatpush.xpose.msra.mxu0 0.0
    %1250 = vmatpush.xpose.msra.mxu0 0.0
    %1251 = vmatpush.xpose.msra.mxu0 0.0
    %1252 = vmatpush.xpose.msra.mxu0 0.0
    %1253 = vmatpush.xpose.msra.mxu0 0.0
    %1254 = vmatpush.xpose.msra.mxu0 %v1237
    %1255 = vmatmul.f32.gmra.mxu0 %v1235
    %v1256 = vpop.f32.mrf.mxu0
    %v1257 = vadd.f32 0.0, %v1256
    %1258 = vdwg.mxu0
    %v1259 = vmul.f32 %v1229, 0.35355338
    %v1260 = vmul.f32 %v1257, 0.35355338
    %v1261 = vsel %vm343, %v1259, -inf
    %1262 = vmax.xlane.f32.xlu0 %v1261
    %v1263 = vpop.xlane.xlu0 %1262
    %v1264 = vsel %vm343, %v1260, -inf
    %1265 = vmax.xlane.f32.xlu0 %v1264
    %v1266 = vpop.xlane.xlu0 %1265
    %v1267 = vsub.f32 %v1259, %v1263
    %v1268 = vsub.f32 %v1260, %v1266
    %v1269 = vmul.f32 %v1267, 1.442695
    %v1270 = vpow.pop %v1269
    %v1271 = vmul.f32 %v1268, 1.442695
    %v1272 = vpow.pop %v1271
    %v1273 = vsel %vm343, %v1270, 0.0
    %1274 = vadd.xlane.f32.xlu0 %v1273
    %v1275 = vpop.xlane.xlu0 %1274
    %v1276 = vsel %vm343, %v1272, 0.0
    %1277 = vadd.xlane.f32.xlu0 %v1276
    %v1278 = vpop.xlane.xlu0 %1277
    %v1279 = vrcp.pop %v1275
    %v1280 = vrcp.pop %v1278
    %v1281 = vmul.f32 %v1270, %v1279
    %v1282 = vmul.f32 %v1272, %v1280
    %1283 = vrot.lane.b32.xlu0 %v1070, 88
    %v1284 = vpop.permute.xlu0 %1283
    %v1287 = vsel %vm343, %v1281, 0
    %1289 = vmatpush.msra.mxu0 0.0
    %1290 = vmatpush.msra.mxu0 0.0
    %1291 = vmatpush.msra.mxu0 0.0
    %1292 = vmatpush.msra.mxu0 0.0
    %1293 = vmatpush.msra.mxu0 0.0
    %1294 = vmatpush.msra.mxu0 0.0
    %1295 = vmatpush.msra.mxu0 0.0
    %1296 = vmatpush.msra.mxu0 0.0
    %1297 = vmatpush.msra.mxu0 0.0
    %1298 = vmatpush.msra.mxu0 0.0
    %1299 = vmatpush.msra.mxu0 0.0
    %1300 = vmatpush.msra.mxu0 0.0
    %1301 = vmatpush.msra.mxu0 0.0
    %1302 = vmatpush.msra.mxu0 0.0
    %1303 = vmatpush.msra.mxu0 0.0
    %1304 = vmatpush.msra.mxu0 %v1284
    %1305 = vmatmul.f32.gmra.mxu0 %v1287
    %v1306 = vpop.f32.mrf.mxu0
    %v1307 = vadd.f32 0.0, %v1306
    %1308 = vdwg.mxu0
    %1309 = vrot.lane.b32.xlu0 %v1073, 88
    %v1310 = vpop.permute.xlu0 %1309
    %v1313 = vsel %vm343, %v1282, 0
    %1315 = vmatpush.msra.mxu0 0.0
    %1316 = vmatpush.msra.mxu0 0.0
    %1317 = vmatpush.msra.mxu0 0.0
    %1318 = vmatpush.msra.mxu0 0.0
    %1319 = vmatpush.msra.mxu0 0.0
    %1320 = vmatpush.msra.mxu0 0.0
    %1321 = vmatpush.msra.mxu0 0.0
    %1322 = vmatpush.msra.mxu0 0.0
    %1323 = vmatpush.msra.mxu0 0.0
    %1324 = vmatpush.msra.mxu0 0.0
    %1325 = vmatpush.msra.mxu0 0.0
    %1326 = vmatpush.msra.mxu0 0.0
    %1327 = vmatpush.msra.mxu0 0.0
    %1328 = vmatpush.msra.mxu0 0.0
    %1329 = vmatpush.msra.mxu0 0.0
    %1330 = vmatpush.msra.mxu0 %v1310
    %1331 = vmatmul.f32.gmra.mxu0 %v1313
    %v1332 = vpop.f32.mrf.mxu0
    %v1333 = vadd.f32 0.0, %v1332
    %1334 = vdwg.mxu0
    %1335 = vrot.lane.b32.xlu0 %v1033, 112
    %v1336 = vpop.permute.xlu0 %1335
    %1337 = vrot.lane.b32.xlu0 %v1070, 112
    %v1338 = vpop.permute.xlu0 %1337
    %v1339 = vsel %vm343, %v1336, 0
    %v1341 = vsel %vm343, %v1338, 0
    %1343 = vmatpush.xpose.msra.mxu0 0.0
    %1344 = vmatpush.xpose.msra.mxu0 0.0
    %1345 = vmatpush.xpose.msra.mxu0 0.0
    %1346 = vmatpush.xpose.msra.mxu0 0.0
    %1347 = vmatpush.xpose.msra.mxu0 0.0
    %1348 = vmatpush.xpose.msra.mxu0 0.0
    %1349 = vmatpush.xpose.msra.mxu0 0.0
    %1350 = vmatpush.xpose.msra.mxu0 0.0
    %1351 = vmatpush.xpose.msra.mxu0 0.0
    %1352 = vmatpush.xpose.msra.mxu0 0.0
    %1353 = vmatpush.xpose.msra.mxu0 0.0
    %1354 = vmatpush.xpose.msra.mxu0 0.0
    %1355 = vmatpush.xpose.msra.mxu0 0.0
    %1356 = vmatpush.xpose.msra.mxu0 0.0
    %1357 = vmatpush.xpose.msra.mxu0 0.0
    %1358 = vmatpush.xpose.msra.mxu0 %v1341
    %1359 = vmatmul.f32.gmra.mxu0 %v1339
    %v1360 = vpop.f32.mrf.mxu0
    %v1361 = vadd.f32 0.0, %v1360
    %1362 = vdwg.mxu0
    %1363 = vrot.lane.b32.xlu0 %v1036, 112
    %v1364 = vpop.permute.xlu0 %1363
    %1365 = vrot.lane.b32.xlu0 %v1073, 112
    %v1366 = vpop.permute.xlu0 %1365
    %v1367 = vsel %vm343, %v1364, 0
    %v1369 = vsel %vm343, %v1366, 0
    %1371 = vmatpush.xpose.msra.mxu0 0.0
    %1372 = vmatpush.xpose.msra.mxu0 0.0
    %1373 = vmatpush.xpose.msra.mxu0 0.0
    %1374 = vmatpush.xpose.msra.mxu0 0.0
    %1375 = vmatpush.xpose.msra.mxu0 0.0
    %1376 = vmatpush.xpose.msra.mxu0 0.0
    %1377 = vmatpush.xpose.msra.mxu0 0.0
    %1378 = vmatpush.xpose.msra.mxu0 0.0
    %1379 = vmatpush.xpose.msra.mxu0 0.0
    %1380 = vmatpush.xpose.msra.mxu0 0.0
    %1381 = vmatpush.xpose.msra.mxu0 0.0
    %1382 = vmatpush.xpose.msra.mxu0 0.0
    %1383 = vmatpush.xpose.msra.mxu0 0.0
    %1384 = vmatpush.xpose.msra.mxu0 0.0
    %1385 = vmatpush.xpose.msra.mxu0 0.0
    %1386 = vmatpush.xpose.msra.mxu0 %v1369
    %1387 = vmatmul.f32.gmra.mxu0 %v1367
    %v1388 = vpop.f32.mrf.mxu0
    %v1389 = vadd.f32 0.0, %v1388
    %1390 = vdwg.mxu0
    %v1391 = vmul.f32 %v1361, 0.35355338
    %v1392 = vmul.f32 %v1389, 0.35355338
    %v1393 = vsel %vm343, %v1391, -inf
    %1394 = vmax.xlane.f32.xlu0 %v1393
    %v1395 = vpop.xlane.xlu0 %1394
    %v1396 = vsel %vm343, %v1392, -inf
    %1397 = vmax.xlane.f32.xlu0 %v1396
    %v1398 = vpop.xlane.xlu0 %1397
    %v1399 = vsub.f32 %v1391, %v1395
    %v1400 = vsub.f32 %v1392, %v1398
    %v1401 = vmul.f32 %v1399, 1.442695
    %v1402 = vpow.pop %v1401
    %v1403 = vmul.f32 %v1400, 1.442695
    %v1404 = vpow.pop %v1403
    %v1405 = vsel %vm343, %v1402, 0.0
    %1406 = vadd.xlane.f32.xlu0 %v1405
    %v1407 = vpop.xlane.xlu0 %1406
    %v1408 = vsel %vm343, %v1404, 0.0
    %1409 = vadd.xlane.f32.xlu0 %v1408
    %v1410 = vpop.xlane.xlu0 %1409
    %v1411 = vrcp.pop %v1407
    %v1412 = vrcp.pop %v1410
    %v1413 = vmul.f32 %v1402, %v1411
    %v1414 = vmul.f32 %v1404, %v1412
    %1415 = vrot.lane.b32.xlu0 %v1070, 80
    %v1416 = vpop.permute.xlu0 %1415
    %v1419 = vsel %vm343, %v1413, 0
    %1421 = vmatpush.msra.mxu0 0.0
    %1422 = vmatpush.msra.mxu0 0.0
    %1423 = vmatpush.msra.mxu0 0.0
    %1424 = vmatpush.msra.mxu0 0.0
    %1425 = vmatpush.msra.mxu0 0.0
    %1426 = vmatpush.msra.mxu0 0.0
    %1427 = vmatpush.msra.mxu0 0.0
    %1428 = vmatpush.msra.mxu0 0.0
    %1429 = vmatpush.msra.mxu0 0.0
    %1430 = vmatpush.msra.mxu0 0.0
    %1431 = vmatpush.msra.mxu0 0.0
    %1432 = vmatpush.msra.mxu0 0.0
    %1433 = vmatpush.msra.mxu0 0.0
    %1434 = vmatpush.msra.mxu0 0.0
    %1435 = vmatpush.msra.mxu0 0.0
    %1436 = vmatpush.msra.mxu0 %v1416
    %1437 = vmatmul.f32.gmra.mxu0 %v1419
    %v1438 = vpop.f32.mrf.mxu0
    %v1439 = vadd.f32 0.0, %v1438
    %1440 = vdwg.mxu0
    %1441 = vrot.lane.b32.xlu0 %v1073, 80
    %v1442 = vpop.permute.xlu0 %1441
    %v1445 = vsel %vm343, %v1414, 0
    %1447 = vmatpush.msra.mxu0 0.0
    %1448 = vmatpush.msra.mxu0 0.0
    %1449 = vmatpush.msra.mxu0 0.0
    %1450 = vmatpush.msra.mxu0 0.0
    %1451 = vmatpush.msra.mxu0 0.0
    %1452 = vmatpush.msra.mxu0 0.0
    %1453 = vmatpush.msra.mxu0 0.0
    %1454 = vmatpush.msra.mxu0 0.0
    %1455 = vmatpush.msra.mxu0 0.0
    %1456 = vmatpush.msra.mxu0 0.0
    %1457 = vmatpush.msra.mxu0 0.0
    %1458 = vmatpush.msra.mxu0 0.0
    %1459 = vmatpush.msra.mxu0 0.0
    %1460 = vmatpush.msra.mxu0 0.0
    %1461 = vmatpush.msra.mxu0 0.0
    %1462 = vmatpush.msra.mxu0 %v1442
    %1463 = vmatmul.f32.gmra.mxu0 %v1445
    %v1464 = vpop.f32.mrf.mxu0
    %v1465 = vadd.f32 0.0, %v1464
    %1466 = vdwg.mxu0
    %1467 = vrot.lane.b32.xlu0 %v1033, 104
    %v1468 = vpop.permute.xlu0 %1467
    %1469 = vrot.lane.b32.xlu0 %v1070, 104
    %v1470 = vpop.permute.xlu0 %1469
    %v1471 = vsel %vm343, %v1468, 0
    %v1473 = vsel %vm343, %v1470, 0
    %1475 = vmatpush.xpose.msra.mxu0 0.0
    %1476 = vmatpush.xpose.msra.mxu0 0.0
    %1477 = vmatpush.xpose.msra.mxu0 0.0
    %1478 = vmatpush.xpose.msra.mxu0 0.0
    %1479 = vmatpush.xpose.msra.mxu0 0.0
    %1480 = vmatpush.xpose.msra.mxu0 0.0
    %1481 = vmatpush.xpose.msra.mxu0 0.0
    %1482 = vmatpush.xpose.msra.mxu0 0.0
    %1483 = vmatpush.xpose.msra.mxu0 0.0
    %1484 = vmatpush.xpose.msra.mxu0 0.0
    %1485 = vmatpush.xpose.msra.mxu0 0.0
    %1486 = vmatpush.xpose.msra.mxu0 0.0
    %1487 = vmatpush.xpose.msra.mxu0 0.0
    %1488 = vmatpush.xpose.msra.mxu0 0.0
    %1489 = vmatpush.xpose.msra.mxu0 0.0
    %1490 = vmatpush.xpose.msra.mxu0 %v1473
    %1491 = vmatmul.f32.gmra.mxu0 %v1471
    %v1492 = vpop.f32.mrf.mxu0
    %v1493 = vadd.f32 0.0, %v1492
    %1494 = vdwg.mxu0
    %1495 = vrot.lane.b32.xlu0 %v1036, 104
    %v1496 = vpop.permute.xlu0 %1495
    %1497 = vrot.lane.b32.xlu0 %v1073, 104
    %v1498 = vpop.permute.xlu0 %1497
    %v1499 = vsel %vm343, %v1496, 0
    %v1501 = vsel %vm343, %v1498, 0
    %1503 = vmatpush.xpose.msra.mxu0 0.0
    %1504 = vmatpush.xpose.msra.mxu0 0.0
    %1505 = vmatpush.xpose.msra.mxu0 0.0
    %1506 = vmatpush.xpose.msra.mxu0 0.0
    %1507 = vmatpush.xpose.msra.mxu0 0.0
    %1508 = vmatpush.xpose.msra.mxu0 0.0
    %1509 = vmatpush.xpose.msra.mxu0 0.0
    %1510 = vmatpush.xpose.msra.mxu0 0.0
    %1511 = vmatpush.xpose.msra.mxu0 0.0
    %1512 = vmatpush.xpose.msra.mxu0 0.0
    %1513 = vmatpush.xpose.msra.mxu0 0.0
    %1514 = vmatpush.xpose.msra.mxu0 0.0
    %1515 = vmatpush.xpose.msra.mxu0 0.0
    %1516 = vmatpush.xpose.msra.mxu0 0.0
    %1517 = vmatpush.xpose.msra.mxu0 0.0
    %1518 = vmatpush.xpose.msra.mxu0 %v1501
    %1519 = vmatmul.f32.gmra.mxu0 %v1499
    %v1520 = vpop.f32.mrf.mxu0
    %v1521 = vadd.f32 0.0, %v1520
    %1522 = vdwg.mxu0
    %v1523 = vmul.f32 %v1493, 0.35355338
    %v1524 = vmul.f32 %v1521, 0.35355338
    %v1525 = vsel %vm343, %v1523, -inf
    %1526 = vmax.xlane.f32.xlu0 %v1525
    %v1527 = vpop.xlane.xlu0 %1526
    %v1528 = vsel %vm343, %v1524, -inf
    %1529 = vmax.xlane.f32.xlu0 %v1528
    %v1530 = vpop.xlane.xlu0 %1529
    %v1531 = vsub.f32 %v1523, %v1527
    %v1532 = vsub.f32 %v1524, %v1530
    %v1533 = vmul.f32 %v1531, 1.442695
    %v1534 = vpow.pop %v1533
    %v1535 = vmul.f32 %v1532, 1.442695
    %v1536 = vpow.pop %v1535
    %v1537 = vsel %vm343, %v1534, 0.0
    %1538 = vadd.xlane.f32.xlu0 %v1537
    %v1539 = vpop.xlane.xlu0 %1538
    %v1540 = vsel %vm343, %v1536, 0.0
    %1541 = vadd.xlane.f32.xlu0 %v1540
    %v1542 = vpop.xlane.xlu0 %1541
    %v1543 = vrcp.pop %v1539
    %v1544 = vrcp.pop %v1542
    %v1545 = vmul.f32 %v1534, %v1543
    %v1546 = vmul.f32 %v1536, %v1544
    %1547 = vrot.lane.b32.xlu0 %v1070, 72
    %v1548 = vpop.permute.xlu0 %1547
    %v1551 = vsel %vm343, %v1545, 0
    %1553 = vmatpush.msra.mxu0 0.0
    %1554 = vmatpush.msra.mxu0 0.0
    %1555 = vmatpush.msra.mxu0 0.0
    %1556 = vmatpush.msra.mxu0 0.0
    %1557 = vmatpush.msra.mxu0 0.0
    %1558 = vmatpush.msra.mxu0 0.0
    %1559 = vmatpush.msra.mxu0 0.0
    %1560 = vmatpush.msra.mxu0 0.0
    %1561 = vmatpush.msra.mxu0 0.0
    %1562 = vmatpush.msra.mxu0 0.0
    %1563 = vmatpush.msra.mxu0 0.0
    %1564 = vmatpush.msra.mxu0 0.0
    %1565 = vmatpush.msra.mxu0 0.0
    %1566 = vmatpush.msra.mxu0 0.0
    %1567 = vmatpush.msra.mxu0 0.0
    %1568 = vmatpush.msra.mxu0 %v1548
    %1569 = vmatmul.f32.gmra.mxu0 %v1551
    %v1570 = vpop.f32.mrf.mxu0
    %v1571 = vadd.f32 0.0, %v1570
    %1572 = vdwg.mxu0
    %1573 = vrot.lane.b32.xlu0 %v1073, 72
    %v1574 = vpop.permute.xlu0 %1573
    %v1577 = vsel %vm343, %v1546, 0
    %1579 = vmatpush.msra.mxu0 0.0
    %1580 = vmatpush.msra.mxu0 0.0
    %1581 = vmatpush.msra.mxu0 0.0
    %1582 = vmatpush.msra.mxu0 0.0
    %1583 = vmatpush.msra.mxu0 0.0
    %1584 = vmatpush.msra.mxu0 0.0
    %1585 = vmatpush.msra.mxu0 0.0
    %1586 = vmatpush.msra.mxu0 0.0
    %1587 = vmatpush.msra.mxu0 0.0
    %1588 = vmatpush.msra.mxu0 0.0
    %1589 = vmatpush.msra.mxu0 0.0
    %1590 = vmatpush.msra.mxu0 0.0
    %1591 = vmatpush.msra.mxu0 0.0
    %1592 = vmatpush.msra.mxu0 0.0
    %1593 = vmatpush.msra.mxu0 0.0
    %1594 = vmatpush.msra.mxu0 %v1574
    %1595 = vmatmul.f32.gmra.mxu0 %v1577
    %v1596 = vpop.f32.mrf.mxu0
    %v1597 = vadd.f32 0.0, %v1596
    %1598 = vdwg.mxu0
    %1601 = vrot.lane.b32.xlu0 %v1307, 8
    %v1602 = vpop.permute.xlu0 %1601
    %1603 = vrot.lane.b32.xlu0 %v1333, 8
    %v1604 = vpop.permute.xlu0 %1603
    %1609 = vrot.lane.b32.xlu0 %v1439, 16
    %v1610 = vpop.permute.xlu0 %1609
    %1611 = vrot.lane.b32.xlu0 %v1465, 16
    %v1612 = vpop.permute.xlu0 %1611
    %1617 = vrot.lane.b32.xlu0 %v1571, 24
    %v1618 = vpop.permute.xlu0 %1617
    %1619 = vrot.lane.b32.xlu0 %v1597, 24
    %v1620 = vpop.permute.xlu0 %1619
    %v1623 = vsel %vm343, %v1175, %v1602
    %v1624 = vsel %vm343, %v1201, %v1604
    %v1625 = vsel %vm893, %v1623, %v1610
    %v1626 = vsel %vm893, %v1624, %v1612
    %v1627 = vsel %vm896, %v1625, %v1618
    %v1628 = vsel %vm896, %v1626, %v1620
    %v1629 = vld [vmem:[#allocation6] sm:$0xff]
    %v1630 = vld [vmem:[#allocation6 + $0x8] sm:$0xff]
    %v1631 = vld [vmem:[#allocation6 + $0x10] sm:$0xff]
    %v1632 = vld [vmem:[#allocation6 + $0x18] sm:$0xff]
    %v1633 = vld [vmem:[%s11] sm:$0x1]
    %v1635 = vperm.slane %v1633, 0
    %v1638 = vsel %vm310, %v1627, 0
    %v1641 = vsel %vm310, %v1628, 0
    %1643 = vmatpush.msra.mxu0 0.0
    %1644 = vmatpush.msra.mxu0 0.0
    %1645 = vmatpush.msra.mxu0 0.0
    %1646 = vmatpush.msra.mxu0 0.0
    %1647 = vmatpush.msra.mxu0 0.0
    %1648 = vmatpush.msra.mxu0 0.0
    %1649 = vmatpush.msra.mxu0 0.0
    %1650 = vmatpush.msra.mxu0 0.0
    %1651 = vmatpush.msra.mxu0 0.0
    %1652 = vmatpush.msra.mxu0 0.0
    %1653 = vmatpush.msra.mxu0 0.0
    %1654 = vmatpush.msra.mxu0 0.0
    %1655 = vmatpush.msra.mxu0 %v1632
    %1656 = vmatpush.msra.mxu0 %v1631
    %1657 = vmatpush.msra.mxu0 %v1630
    %1658 = vmatpush.msra.mxu0 %v1629
    %1659 = vmatmul.f32.gmra.mxu0 %v1638
    %v1660 = vpop.f32.mrf.mxu0
    %v1661 = vadd.f32 %v1635, %v1660
    %1662 = vmatmul.f32.gmra.mxu0 %v1641
    %v1663 = vpop.f32.mrf.mxu0
    %v1664 = vadd.f32 %v1635, %v1663
    %1665 = vdwg.mxu0
    %v1666 = vadd.f32 %v999, %v1661
    %v1667 = vadd.f32 %v1000, %v1664
    %v1668 = vld [vmem:[#allocation15] sm:$0x1]
    %v1669 = vld [vmem:[#allocation17] sm:$0x1]
    %v1670 = vsel %vm310, %v1666, 0.0
    %1671 = vadd.xlane.f32.xlu0 %v1670
    %v1672 = vpop.xlane.xlu0 %1671
    %v1673 = vsel %vm310, %v1667, 0.0
    %1674 = vadd.xlane.f32.xlu0 %v1673
    %v1675 = vpop.xlane.xlu0 %1674
    %v1676 = vmul.f32 %v1672, %v952
    %v1677 = vmul.f32 %v1675, %v952
    %v1678 = vsub.f32 %v1666, %v1676
    %v1679 = vsub.f32 %v1667, %v1677
    %v1680 = vmul.f32 %v1678, %v1678
    %v1681 = vmul.f32 %v1679, %v1679
    %v1682 = vsel %vm310, %v1680, 0.0
    %1683 = vadd.xlane.f32.xlu0 %v1682
    %v1684 = vpop.xlane.xlu0 %1683
    %v1685 = vsel %vm310, %v1681, 0.0
    %1686 = vadd.xlane.f32.xlu0 %v1685
    %v1687 = vpop.xlane.xlu0 %1686
    %v1688 = vmul.f32 %v1684, %v952
    %v1689 = vmul.f32 %v1687, %v952
    %v1690 = vadd.f32 %v1688, 1e-05
    %v1691 = vadd.f32 %v1689, 1e-05
    %v1692 = vrsqrt.pop %v1690
    %v1693 = vmul.f32 %v1692, %v1690
    %v1694 = vmul.f32 %v1693, %v1692
    %v1695 = vmul.f32 0.5, %v1694
    %v1696 = vsub.f32 1.5, %v1695
    %v1697 = vmul.f32 %v1692, %v1696
    %vm1698 = vweird.f32 %v1690
    %vm1699 = vweird.f32 %v1692
    %vm1700 = vmor %vm1698, %vm1699
    %v1701 = vsel %vm1700, %v1692, %v1697
    %v1702 = vrsqrt.pop %v1691
    %v1703 = vmul.f32 %v1702, %v1691
    %v1704 = vmul.f32 %v1703, %v1702
    %v1705 = vmul.f32 0.5, %v1704
    %v1706 = vsub.f32 1.5, %v1705
    %v1707 = vmul.f32 %v1702, %v1706
    %vm1708 = vweird.f32 %v1691
    %vm1709 = vweird.f32 %v1702
    %vm1710 = vmor %vm1708, %vm1709
    %v1711 = vsel %vm1710, %v1702, %v1707
    %v1712 = vmul.f32 %v1678, %v1701
    %v1713 = vmul.f32 %v1679, %v1711
    %v1715 = vperm.slane %v1668, 0
    %v1717 = vmul.f32 %v1712, %v1715
    %v1718 = vmul.f32 %v1713, %v1715
    %v1720 = vperm.slane %v1669, 0
    %v1722 = vadd.f32 %v1717, %v1720
    %v1723 = vadd.f32 %v1718, %v1720
    %v1724 = vld [vmem:[#allocation8] sm:$0xff]
    %v1725 = vld [vmem:[#allocation8 + $0x8] sm:$0xff]
    %v1726 = vld [vmem:[#allocation8 + $0x10] sm:$0xff]
    %v1727 = vld [vmem:[#allocation8 + $0x18] sm:$0xff]
    %v1728 = vld [vmem:[#allocation9] sm:$0x1]
    %v1730 = vperm.slane %v1728, 0
    %v1733 = vsel %vm310, %v1722, 0
    %v1736 = vsel %vm310, %v1723, 0
    %1738 = vmatpush.msra.mxu0 0.0
    %1739 = vmatpush.msra.mxu0 0.0
    %1740 = vmatpush.msra.mxu0 0.0
    %1741 = vmatpush.msra.mxu0 0.0
    %1742 = vmatpush.msra.mxu0 0.0
    %1743 = vmatpush.msra.mxu0 0.0
    %1744 = vmatpush.msra.mxu0 0.0
    %1745 = vmatpush.msra.mxu0 0.0
    %1746 = vmatpush.msra.mxu0 0.0
    %1747 = vmatpush.msra.mxu0 0.0
    %1748 = vmatpush.msra.mxu0 0.0
    %1749 = vmatpush.msra.mxu0 0.0
    %1750 = vmatpush.msra.mxu0 %v1727
    %1751 = vmatpush.msra.mxu0 %v1726
    %1752 = vmatpush.msra.mxu0 %v1725
    %1753 = vmatpush.msra.mxu0 %v1724
    %1754 = vmatmul.f32.gmra.mxu0 %v1733
    %v1755 = vpop.f32.mrf.mxu0
    %v1756 = vadd.f32 %v1730, %v1755
    %1757 = vmatmul.f32.gmra.mxu0 %v1736
    %v1758 = vpop.f32.mrf.mxu0
    %v1759 = vadd.f32 %v1730, %v1758
    %1760 = vdwg.mxu0
    %v1761 = vmax.f32 %v1756, 0.0
    %v1762 = vmax.f32 %v1759, 0.0
    %v1763 = vld [vmem:[%s14] sm:$0xff]
    %v1764 = vld [vmem:[%s14 + $0x8] sm:$0xff]
    %v1765 = vld [vmem:[%s14 + $0x10] sm:$0xff]
    %v1766 = vld [vmem:[%s14 + $0x18] sm:$0xff]
    %v1767 = vld [vmem:[%s14 + $0x20] sm:$0xff]
    %v1768 = vld [vmem:[%s14 + $0x28] sm:$0xff]
    %v1769 = vld [vmem:[%s14 + $0x30] sm:$0xff]
    %v1770 = vld [vmem:[%s14 + $0x38] sm:$0xff]
    %v1771 = vld [vmem:[#allocation11] sm:$0x1]
    %v1773 = vperm.slane %v1771, 0
    %vm1775 = vcmask 523264
    %v1777 = vsel %vm1775, %v1761, 0
    %v1780 = vsel %vm1775, %v1762, 0
    %1782 = vmatpush.msra.mxu0 0.0
    %1783 = vmatpush.msra.mxu0 0.0
    %1784 = vmatpush.msra.mxu0 0.0
    %1785 = vmatpush.msra.mxu0 0.0
    %1786 = vmatpush.msra.mxu0 0.0
    %1787 = vmatpush.msra.mxu0 0.0
    %1788 = vmatpush.msra.mxu0 0.0
    %1789 = vmatpush.msra.mxu0 0.0
    %1790 = vmatpush.msra.mxu0 %v1770
    %1791 = vmatpush.msra.mxu0 %v1769
    %1792 = vmatpush.msra.mxu0 %v1768
    %1793 = vmatpush.msra.mxu0 %v1767
    %1794 = vmatpush.msra.mxu0 %v1766
    %1795 = vmatpush.msra.mxu0 %v1765
    %1796 = vmatpush.msra.mxu0 %v1764
    %1797 = vmatpush.msra.mxu0 %v1763
    %1798 = vmatmul.f32.gmra.mxu0 %v1777
    %v1799 = vpop.f32.mrf.mxu0
    %v1800 = vadd.f32 %v1773, %v1799
    %1801 = vmatmul.f32.gmra.mxu0 %v1780
    %v1802 = vpop.f32.mrf.mxu0
    %v1803 = vadd.f32 %v1773, %v1802
    %1804 = vdwg.mxu0
    %v1805 = vadd.f32 %v1722, %v1800
    %v1806 = vadd.f32 %v1723, %v1803
    %v1807 = vld [vmem:[#allocation18] sm:$0x1]
    %v1808 = vld [vmem:[#allocation20] sm:$0x1]
    %v1809 = vsel %vm310, %v1805, 0.0
    %1810 = vadd.xlane.f32.xlu0 %v1809
    %v1811 = vpop.xlane.xlu0 %1810
    %v1812 = vsel %vm310, %v1806, 0.0
    %1813 = vadd.xlane.f32.xlu0 %v1812
    %v1814 = vpop.xlane.xlu0 %1813
    %v1815 = vmul.f32 %v1811, %v952
    %v1816 = vmul.f32 %v1814, %v952
    %v1817 = vsub.f32 %v1805, %v1815
    %v1818 = vsub.f32 %v1806, %v1816
    %v1819 = vmul.f32 %v1817, %v1817
    %v1820 = vmul.f32 %v1818, %v1818
    %v1821 = vsel %vm310, %v1819, 0.0
    %1822 = vadd.xlane.f32.xlu0 %v1821
    %v1823 = vpop.xlane.xlu0 %1822
    %v1824 = vsel %vm310, %v1820, 0.0
    %1825 = vadd.xlane.f32.xlu0 %v1824
    %v1826 = vpop.xlane.xlu0 %1825
    %v1827 = vmul.f32 %v1823, %v952
    %v1828 = vmul.f32 %v1826, %v952
    %v1829 = vadd.f32 %v1827, 1e-05
    %v1830 = vadd.f32 %v1828, 1e-05
    %v1831 = vrsqrt.pop %v1829
    %v1832 = vmul.f32 %v1831, %v1829
    %v1833 = vmul.f32 %v1832, %v1831
    %v1834 = vmul.f32 0.5, %v1833
    %v1835 = vsub.f32 1.5, %v1834
    %v1836 = vmul.f32 %v1831, %v1835
    %vm1837 = vweird.f32 %v1829
    %vm1838 = vweird.f32 %v1831
    %vm1839 = vmor %vm1837, %vm1838
    %v1840 = vsel %vm1839, %v1831, %v1836
    %v1841 = vrsqrt.pop %v1830
    %v1842 = vmul.f32 %v1841, %v1830
    %v1843 = vmul.f32 %v1842, %v1841
    %v1844 = vmul.f32 0.5, %v1843
    %v1845 = vsub.f32 1.5, %v1844
    %v1846 = vmul.f32 %v1841, %v1845
    %vm1847 = vweird.f32 %v1830
    %vm1848 = vweird.f32 %v1841
    %vm1849 = vmor %vm1847, %vm1848
    %v1850 = vsel %vm1849, %v1841, %v1846
    %v1851 = vmul.f32 %v1817, %v1840
    %v1852 = vmul.f32 %v1818, %v1850
    %v1854 = vperm.slane %v1807, 0
    %v1856 = vmul.f32 %v1851, %v1854
    %v1857 = vmul.f32 %v1852, %v1854
    %v1859 = vperm.slane %v1808, 0
    %v1861 = vadd.f32 %v1856, %v1859
    %v1862 = vadd.f32 %v1857, %v1859
    %s1863 = scalar_lea.vmem %s2, 32
    %v1864 = vld [vmem:[%s1863] sm:$0xff]
    %v1865 = vld [vmem:[%s1863 + $0x8] sm:$0xff]
    %v1866 = vld [vmem:[%s1863 + $0x10] sm:$0xff]
    %v1867 = vld [vmem:[%s1863 + $0x18] sm:$0xff]
    %s1868 = scalar_lea.vmem %s3, 1
    %v1869 = vld [vmem:[%s1868] sm:$0x1]
    %v1871 = vperm.slane %v1869, 0
    %v1874 = vsel %vm310, %v1861, 0
    %v1877 = vsel %vm310, %v1862, 0
    %1879 = vmatpush.msra.mxu0 0.0
    %1880 = vmatpush.msra.mxu0 0.0
    %1881 = vmatpush.msra.mxu0 0.0
    %1882 = vmatpush.msra.mxu0 0.0
    %1883 = vmatpush.msra.mxu0 0.0
    %1884 = vmatpush.msra.mxu0 0.0
    %1885 = vmatpush.msra.mxu0 0.0
    %1886 = vmatpush.msra.mxu0 0.0
    %1887 = vmatpush.msra.mxu0 0.0
    %1888 = vmatpush.msra.mxu0 0.0
    %1889 = vmatpush.msra.mxu0 0.0
    %1890 = vmatpush.msra.mxu0 0.0
    %1891 = vmatpush.msra.mxu0 %v1867
    %1892 = vmatpush.msra.mxu0 %v1866
    %1893 = vmatpush.msra.mxu0 %v1865
    %1894 = vmatpush.msra.mxu0 %v1864
    %1895 = vmatmul.f32.gmra.mxu0 %v1874
    %v1896 = vpop.f32.mrf.mxu0
    %v1897 = vadd.f32 %v1871, %v1896
    %1898 = vmatmul.f32.gmra.mxu0 %v1877
    %v1899 = vpop.f32.mrf.mxu0
    %v1900 = vadd.f32 %v1871, %v1899
    %1901 = vdwg.mxu0
    %1903 = vrot.lane.b32.xlu0 %v1897, 96
    %v1904 = vpop.permute.xlu0 %1903
    %v1905 = vsel %vm343, %v1897, 0
    %v1907 = vsel %vm343, %v1904, 0
    %1909 = vmatpush.xpose.msra.mxu0 0.0
    %1910 = vmatpush.xpose.msra.mxu0 0.0
    %1911 = vmatpush.xpose.msra.mxu0 0.0
    %1912 = vmatpush.xpose.msra.mxu0 0.0
    %1913 = vmatpush.xpose.msra.mxu0 0.0
    %1914 = vmatpush.xpose.msra.mxu0 0.0
    %1915 = vmatpush.xpose.msra.mxu0 0.0
    %1916 = vmatpush.xpose.msra.mxu0 0.0
    %1917 = vmatpush.xpose.msra.mxu0 0.0
    %1918 = vmatpush.xpose.msra.mxu0 0.0
    %1919 = vmatpush.xpose.msra.mxu0 0.0
    %1920 = vmatpush.xpose.msra.mxu0 0.0
    %1921 = vmatpush.xpose.msra.mxu0 0.0
    %1922 = vmatpush.xpose.msra.mxu0 0.0
    %1923 = vmatpush.xpose.msra.mxu0 0.0
    %1924 = vmatpush.xpose.msra.mxu0 %v1907
    %1925 = vmatmul.f32.gmra.mxu0 %v1905
    %v1926 = vpop.f32.mrf.mxu0
    %v1927 = vadd.f32 0.0, %v1926
    %1928 = vdwg.mxu0
    %1930 = vrot.lane.b32.xlu0 %v1900, 96
    %v1931 = vpop.permute.xlu0 %1930
    %v1932 = vsel %vm343, %v1900, 0
    %v1934 = vsel %vm343, %v1931, 0
    %1936 = vmatpush.xpose.msra.mxu0 0.0
    %1937 = vmatpush.xpose.msra.mxu0 0.0
    %1938 = vmatpush.xpose.msra.mxu0 0.0
    %1939 = vmatpush.xpose.msra.mxu0 0.0
    %1940 = vmatpush.xpose.msra.mxu0 0.0
    %1941 = vmatpush.xpose.msra.mxu0 0.0
    %1942 = vmatpush.xpose.msra.mxu0 0.0
    %1943 = vmatpush.xpose.msra.mxu0 0.0
    %1944 = vmatpush.xpose.msra.mxu0 0.0
    %1945 = vmatpush.xpose.msra.mxu0 0.0
    %1946 = vmatpush.xpose.msra.mxu0 0.0
    %1947 = vmatpush.xpose.msra.mxu0 0.0
    %1948 = vmatpush.xpose.msra.mxu0 0.0
    %1949 = vmatpush.xpose.msra.mxu0 0.0
    %1950 = vmatpush.xpose.msra.mxu0 0.0
    %1951 = vmatpush.xpose.msra.mxu0 %v1934
    %1952 = vmatmul.f32.gmra.mxu0 %v1932
    %v1953 = vpop.f32.mrf.mxu0
    %v1954 = vadd.f32 0.0, %v1953
    %1955 = vdwg.mxu0
    %v1956 = vmul.f32 %v1927, 0.35355338
    %v1957 = vmul.f32 %v1954, 0.35355338
    %v1958 = vsel %vm343, %v1956, -inf
    %1959 = vmax.xlane.f32.xlu0 %v1958
    %v1960 = vpop.xlane.xlu0 %1959
    %v1961 = vsel %vm343, %v1957, -inf
    %1962 = vmax.xlane.f32.xlu0 %v1961
    %v1963 = vpop.xlane.xlu0 %1962
    %v1964 = vsub.f32 %v1956, %v1960
    %v1965 = vsub.f32 %v1957, %v1963
    %v1966 = vmul.f32 %v1964, 1.442695
    %v1967 = vpow.pop %v1966
    %v1968 = vmul.f32 %v1965, 1.442695
    %v1969 = vpow.pop %v1968
    %v1970 = vsel %vm343, %v1967, 0.0
    %1971 = vadd.xlane.f32.xlu0 %v1970
    %v1972 = vpop.xlane.xlu0 %1971
    %v1973 = vsel %vm343, %v1969, 0.0
    %1974 = vadd.xlane.f32.xlu0 %v1973
    %v1975 = vpop.xlane.xlu0 %1974
    %v1976 = vrcp.pop %v1972
    %v1977 = vrcp.pop %v1975
    %v1978 = vmul.f32 %v1967, %v1976
    %v1979 = vmul.f32 %v1969, %v1977
    %1980 = vrot.lane.b32.xlu0 %v1897, 64
    %v1981 = vpop.permute.xlu0 %1980
    %v1984 = vsel %vm343, %v1978, 0
    %1986 = vmatpush.msra.mxu0 0.0
    %1987 = vmatpush.msra.mxu0 0.0
    %1988 = vmatpush.msra.mxu0 0.0
    %1989 = vmatpush.msra.mxu0 0.0
    %1990 = vmatpush.msra.mxu0 0.0
    %1991 = vmatpush.msra.mxu0 0.0
    %1992 = vmatpush.msra.mxu0 0.0
    %1993 = vmatpush.msra.mxu0 0.0
    %1994 = vmatpush.msra.mxu0 0.0
    %1995 = vmatpush.msra.mxu0 0.0
    %1996 = vmatpush.msra.mxu0 0.0
    %1997 = vmatpush.msra.mxu0 0.0
    %1998 = vmatpush.msra.mxu0 0.0
    %1999 = vmatpush.msra.mxu0 0.0
    %2000 = vmatpush.msra.mxu0 0.0
    %2001 = vmatpush.msra.mxu0 %v1981
    %2002 = vmatmul.f32.gmra.mxu0 %v1984
    %v2003 = vpop.f32.mrf.mxu0
    %v2004 = vadd.f32 0.0, %v2003
    %2005 = vdwg.mxu0
    %2006 = vrot.lane.b32.xlu0 %v1900, 64
    %v2007 = vpop.permute.xlu0 %2006
    %v2010 = vsel %vm343, %v1979, 0
    %2012 = vmatpush.msra.mxu0 0.0
    %2013 = vmatpush.msra.mxu0 0.0
    %2014 = vmatpush.msra.mxu0 0.0
    %2015 = vmatpush.msra.mxu0 0.0
    %2016 = vmatpush.msra.mxu0 0.0
    %2017 = vmatpush.msra.mxu0 0.0
    %2018 = vmatpush.msra.mxu0 0.0
    %2019 = vmatpush.msra.mxu0 0.0
    %2020 = vmatpush.msra.mxu0 0.0
    %2021 = vmatpush.msra.mxu0 0.0
    %2022 = vmatpush.msra.mxu0 0.0
    %2023 = vmatpush.msra.mxu0 0.0
    %2024 = vmatpush.msra.mxu0 0.0
    %2025 = vmatpush.msra.mxu0 0.0
    %2026 = vmatpush.msra.mxu0 0.0
    %2027 = vmatpush.msra.mxu0 %v2007
    %2028 = vmatmul.f32.gmra.mxu0 %v2010
    %v2029 = vpop.f32.mrf.mxu0
    %v2030 = vadd.f32 0.0, %v2029
    %2031 = vdwg.mxu0
    %2032 = vrot.lane.b32.xlu0 %v1897, 120
    %v2033 = vpop.permute.xlu0 %2032
    %2034 = vrot.lane.b32.xlu0 %v1897, 88
    %v2035 = vpop.permute.xlu0 %2034
    %v2036 = vsel %vm343, %v2033, 0
    %v2038 = vsel %vm343, %v2035, 0
    %2040 = vmatpush.xpose.msra.mxu0 0.0
    %2041 = vmatpush.xpose.msra.mxu0 0.0
    %2042 = vmatpush.xpose.msra.mxu0 0.0
    %2043 = vmatpush.xpose.msra.mxu0 0.0
    %2044 = vmatpush.xpose.msra.mxu0 0.0
    %2045 = vmatpush.xpose.msra.mxu0 0.0
    %2046 = vmatpush.xpose.msra.mxu0 0.0
    %2047 = vmatpush.xpose.msra.mxu0 0.0
    %2048 = vmatpush.xpose.msra.mxu0 0.0
    %2049 = vmatpush.xpose.msra.mxu0 0.0
    %2050 = vmatpush.xpose.msra.mxu0 0.0
    %2051 = vmatpush.xpose.msra.mxu0 0.0
    %2052 = vmatpush.xpose.msra.mxu0 0.0
    %2053 = vmatpush.xpose.msra.mxu0 0.0
    %2054 = vmatpush.xpose.msra.mxu0 0.0
    %2055 = vmatpush.xpose.msra.mxu0 %v2038
    %2056 = vmatmul.f32.gmra.mxu0 %v2036
    %v2057 = vpop.f32.mrf.mxu0
    %v2058 = vadd.f32 0.0, %v2057
    %2059 = vdwg.mxu0
    %2060 = vrot.lane.b32.xlu0 %v1900, 120
    %v2061 = vpop.permute.xlu0 %2060
    %2062 = vrot.lane.b32.xlu0 %v1900, 88
    %v2063 = vpop.permute.xlu0 %2062
    %v2064 = vsel %vm343, %v2061, 0
    %v2066 = vsel %vm343, %v2063, 0
    %2068 = vmatpush.xpose.msra.mxu0 0.0
    %2069 = vmatpush.xpose.msra.mxu0 0.0
    %2070 = vmatpush.xpose.msra.mxu0 0.0
    %2071 = vmatpush.xpose.msra.mxu0 0.0
    %2072 = vmatpush.xpose.msra.mxu0 0.0
    %2073 = vmatpush.xpose.msra.mxu0 0.0
    %2074 = vmatpush.xpose.msra.mxu0 0.0
    %2075 = vmatpush.xpose.msra.mxu0 0.0
    %2076 = vmatpush.xpose.msra.mxu0 0.0
    %2077 = vmatpush.xpose.msra.mxu0 0.0
    %2078 = vmatpush.xpose.msra.mxu0 0.0
    %2079 = vmatpush.xpose.msra.mxu0 0.0
    %2080 = vmatpush.xpose.msra.mxu0 0.0
    %2081 = vmatpush.xpose.msra.mxu0 0.0
    %2082 = vmatpush.xpose.msra.mxu0 0.0
    %2083 = vmatpush.xpose.msra.mxu0 %v2066
    %2084 = vmatmul.f32.gmra.mxu0 %v2064
    %v2085 = vpop.f32.mrf.mxu0
    %v2086 = vadd.f32 0.0, %v2085
    %2087 = vdwg.mxu0
    %v2088 = vmul.f32 %v2058, 0.35355338
    %v2089 = vmul.f32 %v2086, 0.35355338
    %v2090 = vsel %vm343, %v2088, -inf
    %2091 = vmax.xlane.f32.xlu0 %v2090
    %v2092 = vpop.xlane.xlu0 %2091
    %v2093 = vsel %vm343, %v2089, -inf
    %2094 = vmax.xlane.f32.xlu0 %v2093
    %v2095 = vpop.xlane.xlu0 %2094
    %v2096 = vsub.f32 %v2088, %v2092
    %v2097 = vsub.f32 %v2089, %v2095
    %v2098 = vmul.f32 %v2096, 1.442695
    %v2099 = vpow.pop %v2098
    %v2100 = vmul.f32 %v2097, 1.442695
    %v2101 = vpow.pop %v2100
    %v2102 = vsel %vm343, %v2099, 0.0
    %2103 = vadd.xlane.f32.xlu0 %v2102
    %v2104 = vpop.xlane.xlu0 %2103
    %v2105 = vsel %vm343, %v2101, 0.0
    %2106 = vadd.xlane.f32.xlu0 %v2105
    %v2107 = vpop.xlane.xlu0 %2106
    %v2108 = vrcp.pop %v2104
    %v2109 = vrcp.pop %v2107
    %v2110 = vmul.f32 %v2099, %v2108
    %v2111 = vmul.f32 %v2101, %v2109
    %2112 = vrot.lane.b32.xlu0 %v1897, 56
    %v2113 = vpop.permute.xlu0 %2112
    %v2116 = vsel %vm343, %v2110, 0
    %2118 = vmatpush.msra.mxu0 0.0
    %2119 = vmatpush.msra.mxu0 0.0
    %2120 = vmatpush.msra.mxu0 0.0
    %2121 = vmatpush.msra.mxu0 0.0
    %2122 = vmatpush.msra.mxu0 0.0
    %2123 = vmatpush.msra.mxu0 0.0
    %2124 = vmatpush.msra.mxu0 0.0
    %2125 = vmatpush.msra.mxu0 0.0
    %2126 = vmatpush.msra.mxu0 0.0
    %2127 = vmatpush.msra.mxu0 0.0
    %2128 = vmatpush.msra.mxu0 0.0
    %2129 = vmatpush.msra.mxu0 0.0
    %2130 = vmatpush.msra.mxu0 0.0
    %2131 = vmatpush.msra.mxu0 0.0
    %2132 = vmatpush.msra.mxu0 0.0
    %2133 = vmatpush.msra.mxu0 %v2113
    %2134 = vmatmul.f32.gmra.mxu0 %v2116
    %v2135 = vpop.f32.mrf.mxu0
    %v2136 = vadd.f32 0.0, %v2135
    %2137 = vdwg.mxu0
    %2138 = vrot.lane.b32.xlu0 %v1900, 56
    %v2139 = vpop.permute.xlu0 %2138
    %v2142 = vsel %vm343, %v2111, 0
    %2144 = vmatpush.msra.mxu0 0.0
    %2145 = vmatpush.msra.mxu0 0.0
    %2146 = vmatpush.msra.mxu0 0.0
    %2147 = vmatpush.msra.mxu0 0.0
    %2148 = vmatpush.msra.mxu0 0.0
    %2149 = vmatpush.msra.mxu0 0.0
    %2150 = vmatpush.msra.mxu0 0.0
    %2151 = vmatpush.msra.mxu0 0.0
    %2152 = vmatpush.msra.mxu0 0.0
    %2153 = vmatpush.msra.mxu0 0.0
    %2154 = vmatpush.msra.mxu0 0.0
    %2155 = vmatpush.msra.mxu0 0.0
    %2156 = vmatpush.msra.mxu0 0.0
    %2157 = vmatpush.msra.mxu0 0.0
    %2158 = vmatpush.msra.mxu0 0.0
    %2159 = vmatpush.msra.mxu0 %v2139
    %2160 = vmatmul.f32.gmra.mxu0 %v2142
    %v2161 = vpop.f32.mrf.mxu0
    %v2162 = vadd.f32 0.0, %v2161
    %2163 = vdwg.mxu0
    %2164 = vrot.lane.b32.xlu0 %v1897, 112
    %v2165 = vpop.permute.xlu0 %2164
    %2166 = vrot.lane.b32.xlu0 %v1897, 80
    %v2167 = vpop.permute.xlu0 %2166
    %v2168 = vsel %vm343, %v2165, 0
    %v2170 = vsel %vm343, %v2167, 0
    %2172 = vmatpush.xpose.msra.mxu0 0.0
    %2173 = vmatpush.xpose.msra.mxu0 0.0
    %2174 = vmatpush.xpose.msra.mxu0 0.0
    %2175 = vmatpush.xpose.msra.mxu0 0.0
    %2176 = vmatpush.xpose.msra.mxu0 0.0
    %2177 = vmatpush.xpose.msra.mxu0 0.0
    %2178 = vmatpush.xpose.msra.mxu0 0.0
    %2179 = vmatpush.xpose.msra.mxu0 0.0
    %2180 = vmatpush.xpose.msra.mxu0 0.0
    %2181 = vmatpush.xpose.msra.mxu0 0.0
    %2182 = vmatpush.xpose.msra.mxu0 0.0
    %2183 = vmatpush.xpose.msra.mxu0 0.0
    %2184 = vmatpush.xpose.msra.mxu0 0.0
    %2185 = vmatpush.xpose.msra.mxu0 0.0
    %2186 = vmatpush.xpose.msra.mxu0 0.0
    %2187 = vmatpush.xpose.msra.mxu0 %v2170
    %2188 = vmatmul.f32.gmra.mxu0 %v2168
    %v2189 = vpop.f32.mrf.mxu0
    %v2190 = vadd.f32 0.0, %v2189
    %2191 = vdwg.mxu0
    %2192 = vrot.lane.b32.xlu0 %v1900, 112
    %v2193 = vpop.permute.xlu0 %2192
    %2194 = vrot.lane.b32.xlu0 %v1900, 80
    %v2195 = vpop.permute.xlu0 %2194
    %v2196 = vsel %vm343, %v2193, 0
    %v2198 = vsel %vm343, %v2195, 0
    %2200 = vmatpush.xpose.msra.mxu0 0.0
    %2201 = vmatpush.xpose.msra.mxu0 0.0
    %2202 = vmatpush.xpose.msra.mxu0 0.0
    %2203 = vmatpush.xpose.msra.mxu0 0.0
    %2204 = vmatpush.xpose.msra.mxu0 0.0
    %2205 = vmatpush.xpose.msra.mxu0 0.0
    %2206 = vmatpush.xpose.msra.mxu0 0.0
    %2207 = vmatpush.xpose.msra.mxu0 0.0
    %2208 = vmatpush.xpose.msra.mxu0 0.0
    %2209 = vmatpush.xpose.msra.mxu0 0.0
    %2210 = vmatpush.xpose.msra.mxu0 0.0
    %2211 = vmatpush.xpose.msra.mxu0 0.0
    %2212 = vmatpush.xpose.msra.mxu0 0.0
    %2213 = vmatpush.xpose.msra.mxu0 0.0
    %2214 = vmatpush.xpose.msra.mxu0 0.0
    %2215 = vmatpush.xpose.msra.mxu0 %v2198
    %2216 = vmatmul.f32.gmra.mxu0 %v2196
    %v2217 = vpop.f32.mrf.mxu0
    %v2218 = vadd.f32 0.0, %v2217
    %2219 = vdwg.mxu0
    %v2220 = vmul.f32 %v2190, 0.35355338
    %v2221 = vmul.f32 %v2218, 0.35355338
    %v2222 = vsel %vm343, %v2220, -inf
    %2223 = vmax.xlane.f32.xlu0 %v2222
    %v2224 = vpop.xlane.xlu0 %2223
    %v2225 = vsel %vm343, %v2221, -inf
    %2226 = vmax.xlane.f32.xlu0 %v2225
    %v2227 = vpop.xlane.xlu0 %2226
    %v2228 = vsub.f32 %v2220, %v2224
    %v2229 = vsub.f32 %v2221, %v2227
    %v2230 = vmul.f32 %v2228, 1.442695
    %v2231 = vpow.pop %v2230
    %v2232 = vmul.f32 %v2229, 1.442695
    %v2233 = vpow.pop %v2232
    %v2234 = vsel %vm343, %v2231, 0.0
    %2235 = vadd.xlane.f32.xlu0 %v2234
    %v2236 = vpop.xlane.xlu0 %2235
    %v2237 = vsel %vm343, %v2233, 0.0
    %2238 = vadd.xlane.f32.xlu0 %v2237
    %v2239 = vpop.xlane.xlu0 %2238
    %v2240 = vrcp.pop %v2236
    %v2241 = vrcp.pop %v2239
    %v2242 = vmul.f32 %v2231, %v2240
    %v2243 = vmul.f32 %v2233, %v2241
    %2244 = vrot.lane.b32.xlu0 %v1897, 48
    %v2245 = vpop.permute.xlu0 %2244
    %v2248 = vsel %vm343, %v2242, 0
    %2250 = vmatpush.msra.mxu0 0.0
    %2251 = vmatpush.msra.mxu0 0.0
    %2252 = vmatpush.msra.mxu0 0.0
    %2253 = vmatpush.msra.mxu0 0.0
    %2254 = vmatpush.msra.mxu0 0.0
    %2255 = vmatpush.msra.mxu0 0.0
    %2256 = vmatpush.msra.mxu0 0.0
    %2257 = vmatpush.msra.mxu0 0.0
    %2258 = vmatpush.msra.mxu0 0.0
    %2259 = vmatpush.msra.mxu0 0.0
    %2260 = vmatpush.msra.mxu0 0.0
    %2261 = vmatpush.msra.mxu0 0.0
    %2262 = vmatpush.msra.mxu0 0.0
    %2263 = vmatpush.msra.mxu0 0.0
    %2264 = vmatpush.msra.mxu0 0.0
    %2265 = vmatpush.msra.mxu0 %v2245
    %2266 = vmatmul.f32.gmra.mxu0 %v2248
    %v2267 = vpop.f32.mrf.mxu0
    %v2268 = vadd.f32 0.0, %v2267
    %2269 = vdwg.mxu0
    %2270 = vrot.lane.b32.xlu0 %v1900, 48
    %v2271 = vpop.permute.xlu0 %2270
    %v2274 = vsel %vm343, %v2243, 0
    %2276 = vmatpush.msra.mxu0 0.0
    %2277 = vmatpush.msra.mxu0 0.0
    %2278 = vmatpush.msra.mxu0 0.0
    %2279 = vmatpush.msra.mxu0 0.0
    %2280 = vmatpush.msra.mxu0 0.0
    %2281 = vmatpush.msra.mxu0 0.0
    %2282 = vmatpush.msra.mxu0 0.0
    %2283 = vmatpush.msra.mxu0 0.0
    %2284 = vmatpush.msra.mxu0 0.0
    %2285 = vmatpush.msra.mxu0 0.0
    %2286 = vmatpush.msra.mxu0 0.0
    %2287 = vmatpush.msra.mxu0 0.0
    %2288 = vmatpush.msra.mxu0 0.0
    %2289 = vmatpush.msra.mxu0 0.0
    %2290 = vmatpush.msra.mxu0 0.0
    %2291 = vmatpush.msra.mxu0 %v2271
    %2292 = vmatmul.f32.gmra.mxu0 %v2274
    %v2293 = vpop.f32.mrf.mxu0
    %v2294 = vadd.f32 0.0, %v2293
    %2295 = vdwg.mxu0
    %2296 = vrot.lane.b32.xlu0 %v1897, 104
    %v2297 = vpop.permute.xlu0 %2296
    %2298 = vrot.lane.b32.xlu0 %v1897, 72
    %v2299 = vpop.permute.xlu0 %2298
    %v2300 = vsel %vm343, %v2297, 0
    %v2302 = vsel %vm343, %v2299, 0
    %2304 = vmatpush.xpose.msra.mxu0 0.0
    %2305 = vmatpush.xpose.msra.mxu0 0.0
    %2306 = vmatpush.xpose.msra.mxu0 0.0
    %2307 = vmatpush.xpose.msra.mxu0 0.0
    %2308 = vmatpush.xpose.msra.mxu0 0.0
    %2309 = vmatpush.xpose.msra.mxu0 0.0
    %2310 = vmatpush.xpose.msra.mxu0 0.0
    %2311 = vmatpush.xpose.msra.mxu0 0.0
    %2312 = vmatpush.xpose.msra.mxu0 0.0
    %2313 = vmatpush.xpose.msra.mxu0 0.0
    %2314 = vmatpush.xpose.msra.mxu0 0.0
    %2315 = vmatpush.xpose.msra.mxu0 0.0
    %2316 = vmatpush.xpose.msra.mxu0 0.0
    %2317 = vmatpush.xpose.msra.mxu0 0.0
    %2318 = vmatpush.xpose.msra.mxu0 0.0
    %2319 = vmatpush.xpose.msra.mxu0 %v2302
    %2320 = vmatmul.f32.gmra.mxu0 %v2300
    %v2321 = vpop.f32.mrf.mxu0
    %v2322 = vadd.f32 0.0, %v2321
    %2323 = vdwg.mxu0
    %2324 = vrot.lane.b32.xlu0 %v1900, 104
    %v2325 = vpop.permute.xlu0 %2324
    %2326 = vrot.lane.b32.xlu0 %v1900, 72
    %v2327 = vpop.permute.xlu0 %2326
    %v2328 = vsel %vm343, %v2325, 0
    %v2330 = vsel %vm343, %v2327, 0
    %2332 = vmatpush.xpose.msra.mxu0 0.0
    %2333 = vmatpush.xpose.msra.mxu0 0.0
    %2334 = vmatpush.xpose.msra.mxu0 0.0
    %2335 = vmatpush.xpose.msra.mxu0 0.0
    %2336 = vmatpush.xpose.msra.mxu0 0.0
    %2337 = vmatpush.xpose.msra.mxu0 0.0
    %2338 = vmatpush.xpose.msra.mxu0 0.0
    %2339 = vmatpush.xpose.msra.mxu0 0.0
    %2340 = vmatpush.xpose.msra.mxu0 0.0
    %2341 = vmatpush.xpose.msra.mxu0 0.0
    %2342 = vmatpush.xpose.msra.mxu0 0.0
    %2343 = vmatpush.xpose.msra.mxu0 0.0
    %2344 = vmatpush.xpose.msra.mxu0 0.0
    %2345 = vmatpush.xpose.msra.mxu0 0.0
    %2346 = vmatpush.xpose.msra.mxu0 0.0
    %2347 = vmatpush.xpose.msra.mxu0 %v2330
    %2348 = vmatmul.f32.gmra.mxu0 %v2328
    %v2349 = vpop.f32.mrf.mxu0
    %v2350 = vadd.f32 0.0, %v2349
    %2351 = vdwg.mxu0
    %v2352 = vmul.f32 %v2322, 0.35355338
    %v2353 = vmul.f32 %v2350, 0.35355338
    %v2354 = vsel %vm343, %v2352, -inf
    %2355 = vmax.xlane.f32.xlu0 %v2354
    %v2356 = vpop.xlane.xlu0 %2355
    %v2357 = vsel %vm343, %v2353, -inf
    %2358 = vmax.xlane.f32.xlu0 %v2357
    %v2359 = vpop.xlane.xlu0 %2358
    %v2360 = vsub.f32 %v2352, %v2356
    %v2361 = vsub.f32 %v2353, %v2359
    %v2362 = vmul.f32 %v2360, 1.442695
    %v2363 = vpow.pop %v2362
    %v2364 = vmul.f32 %v2361, 1.442695
    %v2365 = vpow.pop %v2364
    %v2366 = vsel %vm343, %v2363, 0.0
    %2367 = vadd.xlane.f32.xlu0 %v2366
    %v2368 = vpop.xlane.xlu0 %2367
    %v2369 = vsel %vm343, %v2365, 0.0
    %2370 = vadd.xlane.f32.xlu0 %v2369
    %v2371 = vpop.xlane.xlu0 %2370
    %v2372 = vrcp.pop %v2368
    %v2373 = vrcp.pop %v2371
    %v2374 = vmul.f32 %v2363, %v2372
    %v2375 = vmul.f32 %v2365, %v2373
    %2376 = vrot.lane.b32.xlu0 %v1897, 40
    %v2377 = vpop.permute.xlu0 %2376
    %v2380 = vsel %vm343, %v2374, 0
    %2382 = vmatpush.msra.mxu0 0.0
    %2383 = vmatpush.msra.mxu0 0.0
    %2384 = vmatpush.msra.mxu0 0.0
    %2385 = vmatpush.msra.mxu0 0.0
    %2386 = vmatpush.msra.mxu0 0.0
    %2387 = vmatpush.msra.mxu0 0.0
    %2388 = vmatpush.msra.mxu0 0.0
    %2389 = vmatpush.msra.mxu0 0.0
    %2390 = vmatpush.msra.mxu0 0.0
    %2391 = vmatpush.msra.mxu0 0.0
    %2392 = vmatpush.msra.mxu0 0.0
    %2393 = vmatpush.msra.mxu0 0.0
    %2394 = vmatpush.msra.mxu0 0.0
    %2395 = vmatpush.msra.mxu0 0.0
    %2396 = vmatpush.msra.mxu0 0.0
    %2397 = vmatpush.msra.mxu0 %v2377
    %2398 = vmatmul.f32.gmra.mxu0 %v2380
    %v2399 = vpop.f32.mrf.mxu0
    %v2400 = vadd.f32 0.0, %v2399
    %2401 = vdwg.mxu0
    %2402 = vrot.lane.b32.xlu0 %v1900, 40
    %v2403 = vpop.permute.xlu0 %2402
    %v2406 = vsel %vm343, %v2375, 0
    %2408 = vmatpush.msra.mxu0 0.0
    %2409 = vmatpush.msra.mxu0 0.0
    %2410 = vmatpush.msra.mxu0 0.0
    %2411 = vmatpush.msra.mxu0 0.0
    %2412 = vmatpush.msra.mxu0 0.0
    %2413 = vmatpush.msra.mxu0 0.0
    %2414 = vmatpush.msra.mxu0 0.0
    %2415 = vmatpush.msra.mxu0 0.0
    %2416 = vmatpush.msra.mxu0 0.0
    %2417 = vmatpush.msra.mxu0 0.0
    %2418 = vmatpush.msra.mxu0 0.0
    %2419 = vmatpush.msra.mxu0 0.0
    %2420 = vmatpush.msra.mxu0 0.0
    %2421 = vmatpush.msra.mxu0 0.0
    %2422 = vmatpush.msra.mxu0 0.0
    %2423 = vmatpush.msra.mxu0 %v2403
    %2424 = vmatmul.f32.gmra.mxu0 %v2406
    %v2425 = vpop.f32.mrf.mxu0
    %v2426 = vadd.f32 0.0, %v2425
    %2427 = vdwg.mxu0
    %2430 = vrot.lane.b32.xlu0 %v2136, 8
    %v2431 = vpop.permute.xlu0 %2430
    %2432 = vrot.lane.b32.xlu0 %v2162, 8
    %v2433 = vpop.permute.xlu0 %2432
    %2438 = vrot.lane.b32.xlu0 %v2268, 16
    %v2439 = vpop.permute.xlu0 %2438
    %2440 = vrot.lane.b32.xlu0 %v2294, 16
    %v2441 = vpop.permute.xlu0 %2440
    %2446 = vrot.lane.b32.xlu0 %v2400, 24
    %v2447 = vpop.permute.xlu0 %2446
    %2448 = vrot.lane.b32.xlu0 %v2426, 24
    %v2449 = vpop.permute.xlu0 %2448
    %v2452 = vsel %vm343, %v2004, %v2431
    %v2453 = vsel %vm343, %v2030, %v2433
    %v2454 = vsel %vm893, %v2452, %v2439
    %v2455 = vsel %vm893, %v2453, %v2441
    %v2456 = vsel %vm896, %v2454, %v2447
    %v2457 = vsel %vm896, %v2455, %v2449
    %s2458 = scalar_lea.vmem %s4, 32
    %v2459 = vld [vmem:[%s2458] sm:$0xff]
    %v2460 = vld [vmem:[%s2458 + $0x8] sm:$0xff]
    %v2461 = vld [vmem:[%s2458 + $0x10] sm:$0xff]
    %v2462 = vld [vmem:[%s2458 + $0x18] sm:$0xff]
    %s2463 = scalar_lea.vmem %s5, 1
    %v2464 = vld [vmem:[%s2463] sm:$0x1]
    %v2466 = vperm.slane %v2464, 0
    %v2469 = vsel %vm310, %v2456, 0
    %v2472 = vsel %vm310, %v2457, 0
    %2474 = vmatpush.msra.mxu0 0.0
    %2475 = vmatpush.msra.mxu0 0.0
    %2476 = vmatpush.msra.mxu0 0.0
    %2477 = vmatpush.msra.mxu0 0.0
    %2478 = vmatpush.msra.mxu0 0.0
    %2479 = vmatpush.msra.mxu0 0.0
    %2480 = vmatpush.msra.mxu0 0.0
    %2481 = vmatpush.msra.mxu0 0.0
    %2482 = vmatpush.msra.mxu0 0.0
    %2483 = vmatpush.msra.mxu0 0.0
    %2484 = vmatpush.msra.mxu0 0.0
    %2485 = vmatpush.msra.mxu0 0.0
    %2486 = vmatpush.msra.mxu0 %v2462
    %2487 = vmatpush.msra.mxu0 %v2461
    %2488 = vmatpush.msra.mxu0 %v2460
    %2489 = vmatpush.msra.mxu0 %v2459
    %2490 = vmatmul.f32.gmra.mxu0 %v2469
    %v2491 = vpop.f32.mrf.mxu0
    %v2492 = vadd.f32 %v2466, %v2491
    %2493 = vmatmul.f32.gmra.mxu0 %v2472
    %v2494 = vpop.f32.mrf.mxu0
    %v2495 = vadd.f32 %v2466, %v2494
    %2496 = vdwg.mxu0
    %v2497 = vadd.f32 %v1861, %v2492
    %v2498 = vadd.f32 %v1862, %v2495
    %s2499 = scalar_lea.vmem [#allocation12], 1
    %v2500 = vld [vmem:[%s2499] sm:$0x1]
    %s2501 = scalar_lea.vmem [#allocation14], 1
    %v2502 = vld [vmem:[%s2501] sm:$0x1]
    %v2503 = vsel %vm310, %v2497, 0.0
    %2504 = vadd.xlane.f32.xlu0 %v2503
    %v2505 = vpop.xlane.xlu0 %2504
    %v2506 = vsel %vm310, %v2498, 0.0
    %2507 = vadd.xlane.f32.xlu0 %v2506
    %v2508 = vpop.xlane.xlu0 %2507
    %v2509 = vmul.f32 %v2505, %v952
    %v2510 = vmul.f32 %v2508, %v952
    %v2511 = vsub.f32 %v2497, %v2509
    %v2512 = vsub.f32 %v2498, %v2510
    %v2513 = vmul.f32 %v2511, %v2511
    %v2514 = vmul.f32 %v2512, %v2512
    %v2515 = vsel %vm310, %v2513, 0.0
    %2516 = vadd.xlane.f32.xlu0 %v2515
    %v2517 = vpop.xlane.xlu0 %2516
    %v2518 = vsel %vm310, %v2514, 0.0
    %2519 = vadd.xlane.f32.xlu0 %v2518
    %v2520 = vpop.xlane.xlu0 %2519
    %v2521 = vmul.f32 %v2517, %v952
    %v2522 = vmul.f32 %v2520, %v952
    %v2523 = vadd.f32 %v2521, 1e-05
    %v2524 = vadd.f32 %v2522, 1e-05
    %v2525 = vrsqrt.pop %v2523
    %v2526 = vmul.f32 %v2525, %v2523
    %v2527 = vmul.f32 %v2526, %v2525
    %v2528 = vmul.f32 0.5, %v2527
    %v2529 = vsub.f32 1.5, %v2528
    %v2530 = vmul.f32 %v2525, %v2529
    %vm2531 = vweird.f32 %v2523
    %vm2532 = vweird.f32 %v2525
    %vm2533 = vmor %vm2531, %vm2532
    %v2534 = vsel %vm2533, %v2525, %v2530
    %v2535 = vrsqrt.pop %v2524
    %v2536 = vmul.f32 %v2535, %v2524
    %v2537 = vmul.f32 %v2536, %v2535
    %v2538 = vmul.f32 0.5, %v2537
    %v2539 = vsub.f32 1.5, %v2538
    %v2540 = vmul.f32 %v2535, %v2539
    %vm2541 = vweird.f32 %v2524
    %vm2542 = vweird.f32 %v2535
    %vm2543 = vmor %vm2541, %vm2542
    %v2544 = vsel %vm2543, %v2535, %v2540
    %v2545 = vmul.f32 %v2511, %v2534
    %v2546 = vmul.f32 %v2512, %v2544
    %v2548 = vperm.slane %v2500, 0
    %v2550 = vmul.f32 %v2545, %v2548
    %v2551 = vmul.f32 %v2546, %v2548
    %v2553 = vperm.slane %v2502, 0
    %v2555 = vadd.f32 %v2550, %v2553
    %v2556 = vadd.f32 %v2551, %v2553
    %s2557 = scalar_lea.vmem %s6, 32
    %v2558 = vld [vmem:[%s2557] sm:$0xff]
    %v2559 = vld [vmem:[%s2557 + $0x8] sm:$0xff]
    %v2560 = vld [vmem:[%s2557 + $0x10] sm:$0xff]
    %v2561 = vld [vmem:[%s2557 + $0x18] sm:$0xff]
    %s2562 = scalar_lea.vmem %s7, 1
    %v2563 = vld [vmem:[%s2562] sm:$0x1]
    %v2565 = vperm.slane %v2563, 0
    %v2568 = vsel %vm310, %v2555, 0
    %v2571 = vsel %vm310, %v2556, 0
    %2573 = vmatpush.msra.mxu0 0.0
    %2574 = vmatpush.msra.mxu0 0.0
    %2575 = vmatpush.msra.mxu0 0.0
    %2576 = vmatpush.msra.mxu0 0.0
    %2577 = vmatpush.msra.mxu0 0.0
    %2578 = vmatpush.msra.mxu0 0.0
    %2579 = vmatpush.msra.mxu0 0.0
    %2580 = vmatpush.msra.mxu0 0.0
    %2581 = vmatpush.msra.mxu0 0.0
    %2582 = vmatpush.msra.mxu0 0.0
    %2583 = vmatpush.msra.mxu0 0.0
    %2584 = vmatpush.msra.mxu0 0.0
    %2585 = vmatpush.msra.mxu0 %v2561
    %2586 = vmatpush.msra.mxu0 %v2560
    %2587 = vmatpush.msra.mxu0 %v2559
    %2588 = vmatpush.msra.mxu0 %v2558
    %2589 = vmatmul.f32.gmra.mxu0 %v2568
    %v2590 = vpop.f32.mrf.mxu0
    %v2591 = vadd.f32 %v2565, %v2590
    %2592 = vmatmul.f32.gmra.mxu0 %v2571
    %v2593 = vpop.f32.mrf.mxu0
    %v2594 = vadd.f32 %v2565, %v2593
    %2595 = vdwg.mxu0
    %s2596 = scalar_lea.vmem [#allocation3], 32
    %v2597 = vld [vmem:[%s2596] sm:$0xff]
    %v2598 = vld [vmem:[%s2596 + $0x8] sm:$0xff]
    %v2599 = vld [vmem:[%s2596 + $0x10] sm:$0xff]
    %v2600 = vld [vmem:[%s2596 + $0x18] sm:$0xff]
    %s2601 = scalar_lea.vmem %s9, 1
    %v2602 = vld [vmem:[%s2601] sm:$0x1]
    %v2604 = vperm.slane %v2602, 0
    %2606 = vmatpush.msra.mxu0 0.0
    %2607 = vmatpush.msra.mxu0 0.0
    %2608 = vmatpush.msra.mxu0 0.0
    %2609 = vmatpush.msra.mxu0 0.0
    %2610 = vmatpush.msra.mxu0 0.0
    %2611 = vmatpush.msra.mxu0 0.0
    %2612 = vmatpush.msra.mxu0 0.0
    %2613 = vmatpush.msra.mxu0 0.0
    %2614 = vmatpush.msra.mxu0 0.0
    %2615 = vmatpush.msra.mxu0 0.0
    %2616 = vmatpush.msra.mxu0 0.0
    %2617 = vmatpush.msra.mxu0 0.0
    %2618 = vmatpush.msra.mxu0 %v2600
    %2619 = vmatpush.msra.mxu0 %v2599
    %2620 = vmatpush.msra.mxu0 %v2598
    %2621 = vmatpush.msra.mxu0 %v2597
    %2622 = vmatmul.f32.gmra.mxu0 %v1047
    %v2623 = vpop.f32.mrf.mxu0
    %v2624 = vadd.f32 %v2604, %v2623
    %2625 = vmatmul.f32.gmra.mxu0 %v1050
    %v2626 = vpop.f32.mrf.mxu0
    %v2627 = vadd.f32 %v2604, %v2626
    %2628 = vdwg.mxu0
    %v2630 = vsel %vm343, %v2591, 0
    %v2633 = vsel %vm343, %v2624, 0
    %2635 = vmatpush.xpose.msra.mxu0 0.0
    %2636 = vmatpush.xpose.msra.mxu0 0.0
    %2637 = vmatpush.xpose.msra.mxu0 0.0
    %2638 = vmatpush.xpose.msra.mxu0 0.0
    %2639 = vmatpush.xpose.msra.mxu0 0.0
    %2640 = vmatpush.xpose.msra.mxu0 0.0
    %2641 = vmatpush.xpose.msra.mxu0 0.0
    %2642 = vmatpush.xpose.msra.mxu0 0.0
    %2643 = vmatpush.xpose.msra.mxu0 0.0
    %2644 = vmatpush.xpose.msra.mxu0 0.0
    %2645 = vmatpush.xpose.msra.mxu0 0.0
    %2646 = vmatpush.xpose.msra.mxu0 0.0
    %2647 = vmatpush.xpose.msra.mxu0 0.0
    %2648 = vmatpush.xpose.msra.mxu0 0.0
    %2649 = vmatpush.xpose.msra.mxu0 0.0
    %2650 = vmatpush.xpose.msra.mxu0 %v2633
    %2651 = vmatmul.f32.gmra.mxu0 %v2630
    %v2652 = vpop.f32.mrf.mxu0
    %v2653 = vadd.f32 0.0, %v2652
    %2654 = vdwg.mxu0
    %v2656 = vsel %vm343, %v2594, 0
    %v2659 = vsel %vm343, %v2627, 0
    %2661 = vmatpush.xpose.msra.mxu0 0.0
    %2662 = vmatpush.xpose.msra.mxu0 0.0
    %2663 = vmatpush.xpose.msra.mxu0 0.0
    %2664 = vmatpush.xpose.msra.mxu0 0.0
    %2665 = vmatpush.xpose.msra.mxu0 0.0
    %2666 = vmatpush.xpose.msra.mxu0 0.0
    %2667 = vmatpush.xpose.msra.mxu0 0.0
    %2668 = vmatpush.xpose.msra.mxu0 0.0
    %2669 = vmatpush.xpose.msra.mxu0 0.0
    %2670 = vmatpush.xpose.msra.mxu0 0.0
    %2671 = vmatpush.xpose.msra.mxu0 0.0
    %2672 = vmatpush.xpose.msra.mxu0 0.0
    %2673 = vmatpush.xpose.msra.mxu0 0.0
    %2674 = vmatpush.xpose.msra.mxu0 0.0
    %2675 = vmatpush.xpose.msra.mxu0 0.0
    %2676 = vmatpush.xpose.msra.mxu0 %v2659
    %2677 = vmatmul.f32.gmra.mxu0 %v2656
    %v2678 = vpop.f32.mrf.mxu0
    %v2679 = vadd.f32 0.0, %v2678
    %2680 = vdwg.mxu0
    %v2681 = vmul.f32 %v2653, 0.35355338
    %v2682 = vmul.f32 %v2679, 0.35355338
    %v2683 = vsel %vm343, %v2681, -inf
    %2684 = vmax.xlane.f32.xlu0 %v2683
    %v2685 = vpop.xlane.xlu0 %2684
    %v2686 = vsel %vm343, %v2682, -inf
    %2687 = vmax.xlane.f32.xlu0 %v2686
    %v2688 = vpop.xlane.xlu0 %2687
    %v2689 = vsub.f32 %v2681, %v2685
    %v2690 = vsub.f32 %v2682, %v2688
    %v2691 = vmul.f32 %v2689, 1.442695
    %v2692 = vpow.pop %v2691
    %v2693 = vmul.f32 %v2690, 1.442695
    %v2694 = vpow.pop %v2693
    %v2695 = vsel %vm343, %v2692, 0.0
    %2696 = vadd.xlane.f32.xlu0 %v2695
    %v2697 = vpop.xlane.xlu0 %2696
    %v2698 = vsel %vm343, %v2694, 0.0
    %2699 = vadd.xlane.f32.xlu0 %v2698
    %v2700 = vpop.xlane.xlu0 %2699
    %v2701 = vrcp.pop %v2697
    %v2702 = vrcp.pop %v2700
    %v2703 = vmul.f32 %v2692, %v2701
    %v2704 = vmul.f32 %v2694, %v2702
    %2705 = vrot.lane.b32.xlu0 %v2624, 96
    %v2706 = vpop.permute.xlu0 %2705
    %v2709 = vsel %vm343, %v2703, 0
    %2711 = vmatpush.msra.mxu0 0.0
    %2712 = vmatpush.msra.mxu0 0.0
    %2713 = vmatpush.msra.mxu0 0.0
    %2714 = vmatpush.msra.mxu0 0.0
    %2715 = vmatpush.msra.mxu0 0.0
    %2716 = vmatpush.msra.mxu0 0.0
    %2717 = vmatpush.msra.mxu0 0.0
    %2718 = vmatpush.msra.mxu0 0.0
    %2719 = vmatpush.msra.mxu0 0.0
    %2720 = vmatpush.msra.mxu0 0.0
    %2721 = vmatpush.msra.mxu0 0.0
    %2722 = vmatpush.msra.mxu0 0.0
    %2723 = vmatpush.msra.mxu0 0.0
    %2724 = vmatpush.msra.mxu0 0.0
    %2725 = vmatpush.msra.mxu0 0.0
    %2726 = vmatpush.msra.mxu0 %v2706
    %2727 = vmatmul.f32.gmra.mxu0 %v2709
    %v2728 = vpop.f32.mrf.mxu0
    %v2729 = vadd.f32 0.0, %v2728
    %2730 = vdwg.mxu0
    %2731 = vrot.lane.b32.xlu0 %v2627, 96
    %v2732 = vpop.permute.xlu0 %2731
    %v2735 = vsel %vm343, %v2704, 0
    %2737 = vmatpush.msra.mxu0 0.0
    %2738 = vmatpush.msra.mxu0 0.0
    %2739 = vmatpush.msra.mxu0 0.0
    %2740 = vmatpush.msra.mxu0 0.0
    %2741 = vmatpush.msra.mxu0 0.0
    %2742 = vmatpush.msra.mxu0 0.0
    %2743 = vmatpush.msra.mxu0 0.0
    %2744 = vmatpush.msra.mxu0 0.0
    %2745 = vmatpush.msra.mxu0 0.0
    %2746 = vmatpush.msra.mxu0 0.0
    %2747 = vmatpush.msra.mxu0 0.0
    %2748 = vmatpush.msra.mxu0 0.0
    %2749 = vmatpush.msra.mxu0 0.0
    %2750 = vmatpush.msra.mxu0 0.0
    %2751 = vmatpush.msra.mxu0 0.0
    %2752 = vmatpush.msra.mxu0 %v2732
    %2753 = vmatmul.f32.gmra.mxu0 %v2735
    %v2754 = vpop.f32.mrf.mxu0
    %v2755 = vadd.f32 0.0, %v2754
    %2756 = vdwg.mxu0
    %2757 = vrot.lane.b32.xlu0 %v2591, 120
    %v2758 = vpop.permute.xlu0 %2757
    %2759 = vrot.lane.b32.xlu0 %v2624, 120
    %v2760 = vpop.permute.xlu0 %2759
    %v2761 = vsel %vm343, %v2758, 0
    %v2763 = vsel %vm343, %v2760, 0
    %2765 = vmatpush.xpose.msra.mxu0 0.0
    %2766 = vmatpush.xpose.msra.mxu0 0.0
    %2767 = vmatpush.xpose.msra.mxu0 0.0
    %2768 = vmatpush.xpose.msra.mxu0 0.0
    %2769 = vmatpush.xpose.msra.mxu0 0.0
    %2770 = vmatpush.xpose.msra.mxu0 0.0
    %2771 = vmatpush.xpose.msra.mxu0 0.0
    %2772 = vmatpush.xpose.msra.mxu0 0.0
    %2773 = vmatpush.xpose.msra.mxu0 0.0
    %2774 = vmatpush.xpose.msra.mxu0 0.0
    %2775 = vmatpush.xpose.msra.mxu0 0.0
    %2776 = vmatpush.xpose.msra.mxu0 0.0
    %2777 = vmatpush.xpose.msra.mxu0 0.0
    %2778 = vmatpush.xpose.msra.mxu0 0.0
    %2779 = vmatpush.xpose.msra.mxu0 0.0
    %2780 = vmatpush.xpose.msra.mxu0 %v2763
    %2781 = vmatmul.f32.gmra.mxu0 %v2761
    %v2782 = vpop.f32.mrf.mxu0
    %v2783 = vadd.f32 0.0, %v2782
    %2784 = vdwg.mxu0
    %2785 = vrot.lane.b32.xlu0 %v2594, 120
    %v2786 = vpop.permute.xlu0 %2785
    %2787 = vrot.lane.b32.xlu0 %v2627, 120
    %v2788 = vpop.permute.xlu0 %2787
    %v2789 = vsel %vm343, %v2786, 0
    %v2791 = vsel %vm343, %v2788, 0
    %2793 = vmatpush.xpose.msra.mxu0 0.0
    %2794 = vmatpush.xpose.msra.mxu0 0.0
    %2795 = vmatpush.xpose.msra.mxu0 0.0
    %2796 = vmatpush.xpose.msra.mxu0 0.0
    %2797 = vmatpush.xpose.msra.mxu0 0.0
    %2798 = vmatpush.xpose.msra.mxu0 0.0
    %2799 = vmatpush.xpose.msra.mxu0 0.0
    %2800 = vmatpush.xpose.msra.mxu0 0.0
    %2801 = vmatpush.xpose.msra.mxu0 0.0
    %2802 = vmatpush.xpose.msra.mxu0 0.0
    %2803 = vmatpush.xpose.msra.mxu0 0.0
    %2804 = vmatpush.xpose.msra.mxu0 0.0
    %2805 = vmatpush.xpose.msra.mxu0 0.0
    %2806 = vmatpush.xpose.msra.mxu0 0.0
    %2807 = vmatpush.xpose.msra.mxu0 0.0
    %2808 = vmatpush.xpose.msra.mxu0 %v2791
    %2809 = vmatmul.f32.gmra.mxu0 %v2789
    %v2810 = vpop.f32.mrf.mxu0
    %v2811 = vadd.f32 0.0, %v2810
    %2812 = vdwg.mxu0
    %v2813 = vmul.f32 %v2783, 0.35355338
    %v2814 = vmul.f32 %v2811, 0.35355338
    %v2815 = vsel %vm343, %v2813, -inf
    %2816 = vmax.xlane.f32.xlu0 %v2815
    %v2817 = vpop.xlane.xlu0 %2816
    %v2818 = vsel %vm343, %v2814, -inf
    %2819 = vmax.xlane.f32.xlu0 %v2818
    %v2820 = vpop.xlane.xlu0 %2819
    %v2821 = vsub.f32 %v2813, %v2817
    %v2822 = vsub.f32 %v2814, %v2820
    %v2823 = vmul.f32 %v2821, 1.442695
    %v2824 = vpow.pop %v2823
    %v2825 = vmul.f32 %v2822, 1.442695
    %v2826 = vpow.pop %v2825
    %v2827 = vsel %vm343, %v2824, 0.0
    %2828 = vadd.xlane.f32.xlu0 %v2827
    %v2829 = vpop.xlane.xlu0 %2828
    %v2830 = vsel %vm343, %v2826, 0.0
    %2831 = vadd.xlane.f32.xlu0 %v2830
    %v2832 = vpop.xlane.xlu0 %2831
    %v2833 = vrcp.pop %v2829
    %v2834 = vrcp.pop %v2832
    %v2835 = vmul.f32 %v2824, %v2833
    %v2836 = vmul.f32 %v2826, %v2834
    %2837 = vrot.lane.b32.xlu0 %v2624, 88
    %v2838 = vpop.permute.xlu0 %2837
    %v2841 = vsel %vm343, %v2835, 0
    %2843 = vmatpush.msra.mxu0 0.0
    %2844 = vmatpush.msra.mxu0 0.0
    %2845 = vmatpush.msra.mxu0 0.0
    %2846 = vmatpush.msra.mxu0 0.0
    %2847 = vmatpush.msra.mxu0 0.0
    %2848 = vmatpush.msra.mxu0 0.0
    %2849 = vmatpush.msra.mxu0 0.0
    %2850 = vmatpush.msra.mxu0 0.0
    %2851 = vmatpush.msra.mxu0 0.0
    %2852 = vmatpush.msra.mxu0 0.0
    %2853 = vmatpush.msra.mxu0 0.0
    %2854 = vmatpush.msra.mxu0 0.0
    %2855 = vmatpush.msra.mxu0 0.0
    %2856 = vmatpush.msra.mxu0 0.0
    %2857 = vmatpush.msra.mxu0 0.0
    %2858 = vmatpush.msra.mxu0 %v2838
    %2859 = vmatmul.f32.gmra.mxu0 %v2841
    %v2860 = vpop.f32.mrf.mxu0
    %v2861 = vadd.f32 0.0, %v2860
    %2862 = vdwg.mxu0
    %2863 = vrot.lane.b32.xlu0 %v2627, 88
    %v2864 = vpop.permute.xlu0 %2863
    %v2867 = vsel %vm343, %v2836, 0
    %2869 = vmatpush.msra.mxu0 0.0
    %2870 = vmatpush.msra.mxu0 0.0
    %2871 = vmatpush.msra.mxu0 0.0
    %2872 = vmatpush.msra.mxu0 0.0
    %2873 = vmatpush.msra.mxu0 0.0
    %2874 = vmatpush.msra.mxu0 0.0
    %2875 = vmatpush.msra.mxu0 0.0
    %2876 = vmatpush.msra.mxu0 0.0
    %2877 = vmatpush.msra.mxu0 0.0
    %2878 = vmatpush.msra.mxu0 0.0
    %2879 = vmatpush.msra.mxu0 0.0
    %2880 = vmatpush.msra.mxu0 0.0
    %2881 = vmatpush.msra.mxu0 0.0
    %2882 = vmatpush.msra.mxu0 0.0
    %2883 = vmatpush.msra.mxu0 0.0
    %2884 = vmatpush.msra.mxu0 %v2864
    %2885 = vmatmul.f32.gmra.mxu0 %v2867
    %v2886 = vpop.f32.mrf.mxu0
    %v2887 = vadd.f32 0.0, %v2886
    %2888 = vdwg.mxu0
    %2889 = vrot.lane.b32.xlu0 %v2591, 112
    %v2890 = vpop.permute.xlu0 %2889
    %2891 = vrot.lane.b32.xlu0 %v2624, 112
    %v2892 = vpop.permute.xlu0 %2891
    %v2893 = vsel %vm343, %v2890, 0
    %v2895 = vsel %vm343, %v2892, 0
    %2897 = vmatpush.xpose.msra.mxu0 0.0
    %2898 = vmatpush.xpose.msra.mxu0 0.0
    %2899 = vmatpush.xpose.msra.mxu0 0.0
    %2900 = vmatpush.xpose.msra.mxu0 0.0
    %2901 = vmatpush.xpose.msra.mxu0 0.0
    %2902 = vmatpush.xpose.msra.mxu0 0.0
    %2903 = vmatpush.xpose.msra.mxu0 0.0
    %2904 = vmatpush.xpose.msra.mxu0 0.0
    %2905 = vmatpush.xpose.msra.mxu0 0.0
    %2906 = vmatpush.xpose.msra.mxu0 0.0
    %2907 = vmatpush.xpose.msra.mxu0 0.0
    %2908 = vmatpush.xpose.msra.mxu0 0.0
    %2909 = vmatpush.xpose.msra.mxu0 0.0
    %2910 = vmatpush.xpose.msra.mxu0 0.0
    %2911 = vmatpush.xpose.msra.mxu0 0.0
    %2912 = vmatpush.xpose.msra.mxu0 %v2895
    %2913 = vmatmul.f32.gmra.mxu0 %v2893
    %v2914 = vpop.f32.mrf.mxu0
    %v2915 = vadd.f32 0.0, %v2914
    %2916 = vdwg.mxu0
    %2917 = vrot.lane.b32.xlu0 %v2594, 112
    %v2918 = vpop.permute.xlu0 %2917
    %2919 = vrot.lane.b32.xlu0 %v2627, 112
    %v2920 = vpop.permute.xlu0 %2919
    %v2921 = vsel %vm343, %v2918, 0
    %v2923 = vsel %vm343, %v2920, 0
    %2925 = vmatpush.xpose.msra.mxu0 0.0
    %2926 = vmatpush.xpose.msra.mxu0 0.0
    %2927 = vmatpush.xpose.msra.mxu0 0.0
    %2928 = vmatpush.xpose.msra.mxu0 0.0
    %2929 = vmatpush.xpose.msra.mxu0 0.0
    %2930 = vmatpush.xpose.msra.mxu0 0.0
    %2931 = vmatpush.xpose.msra.mxu0 0.0
    %2932 = vmatpush.xpose.msra.mxu0 0.0
    %2933 = vmatpush.xpose.msra.mxu0 0.0
    %2934 = vmatpush.xpose.msra.mxu0 0.0
    %2935 = vmatpush.xpose.msra.mxu0 0.0
    %2936 = vmatpush.xpose.msra.mxu0 0.0
    %2937 = vmatpush.xpose.msra.mxu0 0.0
    %2938 = vmatpush.xpose.msra.mxu0 0.0
    %2939 = vmatpush.xpose.msra.mxu0 0.0
    %2940 = vmatpush.xpose.msra.mxu0 %v2923
    %2941 = vmatmul.f32.gmra.mxu0 %v2921
    %v2942 = vpop.f32.mrf.mxu0
    %v2943 = vadd.f32 0.0, %v2942
    %2944 = vdwg.mxu0
    %v2945 = vmul.f32 %v2915, 0.35355338
    %v2946 = vmul.f32 %v2943, 0.35355338
    %v2947 = vsel %vm343, %v2945, -inf
    %2948 = vmax.xlane.f32.xlu0 %v2947
    %v2949 = vpop.xlane.xlu0 %2948
    %v2950 = vsel %vm343, %v2946, -inf
    %2951 = vmax.xlane.f32.xlu0 %v2950
    %v2952 = vpop.xlane.xlu0 %2951
    %v2953 = vsub.f32 %v2945, %v2949
    %v2954 = vsub.f32 %v2946, %v2952
    %v2955 = vmul.f32 %v2953, 1.442695
    %v2956 = vpow.pop %v2955
    %v2957 = vmul.f32 %v2954, 1.442695
    %v2958 = vpow.pop %v2957
    %v2959 = vsel %vm343, %v2956, 0.0
    %2960 = vadd.xlane.f32.xlu0 %v2959
    %v2961 = vpop.xlane.xlu0 %2960
    %v2962 = vsel %vm343, %v2958, 0.0
    %2963 = vadd.xlane.f32.xlu0 %v2962
    %v2964 = vpop.xlane.xlu0 %2963
    %v2965 = vrcp.pop %v2961
    %v2966 = vrcp.pop %v2964
    %v2967 = vmul.f32 %v2956, %v2965
    %v2968 = vmul.f32 %v2958, %v2966
    %2969 = vrot.lane.b32.xlu0 %v2624, 80
    %v2970 = vpop.permute.xlu0 %2969
    %v2973 = vsel %vm343, %v2967, 0
    %2975 = vmatpush.msra.mxu0 0.0
    %2976 = vmatpush.msra.mxu0 0.0
    %2977 = vmatpush.msra.mxu0 0.0
    %2978 = vmatpush.msra.mxu0 0.0
    %2979 = vmatpush.msra.mxu0 0.0
    %2980 = vmatpush.msra.mxu0 0.0
    %2981 = vmatpush.msra.mxu0 0.0
    %2982 = vmatpush.msra.mxu0 0.0
    %2983 = vmatpush.msra.mxu0 0.0
    %2984 = vmatpush.msra.mxu0 0.0
    %2985 = vmatpush.msra.mxu0 0.0
    %2986 = vmatpush.msra.mxu0 0.0
    %2987 = vmatpush.msra.mxu0 0.0
    %2988 = vmatpush.msra.mxu0 0.0
    %2989 = vmatpush.msra.mxu0 0.0
    %2990 = vmatpush.msra.mxu0 %v2970
    %2991 = vmatmul.f32.gmra.mxu0 %v2973
    %v2992 = vpop.f32.mrf.mxu0
    %v2993 = vadd.f32 0.0, %v2992
    %2994 = vdwg.mxu0
    %2995 = vrot.lane.b32.xlu0 %v2627, 80
    %v2996 = vpop.permute.xlu0 %2995
    %v2999 = vsel %vm343, %v2968, 0
    %3001 = vmatpush.msra.mxu0 0.0
    %3002 = vmatpush.msra.mxu0 0.0
    %3003 = vmatpush.msra.mxu0 0.0
    %3004 = vmatpush.msra.mxu0 0.0
    %3005 = vmatpush.msra.mxu0 0.0
    %3006 = vmatpush.msra.mxu0 0.0
    %3007 = vmatpush.msra.mxu0 0.0
    %3008 = vmatpush.msra.mxu0 0.0
    %3009 = vmatpush.msra.mxu0 0.0
    %3010 = vmatpush.msra.mxu0 0.0
    %3011 = vmatpush.msra.mxu0 0.0
    %3012 = vmatpush.msra.mxu0 0.0
    %3013 = vmatpush.msra.mxu0 0.0
    %3014 = vmatpush.msra.mxu0 0.0
    %3015 = vmatpush.msra.mxu0 0.0
    %3016 = vmatpush.msra.mxu0 %v2996
    %3017 = vmatmul.f32.gmra.mxu0 %v2999
    %v3018 = vpop.f32.mrf.mxu0
    %v3019 = vadd.f32 0.0, %v3018
    %3020 = vdwg.mxu0
    %3021 = vrot.lane.b32.xlu0 %v2591, 104
    %v3022 = vpop.permute.xlu0 %3021
    %3023 = vrot.lane.b32.xlu0 %v2624, 104
    %v3024 = vpop.permute.xlu0 %3023
    %v3025 = vsel %vm343, %v3022, 0
    %v3027 = vsel %vm343, %v3024, 0
    %3029 = vmatpush.xpose.msra.mxu0 0.0
    %3030 = vmatpush.xpose.msra.mxu0 0.0
    %3031 = vmatpush.xpose.msra.mxu0 0.0
    %3032 = vmatpush.xpose.msra.mxu0 0.0
    %3033 = vmatpush.xpose.msra.mxu0 0.0
    %3034 = vmatpush.xpose.msra.mxu0 0.0
    %3035 = vmatpush.xpose.msra.mxu0 0.0
    %3036 = vmatpush.xpose.msra.mxu0 0.0
    %3037 = vmatpush.xpose.msra.mxu0 0.0
    %3038 = vmatpush.xpose.msra.mxu0 0.0
    %3039 = vmatpush.xpose.msra.mxu0 0.0
    %3040 = vmatpush.xpose.msra.mxu0 0.0
    %3041 = vmatpush.xpose.msra.mxu0 0.0
    %3042 = vmatpush.xpose.msra.mxu0 0.0
    %3043 = vmatpush.xpose.msra.mxu0 0.0
    %3044 = vmatpush.xpose.msra.mxu0 %v3027
    %3045 = vmatmul.f32.gmra.mxu0 %v3025
    %v3046 = vpop.f32.mrf.mxu0
    %v3047 = vadd.f32 0.0, %v3046
    %3048 = vdwg.mxu0
    %3049 = vrot.lane.b32.xlu0 %v2594, 104
    %v3050 = vpop.permute.xlu0 %3049
    %3051 = vrot.lane.b32.xlu0 %v2627, 104
    %v3052 = vpop.permute.xlu0 %3051
    %v3053 = vsel %vm343, %v3050, 0
    %v3055 = vsel %vm343, %v3052, 0
    %3057 = vmatpush.xpose.msra.mxu0 0.0
    %3058 = vmatpush.xpose.msra.mxu0 0.0
    %3059 = vmatpush.xpose.msra.mxu0 0.0
    %3060 = vmatpush.xpose.msra.mxu0 0.0
    %3061 = vmatpush.xpose.msra.mxu0 0.0
    %3062 = vmatpush.xpose.msra.mxu0 0.0
    %3063 = vmatpush.xpose.msra.mxu0 0.0
    %3064 = vmatpush.xpose.msra.mxu0 0.0
    %3065 = vmatpush.xpose.msra.mxu0 0.0
    %3066 = vmatpush.xpose.msra.mxu0 0.0
    %3067 = vmatpush.xpose.msra.mxu0 0.0
    %3068 = vmatpush.xpose.msra.mxu0 0.0
    %3069 = vmatpush.xpose.msra.mxu0 0.0
    %3070 = vmatpush.xpose.msra.mxu0 0.0
    %3071 = vmatpush.xpose.msra.mxu0 0.0
    %3072 = vmatpush.xpose.msra.mxu0 %v3055
    %3073 = vmatmul.f32.gmra.mxu0 %v3053
    %v3074 = vpop.f32.mrf.mxu0
    %v3075 = vadd.f32 0.0, %v3074
    %3076 = vdwg.mxu0
    %v3077 = vmul.f32 %v3047, 0.35355338
    %v3078 = vmul.f32 %v3075, 0.35355338
    %v3079 = vsel %vm343, %v3077, -inf
    %3080 = vmax.xlane.f32.xlu0 %v3079
    %v3081 = vpop.xlane.xlu0 %3080
    %v3082 = vsel %vm343, %v3078, -inf
    %3083 = vmax.xlane.f32.xlu0 %v3082
    %v3084 = vpop.xlane.xlu0 %3083
    %v3085 = vsub.f32 %v3077, %v3081
    %v3086 = vsub.f32 %v3078, %v3084
    %v3087 = vmul.f32 %v3085, 1.442695
    %v3088 = vpow.pop %v3087
    %v3089 = vmul.f32 %v3086, 1.442695
    %v3090 = vpow.pop %v3089
    %v3091 = vsel %vm343, %v3088, 0.0
    %3092 = vadd.xlane.f32.xlu0 %v3091
    %v3093 = vpop.xlane.xlu0 %3092
    %v3094 = vsel %vm343, %v3090, 0.0
    %3095 = vadd.xlane.f32.xlu0 %v3094
    %v3096 = vpop.xlane.xlu0 %3095
    %v3097 = vrcp.pop %v3093
    %v3098 = vrcp.pop %v3096
    %v3099 = vmul.f32 %v3088, %v3097
    %v3100 = vmul.f32 %v3090, %v3098
    %3101 = vrot.lane.b32.xlu0 %v2624, 72
    %v3102 = vpop.permute.xlu0 %3101
    %v3105 = vsel %vm343, %v3099, 0
    %3107 = vmatpush.msra.mxu0 0.0
    %3108 = vmatpush.msra.mxu0 0.0
    %3109 = vmatpush.msra.mxu0 0.0
    %3110 = vmatpush.msra.mxu0 0.0
    %3111 = vmatpush.msra.mxu0 0.0
    %3112 = vmatpush.msra.mxu0 0.0
    %3113 = vmatpush.msra.mxu0 0.0
    %3114 = vmatpush.msra.mxu0 0.0
    %3115 = vmatpush.msra.mxu0 0.0
    %3116 = vmatpush.msra.mxu0 0.0
    %3117 = vmatpush.msra.mxu0 0.0
    %3118 = vmatpush.msra.mxu0 0.0
    %3119 = vmatpush.msra.mxu0 0.0
    %3120 = vmatpush.msra.mxu0 0.0
    %3121 = vmatpush.msra.mxu0 0.0
    %3122 = vmatpush.msra.mxu0 %v3102
    %3123 = vmatmul.f32.gmra.mxu0 %v3105
    %v3124 = vpop.f32.mrf.mxu0
    %v3125 = vadd.f32 0.0, %v3124
    %3126 = vdwg.mxu0
    %3127 = vrot.lane.b32.xlu0 %v2627, 72
    %v3128 = vpop.permute.xlu0 %3127
    %v3131 = vsel %vm343, %v3100, 0
    %3133 = vmatpush.msra.mxu0 0.0
    %3134 = vmatpush.msra.mxu0 0.0
    %3135 = vmatpush.msra.mxu0 0.0
    %3136 = vmatpush.msra.mxu0 0.0
    %3137 = vmatpush.msra.mxu0 0.0
    %3138 = vmatpush.msra.mxu0 0.0
    %3139 = vmatpush.msra.mxu0 0.0
    %3140 = vmatpush.msra.mxu0 0.0
    %3141 = vmatpush.msra.mxu0 0.0
    %3142 = vmatpush.msra.mxu0 0.0
    %3143 = vmatpush.msra.mxu0 0.0
    %3144 = vmatpush.msra.mxu0 0.0
    %3145 = vmatpush.msra.mxu0 0.0
    %3146 = vmatpush.msra.mxu0 0.0
    %3147 = vmatpush.msra.mxu0 0.0
    %3148 = vmatpush.msra.mxu0 %v3128
    %3149 = vmatmul.f32.gmra.mxu0 %v3131
    %v3150 = vpop.f32.mrf.mxu0
    %v3151 = vadd.f32 0.0, %v3150
    %3152 = vdwg.mxu0
    %3155 = vrot.lane.b32.xlu0 %v2861, 8
    %v3156 = vpop.permute.xlu0 %3155
    %3157 = vrot.lane.b32.xlu0 %v2887, 8
    %v3158 = vpop.permute.xlu0 %3157
    %3163 = vrot.lane.b32.xlu0 %v2993, 16
    %v3164 = vpop.permute.xlu0 %3163
    %3165 = vrot.lane.b32.xlu0 %v3019, 16
    %v3166 = vpop.permute.xlu0 %3165
    %3171 = vrot.lane.b32.xlu0 %v3125, 24
    %v3172 = vpop.permute.xlu0 %3171
    %3173 = vrot.lane.b32.xlu0 %v3151, 24
    %v3174 = vpop.permute.xlu0 %3173
    %v3177 = vsel %vm343, %v2729, %v3156
    %v3178 = vsel %vm343, %v2755, %v3158
    %v3179 = vsel %vm893, %v3177, %v3164
    %v3180 = vsel %vm893, %v3178, %v3166
    %v3181 = vsel %vm896, %v3179, %v3172
    %v3182 = vsel %vm896, %v3180, %v3174
    %s3183 = scalar_lea.vmem [#allocation6], 32
    %v3184 = vld [vmem:[%s3183] sm:$0xff]
    %v3185 = vld [vmem:[%s3183 + $0x8] sm:$0xff]
    %v3186 = vld [vmem:[%s3183 + $0x10] sm:$0xff]
    %v3187 = vld [vmem:[%s3183 + $0x18] sm:$0xff]
    %s3188 = scalar_lea.vmem %s11, 1
    %v3189 = vld [vmem:[%s3188] sm:$0x1]
    %v3191 = vperm.slane %v3189, 0
    %v3194 = vsel %vm310, %v3181, 0
    %v3197 = vsel %vm310, %v3182, 0
    %3199 = vmatpush.msra.mxu0 0.0
    %3200 = vmatpush.msra.mxu0 0.0
    %3201 = vmatpush.msra.mxu0 0.0
    %3202 = vmatpush.msra.mxu0 0.0
    %3203 = vmatpush.msra.mxu0 0.0
    %3204 = vmatpush.msra.mxu0 0.0
    %3205 = vmatpush.msra.mxu0 0.0
    %3206 = vmatpush.msra.mxu0 0.0
    %3207 = vmatpush.msra.mxu0 0.0
    %3208 = vmatpush.msra.mxu0 0.0
    %3209 = vmatpush.msra.mxu0 0.0
    %3210 = vmatpush.msra.mxu0 0.0
    %3211 = vmatpush.msra.mxu0 %v3187
    %3212 = vmatpush.msra.mxu0 %v3186
    %3213 = vmatpush.msra.mxu0 %v3185
    %3214 = vmatpush.msra.mxu0 %v3184
    %3215 = vmatmul.f32.gmra.mxu0 %v3194
    %v3216 = vpop.f32.mrf.mxu0
    %v3217 = vadd.f32 %v3191, %v3216
    %3218 = vmatmul.f32.gmra.mxu0 %v3197
    %v3219 = vpop.f32.mrf.mxu0
    %v3220 = vadd.f32 %v3191, %v3219
    %3221 = vdwg.mxu0
    %v3222 = vadd.f32 %v2555, %v3217
    %v3223 = vadd.f32 %v2556, %v3220
    %s3224 = scalar_lea.vmem [#allocation15], 1
    %v3225 = vld [vmem:[%s3224] sm:$0x1]
    %s3226 = scalar_lea.vmem [#allocation17], 1
    %v3227 = vld [vmem:[%s3226] sm:$0x1]
    %v3228 = vsel %vm310, %v3222, 0.0
    %3229 = vadd.xlane.f32.xlu0 %v3228
    %v3230 = vpop.xlane.xlu0 %3229
    %v3231 = vsel %vm310, %v3223, 0.0
    %3232 = vadd.xlane.f32.xlu0 %v3231
    %v3233 = vpop.xlane.xlu0 %3232
    %v3234 = vmul.f32 %v3230, %v952
    %v3235 = vmul.f32 %v3233, %v952
    %v3236 = vsub.f32 %v3222, %v3234
    %v3237 = vsub.f32 %v3223, %v3235
    %v3238 = vmul.f32 %v3236, %v3236
    %v3239 = vmul.f32 %v3237, %v3237
    %v3240 = vsel %vm310, %v3238, 0.0
    %3241 = vadd.xlane.f32.xlu0 %v3240
    %v3242 = vpop.xlane.xlu0 %3241
    %v3243 = vsel %vm310, %v3239, 0.0
    %3244 = vadd.xlane.f32.xlu0 %v3243
    %v3245 = vpop.xlane.xlu0 %3244
    %v3246 = vmul.f32 %v3242, %v952
    %v3247 = vmul.f32 %v3245, %v952
    %v3248 = vadd.f32 %v3246, 1e-05
    %v3249 = vadd.f32 %v3247, 1e-05
    %v3250 = vrsqrt.pop %v3248
    %v3251 = vmul.f32 %v3250, %v3248
    %v3252 = vmul.f32 %v3251, %v3250
    %v3253 = vmul.f32 0.5, %v3252
    %v3254 = vsub.f32 1.5, %v3253
    %v3255 = vmul.f32 %v3250, %v3254
    %vm3256 = vweird.f32 %v3248
    %vm3257 = vweird.f32 %v3250
    %vm3258 = vmor %vm3256, %vm3257
    %v3259 = vsel %vm3258, %v3250, %v3255
    %v3260 = vrsqrt.pop %v3249
    %v3261 = vmul.f32 %v3260, %v3249
    %v3262 = vmul.f32 %v3261, %v3260
    %v3263 = vmul.f32 0.5, %v3262
    %v3264 = vsub.f32 1.5, %v3263
    %v3265 = vmul.f32 %v3260, %v3264
    %vm3266 = vweird.f32 %v3249
    %vm3267 = vweird.f32 %v3260
    %vm3268 = vmor %vm3266, %vm3267
    %v3269 = vsel %vm3268, %v3260, %v3265
    %v3270 = vmul.f32 %v3236, %v3259
    %v3271 = vmul.f32 %v3237, %v3269
    %v3273 = vperm.slane %v3225, 0
    %v3275 = vmul.f32 %v3270, %v3273
    %v3276 = vmul.f32 %v3271, %v3273
    %v3278 = vperm.slane %v3227, 0
    %v3280 = vadd.f32 %v3275, %v3278
    %v3281 = vadd.f32 %v3276, %v3278
    %s3282 = scalar_lea.vmem [#allocation8], 32
    %v3283 = vld [vmem:[%s3282] sm:$0xff]
    %v3284 = vld [vmem:[%s3282 + $0x8] sm:$0xff]
    %v3285 = vld [vmem:[%s3282 + $0x10] sm:$0xff]
    %v3286 = vld [vmem:[%s3282 + $0x18] sm:$0xff]
    %s3287 = scalar_lea.vmem [#allocation9], 1
    %v3288 = vld [vmem:[%s3287] sm:$0x1]
    %v3290 = vperm.slane %v3288, 0
    %v3293 = vsel %vm310, %v3280, 0
    %v3296 = vsel %vm310, %v3281, 0
    %3298 = vmatpush.msra.mxu0 0.0
    %3299 = vmatpush.msra.mxu0 0.0
    %3300 = vmatpush.msra.mxu0 0.0
    %3301 = vmatpush.msra.mxu0 0.0
    %3302 = vmatpush.msra.mxu0 0.0
    %3303 = vmatpush.msra.mxu0 0.0
    %3304 = vmatpush.msra.mxu0 0.0
    %3305 = vmatpush.msra.mxu0 0.0
    %3306 = vmatpush.msra.mxu0 0.0
    %3307 = vmatpush.msra.mxu0 0.0
    %3308 = vmatpush.msra.mxu0 0.0
    %3309 = vmatpush.msra.mxu0 0.0
    %3310 = vmatpush.msra.mxu0 %v3286
    %3311 = vmatpush.msra.mxu0 %v3285
    %3312 = vmatpush.msra.mxu0 %v3284
    %3313 = vmatpush.msra.mxu0 %v3283
    %3314 = vmatmul.f32.gmra.mxu0 %v3293
    %v3315 = vpop.f32.mrf.mxu0
    %v3316 = vadd.f32 %v3290, %v3315
    %3317 = vmatmul.f32.gmra.mxu0 %v3296
    %v3318 = vpop.f32.mrf.mxu0
    %v3319 = vadd.f32 %v3290, %v3318
    %3320 = vdwg.mxu0
    %v3321 = vmax.f32 %v3316, 0.0
    %v3322 = vmax.f32 %v3319, 0.0
    %s3323 = scalar_lea.vmem %s14, 64
    %v3324 = vld [vmem:[%s3323] sm:$0xff]
    %v3325 = vld [vmem:[%s3323 + $0x8] sm:$0xff]
    %v3326 = vld [vmem:[%s3323 + $0x10] sm:$0xff]
    %v3327 = vld [vmem:[%s3323 + $0x18] sm:$0xff]
    %v3328 = vld [vmem:[%s3323 + $0x20] sm:$0xff]
    %v3329 = vld [vmem:[%s3323 + $0x28] sm:$0xff]
    %v3330 = vld [vmem:[%s3323 + $0x30] sm:$0xff]
    %v3331 = vld [vmem:[%s3323 + $0x38] sm:$0xff]
    %s3332 = scalar_lea.vmem [#allocation11], 1
    %v3333 = vld [vmem:[%s3332] sm:$0x1]
    %v3335 = vperm.slane %v3333, 0
    %v3338 = vsel %vm1775, %v3321, 0
    %v3341 = vsel %vm1775, %v3322, 0
    %3343 = vmatpush.msra.mxu0 0.0
    %3344 = vmatpush.msra.mxu0 0.0
    %3345 = vmatpush.msra.mxu0 0.0
    %3346 = vmatpush.msra.mxu0 0.0
    %3347 = vmatpush.msra.mxu0 0.0
    %3348 = vmatpush.msra.mxu0 0.0
    %3349 = vmatpush.msra.mxu0 0.0
    %3350 = vmatpush.msra.mxu0 0.0
    %3351 = vmatpush.msra.mxu0 %v3331
    %3352 = vmatpush.msra.mxu0 %v3330
    %3353 = vmatpush.msra.mxu0 %v3329
    %3354 = vmatpush.msra.mxu0 %v3328
    %3355 = vmatpush.msra.mxu0 %v3327
    %3356 = vmatpush.msra.mxu0 %v3326
    %3357 = vmatpush.msra.mxu0 %v3325
    %3358 = vmatpush.msra.mxu0 %v3324
    %3359 = vmatmul.f32.gmra.mxu0 %v3338
    %v3360 = vpop.f32.mrf.mxu0
    %v3361 = vadd.f32 %v3335, %v3360
    %3362 = vmatmul.f32.gmra.mxu0 %v3341
    %v3363 = vpop.f32.mrf.mxu0
    %v3364 = vadd.f32 %v3335, %v3363
    %3365 = vdwg.mxu0
    %v3366 = vadd.f32 %v3280, %v3361
    %v3367 = vadd.f32 %v3281, %v3364
    %s3368 = scalar_lea.vmem [#allocation18], 1
    %v3369 = vld [vmem:[%s3368] sm:$0x1]
    %s3370 = scalar_lea.vmem [#allocation20], 1
    %v3371 = vld [vmem:[%s3370] sm:$0x1]
    %v3372 = vsel %vm310, %v3366, 0.0
    %3373 = vadd.xlane.f32.xlu0 %v3372
    %v3374 = vpop.xlane.xlu0 %3373
    %v3375 = vsel %vm310, %v3367, 0.0
    %3376 = vadd.xlane.f32.xlu0 %v3375
    %v3377 = vpop.xlane.xlu0 %3376
    %v3378 = vmul.f32 %v3374, %v952
    %v3379 = vmul.f32 %v3377, %v952
    %v3380 = vsub.f32 %v3366, %v3378
    %v3381 = vsub.f32 %v3367, %v3379
    %v3382 = vmul.f32 %v3380, %v3380
    %v3383 = vmul.f32 %v3381, %v3381
    %v3384 = vsel %vm310, %v3382, 0.0
    %3385 = vadd.xlane.f32.xlu0 %v3384
    %v3386 = vpop.xlane.xlu0 %3385
    %v3387 = vsel %vm310, %v3383, 0.0
    %3388 = vadd.xlane.f32.xlu0 %v3387
    %v3389 = vpop.xlane.xlu0 %3388
    %v3390 = vmul.f32 %v3386, %v952
    %v3391 = vmul.f32 %v3389, %v952
    %v3392 = vadd.f32 %v3390, 1e-05
    %v3393 = vadd.f32 %v3391, 1e-05
    %v3394 = vrsqrt.pop %v3392
    %v3395 = vmul.f32 %v3394, %v3392
    %v3396 = vmul.f32 %v3395, %v3394
    %v3397 = vmul.f32 0.5, %v3396
    %v3398 = vsub.f32 1.5, %v3397
    %v3399 = vmul.f32 %v3394, %v3398
    %vm3400 = vweird.f32 %v3392
    %vm3401 = vweird.f32 %v3394
    %vm3402 = vmor %vm3400, %vm3401
    %v3403 = vsel %vm3402, %v3394, %v3399
    %v3404 = vrsqrt.pop %v3393
    %v3405 = vmul.f32 %v3404, %v3393
    %v3406 = vmul.f32 %v3405, %v3404
    %v3407 = vmul.f32 0.5, %v3406
    %v3408 = vsub.f32 1.5, %v3407
    %v3409 = vmul.f32 %v3404, %v3408
    %vm3410 = vweird.f32 %v3393
    %vm3411 = vweird.f32 %v3404
    %vm3412 = vmor %vm3410, %vm3411
    %v3413 = vsel %vm3412, %v3404, %v3409
    %v3414 = vmul.f32 %v3380, %v3403
    %v3415 = vmul.f32 %v3381, %v3413
    %v3417 = vperm.slane %v3369, 0
    %v3419 = vmul.f32 %v3414, %v3417
    %v3420 = vmul.f32 %v3415, %v3417
    %v3422 = vperm.slane %v3371, 0
    %v3424 = vadd.f32 %v3419, %v3422
    %v3425 = vadd.f32 %v3420, %v3422
    %v3426 = vld [vmem:[#allocation21] sm:$0x1]
    %v3427 = vld [vmem:[#allocation23] sm:$0x1]
    %v3428 = vsel %vm310, %v3424, 0.0
    %3429 = vadd.xlane.f32.xlu0 %v3428
    %v3430 = vpop.xlane.xlu0 %3429
    %v3431 = vsel %vm310, %v3425, 0.0
    %3432 = vadd.xlane.f32.xlu0 %v3431
    %v3433 = vpop.xlane.xlu0 %3432
    %v3434 = vmul.f32 %v3430, %v952
    %v3435 = vmul.f32 %v3433, %v952
    %v3436 = vsub.f32 %v3424, %v3434
    %v3437 = vsub.f32 %v3425, %v3435
    %v3438 = vmul.f32 %v3436, %v3436
    %v3439 = vmul.f32 %v3437, %v3437
    %v3440 = vsel %vm310, %v3438, 0.0
    %3441 = vadd.xlane.f32.xlu0 %v3440
    %v3442 = vpop.xlane.xlu0 %3441
    %v3443 = vsel %vm310, %v3439, 0.0
    %3444 = vadd.xlane.f32.xlu0 %v3443
    %v3445 = vpop.xlane.xlu0 %3444
    %v3446 = vmul.f32 %v3442, %v952
    %v3447 = vmul.f32 %v3445, %v952
    %v3448 = vadd.f32 %v3446, 1e-05
    %v3449 = vadd.f32 %v3447, 1e-05
    %v3450 = vrsqrt.pop %v3448
    %v3451 = vmul.f32 %v3450, %v3448
    %v3452 = vmul.f32 %v3451, %v3450
    %v3453 = vmul.f32 0.5, %v3452
    %v3454 = vsub.f32 1.5, %v3453
    %v3455 = vmul.f32 %v3450, %v3454
    %vm3456 = vweird.f32 %v3448
    %vm3457 = vweird.f32 %v3450
    %vm3458 = vmor %vm3456, %vm3457
    %v3459 = vsel %vm3458, %v3450, %v3455
    %v3460 = vrsqrt.pop %v3449
    %v3461 = vmul.f32 %v3460, %v3449
    %v3462 = vmul.f32 %v3461, %v3460
    %v3463 = vmul.f32 0.5, %v3462
    %v3464 = vsub.f32 1.5, %v3463
    %v3465 = vmul.f32 %v3460, %v3464
    %vm3466 = vweird.f32 %v3449
    %vm3467 = vweird.f32 %v3460
    %vm3468 = vmor %vm3466, %vm3467
    %v3469 = vsel %vm3468, %v3460, %v3465
    %v3470 = vmul.f32 %v3436, %v3459
    %v3471 = vmul.f32 %v3437, %v3469
    %v3473 = vperm.slane %v3426, 0
    %v3475 = vmul.f32 %v3470, %v3473
    %v3476 = vmul.f32 %v3471, %v3473
    %v3478 = vperm.slane %v3427, 0
    %v3480 = vadd.f32 %v3475, %v3478
    %v3481 = vadd.f32 %v3476, %v3478
    %v3482 = vld [vmem:[#allocation24] sm:$0x1]
    %v3484 = vperm.slane %v3482, 0
    %v3486 = vmul.f32 %v3480, %v3484
    %v3487 = vmul.f32 %v3481, %v3484
    %v3488 = vsel %vm310, %v3486, 0.0
    %3489 = vadd.xlane.f32.xlu0 %v3488
    %v3490 = vpop.xlane.xlu0 %3489
    %v3491 = vsel %vm310, %v3487, 0.0
    %3492 = vadd.xlane.f32.xlu0 %v3491
    %v3493 = vpop.xlane.xlu0 %3492
    %v3494 = vld [vmem:[#allocation2] sm:$0x1]
    %v3496 = vperm.slane %v3494, 0
    %3497 = vset.pattern.permute.xlu0 0
    %3498 = vperm.xlu0 %3497, %v3496
    %v3499 = vpop.permute.xlu0 %3498
    %v3501 = vadd.f32 %v3490, %v3499
    %v3502 = vadd.f32 %v3493, %v3499
    %v3505 = vlaneseq
    %v3506 = vand.u32 %v3505, 127
    %v3507 = vperm.slane %v3501, %v3506
    %v3508 = vperm.slane %v3502, %v3506
    %vm3509 = vcmask 1041409
    %v3510 = vsel %vm3509, %v3508, %v3507
    %vm3512 = vcmask 58368
    %3513 = vst.msk [vmem:[#allocation26] sm:$0x3] %vm3512, %v3510
    // Predicated region
    $region162: #{pulse_decoder_forward.1} parent=1 // pred_check
      _
    $region163: #{pulse_decoder_forward.1} parent=1 // pred_check_branch
      %3515 = sbr.rel (0) target = $region165
    $region164: #{pulse_decoder_forward.1} parent=1 // pred_region
      %3517 = vsyncadd [#allocation5], 0
      %s3519 = sshll.u32 [#allocation26], 4
      %s3520 = int_to_ptr.vmem [resolvable:$true] %s3519
      %s3521 = sshll.u32 %s26, 4
      %s3522 = int_to_ptr.hbm [resolvable:$true] %s3521
      %3524 = dma.vmem_to_hbm [thread:$0]  %s3520, 32, %s3522, [#allocation5]
    $region165: #{pulse_decoder_forward.1} parent=1 // pred_fallthru
      _
    // Predicated region
    $region166: #{pulse_decoder_forward.1} parent=1 // pred_check
      _
    $region167: #{pulse_decoder_forward.1} parent=1 // pred_check_branch
      %3526 = sbr.rel (0) target = $region169
    $region168: #{pulse_decoder_forward.1} parent=1 // pred_region
      %3528 = dma.done [#allocation5], 32
    $region169: #{pulse_decoder_forward.1} parent=1 // pred_fallthru
      _
    %3529 = vsyncpa [#allocation4], 1
    %3530 = vsyncpa [#allocation7], 1
    %3531 = vsyncpa [#allocation10], 1
    %3532 = vsyncpa [#allocation13], 1
    %3533 = vsyncpa [#allocation16], 1
    %3534 = vsyncpa [#allocation19], 1
    %3535 = vsyncpa [#allocation22], 1
    %3536 = vsyncpa [#allocation25], 1
    %3537 = vsyncpa [#allocation5], 1

</llo_original>
